<compile_context>
chip_gen: v7x
topology: tpu7x:2x2x1
jax: 0.10.0
libtpu: 0.0.40
codegen_flags: <defaults>
</compile_context>

<pallas_src>
import jax
import jax.numpy as jnp
from jax.experimental import pallas as pl
from jax.experimental.pallas import tpu as pltpu


def _make_defuzz_kernel(num_features, has_weight):
    """Kernel over refs: (coef_smem, x_0 .. x_{F-1}, [wt], out)."""

    def kernel(*refs):
        coef_ref = refs[0]                       # (F+1,) in SMEM: W..., bias
        x_refs = refs[1:1 + num_features]        # each (rb, 128) sample tile
        o_ref = refs[-1]                         # (rb, 128) f32 output tile

        # Unrolled VPU multiply-accumulate over features (fully dense vregs).
        acc = x_refs[0][...].astype(jnp.float32) * coef_ref[0]
        for i in range(1, num_features):
            acc = acc + x_refs[i][...].astype(jnp.float32) * coef_ref[i]
        acc = acc + coef_ref[num_features]       # linear bias

        if has_weight:
            wt_ref = refs[1 + num_features]      # (rb, 128) per-sample weight
            acc = acc * wt_ref[...].astype(jnp.float32)

        o_ref[...] = acc

    return kernel


def defuzzification_forward(x_list, weight, lin_w, lin_b, *,
                            block_rows=None,
                            target_block_bytes=4 << 20,
                            min_pallas_bytes=1 << 18):
    """Forward pass of DefuzzificationLayer.

    x_list : list of F arrays, each shape (N,) (any float dtype; cast to f32).
    weight : scalar, or per-sample array with N elements ((N,), (N,1), (1,N)).
    lin_w  : (1, F) Linear weight;  lin_b : (1,) Linear bias.
    Returns (N, 1) float32, matching the PyTorch module.
    """
    xs = [jnp.asarray(xi) for xi in x_list]
    F = len(xs)
    N = int(xs[0].shape[0])
    for xi in xs:
        if xi.shape != (N,):
            raise ValueError("all inputs must be 1-D arrays of the same length")

    lin_w_flat = jnp.asarray(lin_w, jnp.float32).reshape(F)
    bias = jnp.asarray(lin_b, jnp.float32).reshape(())
    weight = jnp.asarray(weight)

    scalar_weight = weight.size == 1
    if not scalar_weight and weight.size != N:
        raise ValueError("weight must be a scalar or have one value per sample")
    # TODO(synk): PyTorch `f(N,1) * weight(N,)` would broadcast to (N, N);
    # here any N-element weight is treated as a per-sample multiplier.

    x_bytes = sum(int(xi.size) * xi.dtype.itemsize for xi in xs)
    use_pallas = (N % 128 == 0) and (N // 128 >= 8) and (x_bytes >= min_pallas_bytes)

    if not use_pallas:
        # Small / ragged problems: plain XLA fuses with neighbors and avoids
        # paying microseconds of pallas_call overhead for nanoseconds of work.
        x2 = jnp.stack([xi.astype(jnp.float32) for xi in xs], axis=1)   # (N, F)
        f = x2 @ lin_w_flat[:, None] + bias                             # (N, 1)
        if scalar_weight:
            return f * weight.reshape(()).astype(jnp.float32)
        return f * weight.reshape(N, 1).astype(jnp.float32)

    # ---- Pallas path -------------------------------------------------------
    R = N // 128                                   # sample rows of width 128
    xs2d = [xi.reshape(R, 128) for xi in xs]       # free row-major reshapes

    if scalar_weight:
        # Fold the scalar multiplier into the linear coefficients (drops one
        # HBM stream):  (x@W.T + b) * s  ==  x@(W*s).T + b*s
        s = weight.reshape(()).astype(jnp.float32)
        coef = jnp.concatenate([lin_w_flat * s, (bias * s)[None]])      # (F+1,)
        wt2d = None
    else:
        coef = jnp.concatenate([lin_w_flat, bias[None]])                # (F+1,)
        wt2d = weight.astype(jnp.float32).reshape(R, 128)

    # Sublane granularity: 8 rows for 32-bit inputs, 16 for 16-bit, ...
    gran = 8
    for xi in xs:
        gran = max(gran, 32 // max(int(xi.dtype.itemsize), 1))

    per_row_bytes = sum(int(xi.dtype.itemsize) for xi in xs) * 128      # x / row
    if block_rows is None:
        rb = max(gran, (target_block_bytes // per_row_bytes) // gran * gran)
        rb = min(rb, R)
        if rb >= R and R >= 2 * gran:
            # Split into >= 2 tiles so ("parallel",) can use both TCs on v7x.
            rb = -(-(R // 2) // gran) * gran
        rb = min(rb, R)
    else:
        rb = min(int(block_rows), R)
    if rb != R and rb % gran != 0:
        raise ValueError(f"block_rows must be a multiple of {gran} (or cover N/128)")

    grid_r = pl.cdiv(R, rb)

    # Double-buffered VMEM footprint + headroom (fits every generation's
    # scoped/physical VMEM budget at the default 4 MiB x-block target).
    wt_streams = 0 if wt2d is None else 1
    vmem_needed = 2 * rb * per_row_bytes + 2 * (1 + wt_streams) * rb * 128 * 4
    vmem_limit = int(min(48 << 20, max(vmem_needed + (8 << 20), 16 << 20)))

    kernel = _make_defuzz_kernel(F, wt2d is not None)

    in_specs = [pl.BlockSpec(memory_space=pltpu.MemorySpace.SMEM)]      # coef
    in_specs += [pl.BlockSpec((rb, 128), lambda i: (i, 0)) for _ in range(F)]
    args = [coef] + xs2d
    if wt2d is not None:
        in_specs.append(pl.BlockSpec((rb, 128), lambda i: (i, 0)))
        args.append(wt2d)

    bytes_accessed = x_bytes + N * 4 + (N * 4 if wt2d is not None else 0) + 4 * (F + 1)

    out_2d = pl.pallas_call(
        kernel,
        out_shape=jax.ShapeDtypeStruct((R, 128), jnp.float32),
        grid=(grid_r,),
        in_specs=in_specs,
        out_specs=pl.BlockSpec((rb, 128), lambda i: (i, 0)),
        compiler_params=pltpu.CompilerParams(
            dimension_semantics=("parallel",),
            vmem_limit_bytes=vmem_limit),
        cost_estimate=pl.CostEstimate(
            flops=2 * F * N, transcendentals=0, bytes_accessed=int(bytes_accessed)),
    )(*args)

    # (R, 128) row-major == sample order; reshape back to the module's (N, 1).
    return out_2d.reshape(N, 1)


if __name__ == "__main__":
    key = jax.random.PRNGKey(0)
    F = 32   # input_features

    k_x, k_w, k_b, k_wt, k_x2, k_x3 = jax.random.split(key, 6)

    # Linear(F, 1) parameters (deterministic synthetic init)
    bound = 1.0 / float(F) ** 0.5
    lin_w = jax.random.uniform(k_w, (1, F), minval=-bound, maxval=bound,
                               dtype=jnp.float32)
    lin_b = jax.random.uniform(k_b, (1,), minval=-bound, maxval=bound,
                               dtype=jnp.float32)

    def reference(x_fn, wt):
        f = x_fn.T.astype(jnp.float32) @ lin_w.reshape(F, 1) + lin_b.reshape(1, 1)
        return f * wt

    # 1) Per-sample weight, N multiple of 128 -> Pallas path with grid >= 2.
    N1 = 4096
    x1 = jax.random.normal(k_x, (F, N1), dtype=jnp.float32)
    w1 = jax.random.uniform(k_wt, (N1, 1), dtype=jnp.float32)
    out1 = defuzzification_forward([x1[i] for i in range(F)], w1, lin_w, lin_b)
    out1 = jax.block_until_ready(out1)
    assert out1.shape == (N1, 1)
    assert jnp.allclose(out1, reference(x1, w1), atol=1e-5, rtol=1e-5)

    # 2) Scalar weight (folded into the linear coefficients) with forced small
    #    blocks -> many pipelined grid steps.
    out2 = defuzzification_forward([x1[i] for i in range(F)], 0.5, lin_w, lin_b,
                                   block_rows=8)
    out2 = jax.block_until_ready(out2)
    assert jnp.allclose(out2, reference(x1, 0.5), atol=1e-5, rtol=1e-5)

    # 3) bf16 features kept narrow in HBM, upcast inside the kernel.
    x3 = jax.random.normal(k_x3, (F, N1), dtype=jnp.float32).astype(jnp.bfloat16)
    out3 = defuzzification_forward([x3[i] for i in range(F)], 2.0, lin_w, lin_b)
    out3 = jax.block_until_ready(out3)
    assert jnp.allclose(out3, reference(x3.astype(jnp.float32), 2.0),
                        atol=1e-5, rtol=1e-5)

    # 4) Small / ragged N -> plain-JAX fallback (pallas fixed cost not worth it).
    N4 = 1000
    x4 = jax.random.normal(k_x2, (F, N4), dtype=jnp.float32)
    w4 = jax.random.uniform(k_wt, (N4, 1), dtype=jnp.float32)
    out4 = jax.block_until_ready(
        defuzzification_forward([x4[i] for i in range(F)], w4, lin_w, lin_b))
    assert out4.shape == (N4, 1)
    assert jnp.allclose(out4, reference(x4, w4), atol=1e-5, rtol=1e-5)

    print("KERNEL_OK")
</pallas_src>

<mosaic_0001>
module attributes {stable_mosaic.version = 11 : i64} {
  func.func @kernel(%arg0: i32, %arg1: memref<33xf32, #tpu.memory_space<smem>>, %arg2: memref<16x128xf32, #tpu.memory_space<vmem>>, %arg3: memref<16x128xf32, #tpu.memory_space<vmem>>, %arg4: memref<16x128xf32, #tpu.memory_space<vmem>>, %arg5: memref<16x128xf32, #tpu.memory_space<vmem>>, %arg6: memref<16x128xf32, #tpu.memory_space<vmem>>, %arg7: memref<16x128xf32, #tpu.memory_space<vmem>>, %arg8: memref<16x128xf32, #tpu.memory_space<vmem>>, %arg9: memref<16x128xf32, #tpu.memory_space<vmem>>, %arg10: memref<16x128xf32, #tpu.memory_space<vmem>>, %arg11: memref<16x128xf32, #tpu.memory_space<vmem>>, %arg12: memref<16x128xf32, #tpu.memory_space<vmem>>, %arg13: memref<16x128xf32, #tpu.memory_space<vmem>>, %arg14: memref<16x128xf32, #tpu.memory_space<vmem>>, %arg15: memref<16x128xf32, #tpu.memory_space<vmem>>, %arg16: memref<16x128xf32, #tpu.memory_space<vmem>>, %arg17: memref<16x128xf32, #tpu.memory_space<vmem>>, %arg18: memref<16x128xf32, #tpu.memory_space<vmem>>, %arg19: memref<16x128xf32, #tpu.memory_space<vmem>>, %arg20: memref<16x128xf32, #tpu.memory_space<vmem>>, %arg21: memref<16x128xf32, #tpu.memory_space<vmem>>, %arg22: memref<16x128xf32, #tpu.memory_space<vmem>>, %arg23: memref<16x128xf32, #tpu.memory_space<vmem>>, %arg24: memref<16x128xf32, #tpu.memory_space<vmem>>, %arg25: memref<16x128xf32, #tpu.memory_space<vmem>>, %arg26: memref<16x128xf32, #tpu.memory_space<vmem>>, %arg27: memref<16x128xf32, #tpu.memory_space<vmem>>, %arg28: memref<16x128xf32, #tpu.memory_space<vmem>>, %arg29: memref<16x128xf32, #tpu.memory_space<vmem>>, %arg30: memref<16x128xf32, #tpu.memory_space<vmem>>, %arg31: memref<16x128xf32, #tpu.memory_space<vmem>>, %arg32: memref<16x128xf32, #tpu.memory_space<vmem>>, %arg33: memref<16x128xf32, #tpu.memory_space<vmem>>, %arg34: memref<16x128xf32, #tpu.memory_space<vmem>>, %arg35: memref<16x128xf32, #tpu.memory_space<vmem>>) attributes {dimension_semantics = [#tpu.dimension_semantics<parallel>], iteration_bounds = array<i64: 2>, scalar_prefetch = 0 : i64, scratch_operands = 0 : i64, tpu.core_type = #tpu.core_type<tc>, window_params = [{transform_indices = @transform_0, window_bounds = array<i64: 33>}, {transform_indices = @transform_1, window_bounds = array<i64: 16, 128>}, {transform_indices = @transform_2, window_bounds = array<i64: 16, 128>}, {transform_indices = @transform_3, window_bounds = array<i64: 16, 128>}, {transform_indices = @transform_4, window_bounds = array<i64: 16, 128>}, {transform_indices = @transform_5, window_bounds = array<i64: 16, 128>}, {transform_indices = @transform_6, window_bounds = array<i64: 16, 128>}, {transform_indices = @transform_7, window_bounds = array<i64: 16, 128>}, {transform_indices = @transform_8, window_bounds = array<i64: 16, 128>}, {transform_indices = @transform_9, window_bounds = array<i64: 16, 128>}, {transform_indices = @transform_10, window_bounds = array<i64: 16, 128>}, {transform_indices = @transform_11, window_bounds = array<i64: 16, 128>}, {transform_indices = @transform_12, window_bounds = array<i64: 16, 128>}, {transform_indices = @transform_13, window_bounds = array<i64: 16, 128>}, {transform_indices = @transform_14, window_bounds = array<i64: 16, 128>}, {transform_indices = @transform_15, window_bounds = array<i64: 16, 128>}, {transform_indices = @transform_16, window_bounds = array<i64: 16, 128>}, {transform_indices = @transform_17, window_bounds = array<i64: 16, 128>}, {transform_indices = @transform_18, window_bounds = array<i64: 16, 128>}, {transform_indices = @transform_19, window_bounds = array<i64: 16, 128>}, {transform_indices = @transform_20, window_bounds = array<i64: 16, 128>}, {transform_indices = @transform_21, window_bounds = array<i64: 16, 128>}, {transform_indices = @transform_22, window_bounds = array<i64: 16, 128>}, {transform_indices = @transform_23, window_bounds = array<i64: 16, 128>}, {transform_indices = @transform_24, window_bounds = array<i64: 16, 128>}, {transform_indices = @transform_25, window_bounds = array<i64: 16, 128>}, {transform_indices = @transform_26, window_bounds = array<i64: 16, 128>}, {transform_indices = @transform_27, window_bounds = array<i64: 16, 128>}, {transform_indices = @transform_28, window_bounds = array<i64: 16, 128>}, {transform_indices = @transform_29, window_bounds = array<i64: 16, 128>}, {transform_indices = @transform_30, window_bounds = array<i64: 16, 128>}, {transform_indices = @transform_31, window_bounds = array<i64: 16, 128>}, {transform_indices = @transform_32, window_bounds = array<i64: 16, 128>}, {transform_indices = @transform_33, window_bounds = array<i64: 16, 128>}, {transform_indices = @transform_34, window_bounds = array<i64: 16, 128>}]} {
    %c0 = arith.constant 0 : index
    %c0_0 = arith.constant 0 : index
    %0 = vector.load %arg2[%c0, %c0_0] : memref<16x128xf32, #tpu.memory_space<vmem>>, vector<16x128xf32>
    %c0_1 = arith.constant 0 : index
    %1 = memref.load %arg1[%c0_1] : memref<33xf32, #tpu.memory_space<smem>>
    %2 = vector.broadcast %1 : f32 to vector<16x128xf32>
    %3 = arith.mulf %0, %2 : vector<16x128xf32>
    %c0_2 = arith.constant 0 : index
    %c0_3 = arith.constant 0 : index
    %4 = vector.load %arg3[%c0_2, %c0_3] : memref<16x128xf32, #tpu.memory_space<vmem>>, vector<16x128xf32>
    %c1 = arith.constant 1 : index
    %5 = memref.load %arg1[%c1] : memref<33xf32, #tpu.memory_space<smem>>
    %6 = vector.broadcast %5 : f32 to vector<16x128xf32>
    %7 = arith.mulf %4, %6 : vector<16x128xf32>
    %8 = arith.addf %3, %7 : vector<16x128xf32>
    %c0_4 = arith.constant 0 : index
    %c0_5 = arith.constant 0 : index
    %9 = vector.load %arg4[%c0_4, %c0_5] : memref<16x128xf32, #tpu.memory_space<vmem>>, vector<16x128xf32>
    %c2 = arith.constant 2 : index
    %10 = memref.load %arg1[%c2] : memref<33xf32, #tpu.memory_space<smem>>
    %11 = vector.broadcast %10 : f32 to vector<16x128xf32>
    %12 = arith.mulf %9, %11 : vector<16x128xf32>
    %13 = arith.addf %8, %12 : vector<16x128xf32>
    %c0_6 = arith.constant 0 : index
    %c0_7 = arith.constant 0 : index
    %14 = vector.load %arg5[%c0_6, %c0_7] : memref<16x128xf32, #tpu.memory_space<vmem>>, vector<16x128xf32>
    %c3 = arith.constant 3 : index
    %15 = memref.load %arg1[%c3] : memref<33xf32, #tpu.memory_space<smem>>
    %16 = vector.broadcast %15 : f32 to vector<16x128xf32>
    %17 = arith.mulf %14, %16 : vector<16x128xf32>
    %18 = arith.addf %13, %17 : vector<16x128xf32>
    %c0_8 = arith.constant 0 : index
    %c0_9 = arith.constant 0 : index
    %19 = vector.load %arg6[%c0_8, %c0_9] : memref<16x128xf32, #tpu.memory_space<vmem>>, vector<16x128xf32>
    %c4 = arith.constant 4 : index
    %20 = memref.load %arg1[%c4] : memref<33xf32, #tpu.memory_space<smem>>
    %21 = vector.broadcast %20 : f32 to vector<16x128xf32>
    %22 = arith.mulf %19, %21 : vector<16x128xf32>
    %23 = arith.addf %18, %22 : vector<16x128xf32>
    %c0_10 = arith.constant 0 : index
    %c0_11 = arith.constant 0 : index
    %24 = vector.load %arg7[%c0_10, %c0_11] : memref<16x128xf32, #tpu.memory_space<vmem>>, vector<16x128xf32>
    %c5 = arith.constant 5 : index
    %25 = memref.load %arg1[%c5] : memref<33xf32, #tpu.memory_space<smem>>
    %26 = vector.broadcast %25 : f32 to vector<16x128xf32>
    %27 = arith.mulf %24, %26 : vector<16x128xf32>
    %28 = arith.addf %23, %27 : vector<16x128xf32>
    %c0_12 = arith.constant 0 : index
    %c0_13 = arith.constant 0 : index
    %29 = vector.load %arg8[%c0_12, %c0_13] : memref<16x128xf32, #tpu.memory_space<vmem>>, vector<16x128xf32>
    %c6 = arith.constant 6 : index
    %30 = memref.load %arg1[%c6] : memref<33xf32, #tpu.memory_space<smem>>
    %31 = vector.broadcast %30 : f32 to vector<16x128xf32>
    %32 = arith.mulf %29, %31 : vector<16x128xf32>
    %33 = arith.addf %28, %32 : vector<16x128xf32>
    %c0_14 = arith.constant 0 : index
    %c0_15 = arith.constant 0 : index
    %34 = vector.load %arg9[%c0_14, %c0_15] : memref<16x128xf32, #tpu.memory_space<vmem>>, vector<16x128xf32>
    %c7 = arith.constant 7 : index
    %35 = memref.load %arg1[%c7] : memref<33xf32, #tpu.memory_space<smem>>
    %36 = vector.broadcast %35 : f32 to vector<16x128xf32>
    %37 = arith.mulf %34, %36 : vector<16x128xf32>
    %38 = arith.addf %33, %37 : vector<16x128xf32>
    %c0_16 = arith.constant 0 : index
    %c0_17 = arith.constant 0 : index
    %39 = vector.load %arg10[%c0_16, %c0_17] : memref<16x128xf32, #tpu.memory_space<vmem>>, vector<16x128xf32>
    %c8 = arith.constant 8 : index
    %40 = memref.load %arg1[%c8] : memref<33xf32, #tpu.memory_space<smem>>
    %41 = vector.broadcast %40 : f32 to vector<16x128xf32>
    %42 = arith.mulf %39, %41 : vector<16x128xf32>
    %43 = arith.addf %38, %42 : vector<16x128xf32>
    %c0_18 = arith.constant 0 : index
    %c0_19 = arith.constant 0 : index
    %44 = vector.load %arg11[%c0_18, %c0_19] : memref<16x128xf32, #tpu.memory_space<vmem>>, vector<16x128xf32>
    %c9 = arith.constant 9 : index
    %45 = memref.load %arg1[%c9] : memref<33xf32, #tpu.memory_space<smem>>
    %46 = vector.broadcast %45 : f32 to vector<16x128xf32>
    %47 = arith.mulf %44, %46 : vector<16x128xf32>
    %48 = arith.addf %43, %47 : vector<16x128xf32>
    %c0_20 = arith.constant 0 : index
    %c0_21 = arith.constant 0 : index
    %49 = vector.load %arg12[%c0_20, %c0_21] : memref<16x128xf32, #tpu.memory_space<vmem>>, vector<16x128xf32>
    %c10 = arith.constant 10 : index
    %50 = memref.load %arg1[%c10] : memref<33xf32, #tpu.memory_space<smem>>
    %51 = vector.broadcast %50 : f32 to vector<16x128xf32>
    %52 = arith.mulf %49, %51 : vector<16x128xf32>
    %53 = arith.addf %48, %52 : vector<16x128xf32>
    %c0_22 = arith.constant 0 : index
    %c0_23 = arith.constant 0 : index
    %54 = vector.load %arg13[%c0_22, %c0_23] : memref<16x128xf32, #tpu.memory_space<vmem>>, vector<16x128xf32>
    %c11 = arith.constant 11 : index
    %55 = memref.load %arg1[%c11] : memref<33xf32, #tpu.memory_space<smem>>
    %56 = vector.broadcast %55 : f32 to vector<16x128xf32>
    %57 = arith.mulf %54, %56 : vector<16x128xf32>
    %58 = arith.addf %53, %57 : vector<16x128xf32>
    %c0_24 = arith.constant 0 : index
    %c0_25 = arith.constant 0 : index
    %59 = vector.load %arg14[%c0_24, %c0_25] : memref<16x128xf32, #tpu.memory_space<vmem>>, vector<16x128xf32>
    %c12 = arith.constant 12 : index
    %60 = memref.load %arg1[%c12] : memref<33xf32, #tpu.memory_space<smem>>
    %61 = vector.broadcast %60 : f32 to vector<16x128xf32>
    %62 = arith.mulf %59, %61 : vector<16x128xf32>
    %63 = arith.addf %58, %62 : vector<16x128xf32>
    %c0_26 = arith.constant 0 : index
    %c0_27 = arith.constant 0 : index
    %64 = vector.load %arg15[%c0_26, %c0_27] : memref<16x128xf32, #tpu.memory_space<vmem>>, vector<16x128xf32>
    %c13 = arith.constant 13 : index
    %65 = memref.load %arg1[%c13] : memref<33xf32, #tpu.memory_space<smem>>
    %66 = vector.broadcast %65 : f32 to vector<16x128xf32>
    %67 = arith.mulf %64, %66 : vector<16x128xf32>
    %68 = arith.addf %63, %67 : vector<16x128xf32>
    %c0_28 = arith.constant 0 : index
    %c0_29 = arith.constant 0 : index
    %69 = vector.load %arg16[%c0_28, %c0_29] : memref<16x128xf32, #tpu.memory_space<vmem>>, vector<16x128xf32>
    %c14 = arith.constant 14 : index
    %70 = memref.load %arg1[%c14] : memref<33xf32, #tpu.memory_space<smem>>
    %71 = vector.broadcast %70 : f32 to vector<16x128xf32>
    %72 = arith.mulf %69, %71 : vector<16x128xf32>
    %73 = arith.addf %68, %72 : vector<16x128xf32>
    %c0_30 = arith.constant 0 : index
    %c0_31 = arith.constant 0 : index
    %74 = vector.load %arg17[%c0_30, %c0_31] : memref<16x128xf32, #tpu.memory_space<vmem>>, vector<16x128xf32>
    %c15 = arith.constant 15 : index
    %75 = memref.load %arg1[%c15] : memref<33xf32, #tpu.memory_space<smem>>
    %76 = vector.broadcast %75 : f32 to vector<16x128xf32>
    %77 = arith.mulf %74, %76 : vector<16x128xf32>
    %78 = arith.addf %73, %77 : vector<16x128xf32>
    %c0_32 = arith.constant 0 : index
    %c0_33 = arith.constant 0 : index
    %79 = vector.load %arg18[%c0_32, %c0_33] : memref<16x128xf32, #tpu.memory_space<vmem>>, vector<16x128xf32>
    %c16 = arith.constant 16 : index
    %80 = memref.load %arg1[%c16] : memref<33xf32, #tpu.memory_space<smem>>
    %81 = vector.broadcast %80 : f32 to vector<16x128xf32>
    %82 = arith.mulf %79, %81 : vector<16x128xf32>
    %83 = arith.addf %78, %82 : vector<16x128xf32>
    %c0_34 = arith.constant 0 : index
    %c0_35 = arith.constant 0 : index
    %84 = vector.load %arg19[%c0_34, %c0_35] : memref<16x128xf32, #tpu.memory_space<vmem>>, vector<16x128xf32>
    %c17 = arith.constant 17 : index
    %85 = memref.load %arg1[%c17] : memref<33xf32, #tpu.memory_space<smem>>
    %86 = vector.broadcast %85 : f32 to vector<16x128xf32>
    %87 = arith.mulf %84, %86 : vector<16x128xf32>
    %88 = arith.addf %83, %87 : vector<16x128xf32>
    %c0_36 = arith.constant 0 : index
    %c0_37 = arith.constant 0 : index
    %89 = vector.load %arg20[%c0_36, %c0_37] : memref<16x128xf32, #tpu.memory_space<vmem>>, vector<16x128xf32>
    %c18 = arith.constant 18 : index
    %90 = memref.load %arg1[%c18] : memref<33xf32, #tpu.memory_space<smem>>
    %91 = vector.broadcast %90 : f32 to vector<16x128xf32>
    %92 = arith.mulf %89, %91 : vector<16x128xf32>
    %93 = arith.addf %88, %92 : vector<16x128xf32>
    %c0_38 = arith.constant 0 : index
    %c0_39 = arith.constant 0 : index
    %94 = vector.load %arg21[%c0_38, %c0_39] : memref<16x128xf32, #tpu.memory_space<vmem>>, vector<16x128xf32>
    %c19 = arith.constant 19 : index
    %95 = memref.load %arg1[%c19] : memref<33xf32, #tpu.memory_space<smem>>
    %96 = vector.broadcast %95 : f32 to vector<16x128xf32>
    %97 = arith.mulf %94, %96 : vector<16x128xf32>
    %98 = arith.addf %93, %97 : vector<16x128xf32>
    %c0_40 = arith.constant 0 : index
    %c0_41 = arith.constant 0 : index
    %99 = vector.load %arg22[%c0_40, %c0_41] : memref<16x128xf32, #tpu.memory_space<vmem>>, vector<16x128xf32>
    %c20 = arith.constant 20 : index
    %100 = memref.load %arg1[%c20] : memref<33xf32, #tpu.memory_space<smem>>
    %101 = vector.broadcast %100 : f32 to vector<16x128xf32>
    %102 = arith.mulf %99, %101 : vector<16x128xf32>
    %103 = arith.addf %98, %102 : vector<16x128xf32>
    %c0_42 = arith.constant 0 : index
    %c0_43 = arith.constant 0 : index
    %104 = vector.load %arg23[%c0_42, %c0_43] : memref<16x128xf32, #tpu.memory_space<vmem>>, vector<16x128xf32>
    %c21 = arith.constant 21 : index
    %105 = memref.load %arg1[%c21] : memref<33xf32, #tpu.memory_space<smem>>
    %106 = vector.broadcast %105 : f32 to vector<16x128xf32>
    %107 = arith.mulf %104, %106 : vector<16x128xf32>
    %108 = arith.addf %103, %107 : vector<16x128xf32>
    %c0_44 = arith.constant 0 : index
    %c0_45 = arith.constant 0 : index
    %109 = vector.load %arg24[%c0_44, %c0_45] : memref<16x128xf32, #tpu.memory_space<vmem>>, vector<16x128xf32>
    %c22 = arith.constant 22 : index
    %110 = memref.load %arg1[%c22] : memref<33xf32, #tpu.memory_space<smem>>
    %111 = vector.broadcast %110 : f32 to vector<16x128xf32>
    %112 = arith.mulf %109, %111 : vector<16x128xf32>
    %113 = arith.addf %108, %112 : vector<16x128xf32>
    %c0_46 = arith.constant 0 : index
    %c0_47 = arith.constant 0 : index
    %114 = vector.load %arg25[%c0_46, %c0_47] : memref<16x128xf32, #tpu.memory_space<vmem>>, vector<16x128xf32>
    %c23 = arith.constant 23 : index
    %115 = memref.load %arg1[%c23] : memref<33xf32, #tpu.memory_space<smem>>
    %116 = vector.broadcast %115 : f32 to vector<16x128xf32>
    %117 = arith.mulf %114, %116 : vector<16x128xf32>
    %118 = arith.addf %113, %117 : vector<16x128xf32>
    %c0_48 = arith.constant 0 : index
    %c0_49 = arith.constant 0 : index
    %119 = vector.load %arg26[%c0_48, %c0_49] : memref<16x128xf32, #tpu.memory_space<vmem>>, vector<16x128xf32>
    %c24 = arith.constant 24 : index
    %120 = memref.load %arg1[%c24] : memref<33xf32, #tpu.memory_space<smem>>
    %121 = vector.broadcast %120 : f32 to vector<16x128xf32>
    %122 = arith.mulf %119, %121 : vector<16x128xf32>
    %123 = arith.addf %118, %122 : vector<16x128xf32>
    %c0_50 = arith.constant 0 : index
    %c0_51 = arith.constant 0 : index
    %124 = vector.load %arg27[%c0_50, %c0_51] : memref<16x128xf32, #tpu.memory_space<vmem>>, vector<16x128xf32>
    %c25 = arith.constant 25 : index
    %125 = memref.load %arg1[%c25] : memref<33xf32, #tpu.memory_space<smem>>
    %126 = vector.broadcast %125 : f32 to vector<16x128xf32>
    %127 = arith.mulf %124, %126 : vector<16x128xf32>
    %128 = arith.addf %123, %127 : vector<16x128xf32>
    %c0_52 = arith.constant 0 : index
    %c0_53 = arith.constant 0 : index
    %129 = vector.load %arg28[%c0_52, %c0_53] : memref<16x128xf32, #tpu.memory_space<vmem>>, vector<16x128xf32>
    %c26 = arith.constant 26 : index
    %130 = memref.load %arg1[%c26] : memref<33xf32, #tpu.memory_space<smem>>
    %131 = vector.broadcast %130 : f32 to vector<16x128xf32>
    %132 = arith.mulf %129, %131 : vector<16x128xf32>
    %133 = arith.addf %128, %132 : vector<16x128xf32>
    %c0_54 = arith.constant 0 : index
    %c0_55 = arith.constant 0 : index
    %134 = vector.load %arg29[%c0_54, %c0_55] : memref<16x128xf32, #tpu.memory_space<vmem>>, vector<16x128xf32>
    %c27 = arith.constant 27 : index
    %135 = memref.load %arg1[%c27] : memref<33xf32, #tpu.memory_space<smem>>
    %136 = vector.broadcast %135 : f32 to vector<16x128xf32>
    %137 = arith.mulf %134, %136 : vector<16x128xf32>
    %138 = arith.addf %133, %137 : vector<16x128xf32>
    %c0_56 = arith.constant 0 : index
    %c0_57 = arith.constant 0 : index
    %139 = vector.load %arg30[%c0_56, %c0_57] : memref<16x128xf32, #tpu.memory_space<vmem>>, vector<16x128xf32>
    %c28 = arith.constant 28 : index
    %140 = memref.load %arg1[%c28] : memref<33xf32, #tpu.memory_space<smem>>
    %141 = vector.broadcast %140 : f32 to vector<16x128xf32>
    %142 = arith.mulf %139, %141 : vector<16x128xf32>
    %143 = arith.addf %138, %142 : vector<16x128xf32>
    %c0_58 = arith.constant 0 : index
    %c0_59 = arith.constant 0 : index
    %144 = vector.load %arg31[%c0_58, %c0_59] : memref<16x128xf32, #tpu.memory_space<vmem>>, vector<16x128xf32>
    %c29 = arith.constant 29 : index
    %145 = memref.load %arg1[%c29] : memref<33xf32, #tpu.memory_space<smem>>
    %146 = vector.broadcast %145 : f32 to vector<16x128xf32>
    %147 = arith.mulf %144, %146 : vector<16x128xf32>
    %148 = arith.addf %143, %147 : vector<16x128xf32>
    %c0_60 = arith.constant 0 : index
    %c0_61 = arith.constant 0 : index
    %149 = vector.load %arg32[%c0_60, %c0_61] : memref<16x128xf32, #tpu.memory_space<vmem>>, vector<16x128xf32>
    %c30 = arith.constant 30 : index
    %150 = memref.load %arg1[%c30] : memref<33xf32, #tpu.memory_space<smem>>
    %151 = vector.broadcast %150 : f32 to vector<16x128xf32>
    %152 = arith.mulf %149, %151 : vector<16x128xf32>
    %153 = arith.addf %148, %152 : vector<16x128xf32>
    %c0_62 = arith.constant 0 : index
    %c0_63 = arith.constant 0 : index
    %154 = vector.load %arg33[%c0_62, %c0_63] : memref<16x128xf32, #tpu.memory_space<vmem>>, vector<16x128xf32>
    %c31 = arith.constant 31 : index
    %155 = memref.load %arg1[%c31] : memref<33xf32, #tpu.memory_space<smem>>
    %156 = vector.broadcast %155 : f32 to vector<16x128xf32>
    %157 = arith.mulf %154, %156 : vector<16x128xf32>
    %158 = arith.addf %153, %157 : vector<16x128xf32>
    %c32 = arith.constant 32 : index
    %159 = memref.load %arg1[%c32] : memref<33xf32, #tpu.memory_space<smem>>
    %160 = vector.broadcast %159 : f32 to vector<16x128xf32>
    %161 = arith.addf %158, %160 : vector<16x128xf32>
    %c0_64 = arith.constant 0 : index
    %c0_65 = arith.constant 0 : index
    %162 = vector.load %arg34[%c0_64, %c0_65] : memref<16x128xf32, #tpu.memory_space<vmem>>, vector<16x128xf32>
    %163 = arith.mulf %161, %162 : vector<16x128xf32>
    %c0_66 = arith.constant 0 : index
    %c0_67 = arith.constant 0 : index
    %164 = vector.load %arg35[%c0_66, %c0_67] : memref<16x128xf32, #tpu.memory_space<vmem>>, vector<16x128xf32>
    tpu.vector_store %arg35[%c0_66, %c0_67], %163 {strides = array<i32>} : memref<16x128xf32, #tpu.memory_space<vmem>>, vector<16x128xf32>,
    return
  }
  func.func @transform_0(%arg0: i32) -> i32 {
    %c0_i32 = arith.constant 0 : i32
    %c0_i32_0 = arith.constant 0 : i32
    return %c0_i32 : i32
  }
  func.func @transform_1(%arg0: i32) -> (i32, i32) {
    %c0_i32 = arith.constant 0 : i32
    %c0_i32_0 = arith.constant 0 : i32
    return %arg0, %c0_i32 : i32, i32
  }
  func.func @transform_2(%arg0: i32) -> (i32, i32) {
    %c0_i32 = arith.constant 0 : i32
    %c0_i32_0 = arith.constant 0 : i32
    return %arg0, %c0_i32 : i32, i32
  }
  func.func @transform_3(%arg0: i32) -> (i32, i32) {
    %c0_i32 = arith.constant 0 : i32
    %c0_i32_0 = arith.constant 0 : i32
    return %arg0, %c0_i32 : i32, i32
  }
  func.func @transform_4(%arg0: i32) -> (i32, i32) {
    %c0_i32 = arith.constant 0 : i32
    %c0_i32_0 = arith.constant 0 : i32
    return %arg0, %c0_i32 : i32, i32
  }
  func.func @transform_5(%arg0: i32) -> (i32, i32) {
    %c0_i32 = arith.constant 0 : i32
    %c0_i32_0 = arith.constant 0 : i32
    return %arg0, %c0_i32 : i32, i32
  }
  func.func @transform_6(%arg0: i32) -> (i32, i32) {
    %c0_i32 = arith.constant 0 : i32
    %c0_i32_0 = arith.constant 0 : i32
    return %arg0, %c0_i32 : i32, i32
  }
  func.func @transform_7(%arg0: i32) -> (i32, i32) {
    %c0_i32 = arith.constant 0 : i32
    %c0_i32_0 = arith.constant 0 : i32
    return %arg0, %c0_i32 : i32, i32
  }
  func.func @transform_8(%arg0: i32) -> (i32, i32) {
    %c0_i32 = arith.constant 0 : i32
    %c0_i32_0 = arith.constant 0 : i32
    return %arg0, %c0_i32 : i32, i32
  }
  func.func @transform_9(%arg0: i32) -> (i32, i32) {
    %c0_i32 = arith.constant 0 : i32
    %c0_i32_0 = arith.constant 0 : i32
    return %arg0, %c0_i32 : i32, i32
  }
  func.func @transform_10(%arg0: i32) -> (i32, i32) {
    %c0_i32 = arith.constant 0 : i32
    %c0_i32_0 = arith.constant 0 : i32
    return %arg0, %c0_i32 : i32, i32
  }
  func.func @transform_11(%arg0: i32) -> (i32, i32) {
    %c0_i32 = arith.constant 0 : i32
    %c0_i32_0 = arith.constant 0 : i32
    return %arg0, %c0_i32 : i32, i32
  }
  func.func @transform_12(%arg0: i32) -> (i32, i32) {
    %c0_i32 = arith.constant 0 : i32
    %c0_i32_0 = arith.constant 0 : i32
    return %arg0, %c0_i32 : i32, i32
  }
  func.func @transform_13(%arg0: i32) -> (i32, i32) {
    %c0_i32 = arith.constant 0 : i32
    %c0_i32_0 = arith.constant 0 : i32
    return %arg0, %c0_i32 : i32, i32
  }
  func.func @transform_14(%arg0: i32) -> (i32, i32) {
    %c0_i32 = arith.constant 0 : i32
    %c0_i32_0 = arith.constant 0 : i32
    return %arg0, %c0_i32 : i32, i32
  }
  func.func @transform_15(%arg0: i32) -> (i32, i32) {
    %c0_i32 = arith.constant 0 : i32
    %c0_i32_0 = arith.constant 0 : i32
    return %arg0, %c0_i32 : i32, i32
  }
  func.func @transform_16(%arg0: i32) -> (i32, i32) {
    %c0_i32 = arith.constant 0 : i32
    %c0_i32_0 = arith.constant 0 : i32
    return %arg0, %c0_i32 : i32, i32
  }
  func.func @transform_17(%arg0: i32) -> (i32, i32) {
    %c0_i32 = arith.constant 0 : i32
    %c0_i32_0 = arith.constant 0 : i32
    return %arg0, %c0_i32 : i32, i32
  }
  func.func @transform_18(%arg0: i32) -> (i32, i32) {
    %c0_i32 = arith.constant 0 : i32
    %c0_i32_0 = arith.constant 0 : i32
    return %arg0, %c0_i32 : i32, i32
  }
  func.func @transform_19(%arg0: i32) -> (i32, i32) {
    %c0_i32 = arith.constant 0 : i32
    %c0_i32_0 = arith.constant 0 : i32
    return %arg0, %c0_i32 : i32, i32
  }
  func.func @transform_20(%arg0: i32) -> (i32, i32) {
    %c0_i32 = arith.constant 0 : i32
    %c0_i32_0 = arith.constant 0 : i32
    return %arg0, %c0_i32 : i32, i32
  }
  func.func @transform_21(%arg0: i32) -> (i32, i32) {
    %c0_i32 = arith.constant 0 : i32
    %c0_i32_0 = arith.constant 0 : i32
    return %arg0, %c0_i32 : i32, i32
  }
  func.func @transform_22(%arg0: i32) -> (i32, i32) {
    %c0_i32 = arith.constant 0 : i32
    %c0_i32_0 = arith.constant 0 : i32
    return %arg0, %c0_i32 : i32, i32
  }
  func.func @transform_23(%arg0: i32) -> (i32, i32) {
    %c0_i32 = arith.constant 0 : i32
    %c0_i32_0 = arith.constant 0 : i32
    return %arg0, %c0_i32 : i32, i32
  }
  func.func @transform_24(%arg0: i32) -> (i32, i32) {
    %c0_i32 = arith.constant 0 : i32
    %c0_i32_0 = arith.constant 0 : i32
    return %arg0, %c0_i32 : i32, i32
  }
  func.func @transform_25(%arg0: i32) -> (i32, i32) {
    %c0_i32 = arith.constant 0 : i32
    %c0_i32_0 = arith.constant 0 : i32
    return %arg0, %c0_i32 : i32, i32
  }
  func.func @transform_26(%arg0: i32) -> (i32, i32) {
    %c0_i32 = arith.constant 0 : i32
    %c0_i32_0 = arith.constant 0 : i32
    return %arg0, %c0_i32 : i32, i32
  }
  func.func @transform_27(%arg0: i32) -> (i32, i32) {
    %c0_i32 = arith.constant 0 : i32
    %c0_i32_0 = arith.constant 0 : i32
    return %arg0, %c0_i32 : i32, i32
  }
  func.func @transform_28(%arg0: i32) -> (i32, i32) {
    %c0_i32 = arith.constant 0 : i32
    %c0_i32_0 = arith.constant 0 : i32
    return %arg0, %c0_i32 : i32, i32
  }
  func.func @transform_29(%arg0: i32) -> (i32, i32) {
    %c0_i32 = arith.constant 0 : i32
    %c0_i32_0 = arith.constant 0 : i32
    return %arg0, %c0_i32 : i32, i32
  }
  func.func @transform_30(%arg0: i32) -> (i32, i32) {
    %c0_i32 = arith.constant 0 : i32
    %c0_i32_0 = arith.constant 0 : i32
    return %arg0, %c0_i32 : i32, i32
  }
  func.func @transform_31(%arg0: i32) -> (i32, i32) {
    %c0_i32 = arith.constant 0 : i32
    %c0_i32_0 = arith.constant 0 : i32
    return %arg0, %c0_i32 : i32, i32
  }
  func.func @transform_32(%arg0: i32) -> (i32, i32) {
    %c0_i32 = arith.constant 0 : i32
    %c0_i32_0 = arith.constant 0 : i32
    return %arg0, %c0_i32 : i32, i32
  }
  func.func @transform_33(%arg0: i32) -> (i32, i32) {
    %c0_i32 = arith.constant 0 : i32
    %c0_i32_0 = arith.constant 0 : i32
    return %arg0, %c0_i32 : i32, i32
  }
  func.func @transform_34(%arg0: i32) -> (i32, i32) {
    %c0_i32 = arith.constant 0 : i32
    %c0_i32_0 = arith.constant 0 : i32
    return %arg0, %c0_i32 : i32, i32
  }
}

</mosaic_0001>

<llo_original>
// kernel: tpu_custom_call.1
$region0: #{tpu_custom_call.1}
  #allocation0 [shape = 'u32[]', space=smem, size = 0x4, offset = 0x4, fixed_abs, tag = 'smem constant byte address 0x4 - core index']
  #allocation1 [shape = 'u32[144,128]{1,0:T(1,128)}', space=vmem, size = 0x12000, scoped, tag = 'internal scratch']
  %s0 = inlined_call_operand.smem [shape: u32[35], index: -1, kind: input, shape index: {}]
  %s1 = sld [smem:[%s0]]
  %s2 = scalar_lea.smem %s0, 1
  %s3 = sld [smem:[%s2]]
  %s4 = scalar_lea.smem %s0, 2
  %s5 = sld [smem:[%s4]]
  %s6 = scalar_lea.smem %s0, 3
  %s7 = sld [smem:[%s6]]
  %s8 = scalar_lea.smem %s0, 4
  %s9 = sld [smem:[%s8]]
  %s10 = scalar_lea.smem %s0, 5
  %s11 = sld [smem:[%s10]]
  %s12 = scalar_lea.smem %s0, 6
  %s13 = sld [smem:[%s12]]
  %s14 = scalar_lea.smem %s0, 7
  %s15 = sld [smem:[%s14]]
  %s16 = scalar_lea.smem %s0, 8
  %s17 = sld [smem:[%s16]]
  %s18 = scalar_lea.smem %s0, 9
  %s19 = sld [smem:[%s18]]
  %s20 = scalar_lea.smem %s0, 10
  %s21 = sld [smem:[%s20]]
  %s22 = scalar_lea.smem %s0, 11
  %s23 = sld [smem:[%s22]]
  %s24 = scalar_lea.smem %s0, 12
  %s25 = sld [smem:[%s24]]
  %s26 = scalar_lea.smem %s0, 13
  %s27 = sld [smem:[%s26]]
  %s28 = scalar_lea.smem %s0, 14
  %s29 = sld [smem:[%s28]]
  %s30 = scalar_lea.smem %s0, 15
  %s31 = sld [smem:[%s30]]
  %s32 = scalar_lea.smem %s0, 16
  %s33 = sld [smem:[%s32]]
  %s34 = scalar_lea.smem %s0, 17
  %s35 = sld [smem:[%s34]]
  %s36 = scalar_lea.smem %s0, 18
  %s37 = sld [smem:[%s36]]
  %s38 = scalar_lea.smem %s0, 19
  %s39 = sld [smem:[%s38]]
  %s40 = scalar_lea.smem %s0, 20
  %s41 = sld [smem:[%s40]]
  %s42 = scalar_lea.smem %s0, 21
  %s43 = sld [smem:[%s42]]
  %s44 = scalar_lea.smem %s0, 22
  %s45 = sld [smem:[%s44]]
  %s46 = scalar_lea.smem %s0, 23
  %s47 = sld [smem:[%s46]]
  %s48 = scalar_lea.smem %s0, 24
  %s49 = sld [smem:[%s48]]
  %s50 = scalar_lea.smem %s0, 25
  %s51 = sld [smem:[%s50]]
  %s52 = scalar_lea.smem %s0, 26
  %s53 = sld [smem:[%s52]]
  %s54 = scalar_lea.smem %s0, 27
  %s55 = sld [smem:[%s54]]
  %s56 = scalar_lea.smem %s0, 28
  %s57 = sld [smem:[%s56]]
  %s58 = scalar_lea.smem %s0, 29
  %s59 = sld [smem:[%s58]]
  %s60 = scalar_lea.smem %s0, 30
  %s61 = sld [smem:[%s60]]
  %s62 = scalar_lea.smem %s0, 31
  %s63 = sld [smem:[%s62]]
  %s64 = scalar_lea.smem %s0, 32
  %s65 = sld [smem:[%s64]]
  %s66 = scalar_lea.smem %s0, 33
  %s67 = sld [smem:[%s66]]
  %s68 = scalar_lea.smem %s0, 34
  %s69 = sld [smem:[%s68]]
  %s70 = sld [smem:[#allocation0]]
  $region293: #{tpu_custom_call.1} parent=0
    _
  %s72 = ssub.s32 1, %s70
  %s73 = scalar_select 0, %s72, %s70
  $region1: #{tpu_custom_call.1} parent=0
    #allocation2 [shape = 'u8[512]{0}', space=smem, size = 0x200, scoped, tag = 'input window, operand 0, single buffered']
    #allocation3 [shape = 's32[2]{0}', space=sflag, size = 0x8, scoped, tag = 'scoped memory for tpu_custom_call.1']
    #allocation4 [shape = 's32[2]{0}', space=sflag, size = 0x8, scoped, tag = 'scoped memory for tpu_custom_call.1']
    #allocation5 [shape = 's32[2]{0}', space=sflag, size = 0x8, scoped, tag = 'scoped memory for tpu_custom_call.1']
    #allocation6 [shape = 'u8[16384]{0}', space=vmem, size = 0x4000, scoped, tag = 'input window, operand 1']
    #allocation7 [shape = 'u8[16384]{0}', space=vmem, size = 0x4000, scoped, tag = 'input window, operand 2']
    #allocation8 [shape = 's32[2]{0}', space=sflag, size = 0x8, scoped, tag = 'scoped memory for tpu_custom_call.1']
    #allocation9 [shape = 'u8[16384]{0}', space=vmem, size = 0x4000, scoped, tag = 'input window, operand 3']
    #allocation10 [shape = 'u8[16384]{0}', space=vmem, size = 0x4000, scoped, tag = 'input window, operand 4']
    #allocation11 [shape = 's32[2]{0}', space=sflag, size = 0x8, scoped, tag = 'scoped memory for tpu_custom_call.1']
    #allocation12 [shape = 'u8[16384]{0}', space=vmem, size = 0x4000, scoped, tag = 'input window, operand 5']
    #allocation13 [shape = 'u8[16384]{0}', space=vmem, size = 0x4000, scoped, tag = 'input window, operand 6']
    #allocation14 [shape = 's32[2]{0}', space=sflag, size = 0x8, scoped, tag = 'scoped memory for tpu_custom_call.1']
    #allocation15 [shape = 'u8[16384]{0}', space=vmem, size = 0x4000, scoped, tag = 'input window, operand 7']
    #allocation16 [shape = 'u8[16384]{0}', space=vmem, size = 0x4000, scoped, tag = 'input window, operand 8']
    #allocation17 [shape = 's32[2]{0}', space=sflag, size = 0x8, scoped, tag = 'scoped memory for tpu_custom_call.1']
    #allocation18 [shape = 'u8[16384]{0}', space=vmem, size = 0x4000, scoped, tag = 'input window, operand 10']
    #allocation19 [shape = 'u8[16384]{0}', space=vmem, size = 0x4000, scoped, tag = 'input window, operand 11']
    #allocation20 [shape = 's32[2]{0}', space=sflag, size = 0x8, scoped, tag = 'scoped memory for tpu_custom_call.1']
    #allocation21 [shape = 'u8[16384]{0}', space=vmem, size = 0x4000, scoped, tag = 'input window, operand 12']
    #allocation22 [shape = 'u8[16384]{0}', space=vmem, size = 0x4000, scoped, tag = 'input window, operand 13']
    #allocation23 [shape = 's32[2]{0}', space=sflag, size = 0x8, scoped, tag = 'scoped memory for tpu_custom_call.1']
    #allocation24 [shape = 'u8[16384]{0}', space=vmem, size = 0x4000, scoped, tag = 'input window, operand 14']
    #allocation25 [shape = 'u8[16384]{0}', space=vmem, size = 0x4000, scoped, tag = 'input window, operand 15']
    #allocation26 [shape = 's32[2]{0}', space=sflag, size = 0x8, scoped, tag = 'scoped memory for tpu_custom_call.1']
    #allocation27 [shape = 'u8[16384]{0}', space=vmem, size = 0x4000, scoped, tag = 'input window, operand 16']
    #allocation28 [shape = 'u8[16384]{0}', space=vmem, size = 0x4000, scoped, tag = 'input window, operand 18']
    #allocation29 [shape = 's32[2]{0}', space=sflag, size = 0x8, scoped, tag = 'scoped memory for tpu_custom_call.1']
    #allocation30 [shape = 'u8[16384]{0}', space=vmem, size = 0x4000, scoped, tag = 'input window, operand 19']
    #allocation31 [shape = 'u8[16384]{0}', space=vmem, size = 0x4000, scoped, tag = 'input window, operand 20']
    #allocation32 [shape = 's32[2]{0}', space=sflag, size = 0x8, scoped, tag = 'scoped memory for tpu_custom_call.1']
    #allocation33 [shape = 'u8[16384]{0}', space=vmem, size = 0x4000, scoped, tag = 'input window, operand 21']
    #allocation34 [shape = 'u8[16384]{0}', space=vmem, size = 0x4000, scoped, tag = 'input window, operand 22']
    #allocation35 [shape = 's32[2]{0}', space=sflag, size = 0x8, scoped, tag = 'scoped memory for tpu_custom_call.1']
    #allocation36 [shape = 'u8[16384]{0}', space=vmem, size = 0x4000, scoped, tag = 'input window, operand 23']
    #allocation37 [shape = 'u8[16384]{0}', space=vmem, size = 0x4000, scoped, tag = 'input window, operand 24']
    #allocation38 [shape = 's32[2]{0}', space=sflag, size = 0x8, scoped, tag = 'scoped memory for tpu_custom_call.1']
    #allocation39 [shape = 'u8[16384]{0}', space=vmem, size = 0x4000, scoped, tag = 'input window, operand 25']
    #allocation40 [shape = 'u8[16384]{0}', space=vmem, size = 0x4000, scoped, tag = 'input window, operand 27']
    #allocation41 [shape = 's32[2]{0}', space=sflag, size = 0x8, scoped, tag = 'scoped memory for tpu_custom_call.1']
    #allocation42 [shape = 'u8[16384]{0}', space=vmem, size = 0x4000, scoped, tag = 'input window, operand 28']
    #allocation43 [shape = 'u8[16384]{0}', space=vmem, size = 0x4000, scoped, tag = 'input window, operand 29']
    #allocation44 [shape = 's32[2]{0}', space=sflag, size = 0x8, scoped, tag = 'scoped memory for tpu_custom_call.1']
    #allocation45 [shape = 'u8[16384]{0}', space=vmem, size = 0x4000, scoped, tag = 'input window, operand 30']
    #allocation46 [shape = 'u8[16384]{0}', space=vmem, size = 0x4000, scoped, tag = 'input window, operand 31']
    #allocation47 [shape = 's32[2]{0}', space=sflag, size = 0x8, scoped, tag = 'scoped memory for tpu_custom_call.1']
    #allocation48 [shape = 'u8[16384]{0}', space=vmem, size = 0x4000, scoped, tag = 'input window, operand 32']
    #allocation49 [shape = 'u8[16384]{0}', space=vmem, size = 0x4000, scoped, tag = 'input window, operand 33']
    #allocation50 [shape = 's32[2]{0}', space=sflag, size = 0x8, scoped, tag = 'scoped memory for tpu_custom_call.1']
    #allocation51 [shape = 'u8[16384]{0}', space=vmem, size = 0x4000, scoped, tag = 'output window, operand 0']
    %74 = vsyncpa [#allocation5], 0
    %75 = vsyncpa [#allocation3], 0
    %s76 = scalar_lea.sflag [#allocation3], 1
    %77 = vsyncpa %s76, 0
    %78 = vsyncpa [#allocation8], 0
    %s79 = scalar_lea.sflag [#allocation8], 1
    %80 = vsyncpa %s79, 0
    %81 = vsyncpa [#allocation11], 0
    %s82 = scalar_lea.sflag [#allocation11], 1
    %83 = vsyncpa %s82, 0
    %84 = vsyncpa [#allocation14], 0
    %s85 = scalar_lea.sflag [#allocation14], 1
    %86 = vsyncpa %s85, 0
    %87 = vsyncpa [#allocation17], 0
    %s88 = scalar_lea.sflag [#allocation17], 1
    %89 = vsyncpa %s88, 0
    %90 = vsyncpa [#allocation20], 0
    %s91 = scalar_lea.sflag [#allocation20], 1
    %92 = vsyncpa %s91, 0
    %93 = vsyncpa [#allocation23], 0
    %s94 = scalar_lea.sflag [#allocation23], 1
    %95 = vsyncpa %s94, 0
    %96 = vsyncpa [#allocation26], 0
    %s97 = scalar_lea.sflag [#allocation26], 1
    %98 = vsyncpa %s97, 0
    %99 = vsyncpa [#allocation29], 0
    %s100 = scalar_lea.sflag [#allocation29], 1
    %101 = vsyncpa %s100, 0
    %102 = vsyncpa [#allocation32], 0
    %s103 = scalar_lea.sflag [#allocation32], 1
    %104 = vsyncpa %s103, 0
    %105 = vsyncpa [#allocation35], 0
    %s106 = scalar_lea.sflag [#allocation35], 1
    %107 = vsyncpa %s106, 0
    %108 = vsyncpa [#allocation38], 0
    %s109 = scalar_lea.sflag [#allocation38], 1
    %110 = vsyncpa %s109, 0
    %111 = vsyncpa [#allocation41], 0
    %s112 = scalar_lea.sflag [#allocation41], 1
    %113 = vsyncpa %s112, 0
    %114 = vsyncpa [#allocation44], 0
    %s115 = scalar_lea.sflag [#allocation44], 1
    %116 = vsyncpa %s115, 0
    %117 = vsyncpa [#allocation47], 0
    %s118 = scalar_lea.sflag [#allocation47], 1
    %119 = vsyncpa %s118, 0
    %120 = vsyncpa [#allocation50], 0
    %s121 = scalar_lea.sflag [#allocation50], 1
    %122 = vsyncpa %s121, 0
    %123 = vsyncpa [#allocation4], 0
    %s124 = scalar_lea.sflag [#allocation4], 1
    %125 = vsyncpa %s124, 0
    loop: start=0, step=1, limit=4
    $region2: #{tpu_custom_call.1} parent=1 // loop_pre_header
      _
    $region3: #{tpu_custom_call.1} parent=1 // loop_header
      %s127 = sphi 0, %s131
      %p128 = scmp.ge.s32.totalorder %s127, 4
      %s135 = sphi 0, %s135
      %s137 = sphi 0, %s135
      %s138 = sphi 0, %s137
      %s152 = sphi 0, %s138
      %s158 = sphi 0, %s160
      %s161 = sphi 0, %s158
      %s162 = sphi 0, %s161
      %s178 = sphi 0, %s162
      %s184 = sphi 0, %s186
      %s187 = sphi 0, %s184
      %s188 = sphi 0, %s187
      %s204 = sphi 0, %s188
      %s210 = sphi 0, %s212
      %s213 = sphi 0, %s210
      %s214 = sphi 0, %s213
      %s230 = sphi 0, %s214
      %s236 = sphi 0, %s238
      %s239 = sphi 0, %s236
      %s240 = sphi 0, %s239
      %s256 = sphi 0, %s240
      %s262 = sphi 0, %s264
      %s265 = sphi 0, %s262
      %s266 = sphi 0, %s265
      %s282 = sphi 0, %s266
      %s288 = sphi 0, %s290
      %s291 = sphi 0, %s288
      %s292 = sphi 0, %s291
      %s308 = sphi 0, %s292
      %s314 = sphi 0, %s316
      %s317 = sphi 0, %s314
      %s318 = sphi 0, %s317
      %s334 = sphi 0, %s318
      %s340 = sphi 0, %s342
      %s343 = sphi 0, %s340
      %s344 = sphi 0, %s343
      %s360 = sphi 0, %s344
      %s366 = sphi 0, %s368
      %s369 = sphi 0, %s366
      %s370 = sphi 0, %s369
      %s386 = sphi 0, %s370
      %s392 = sphi 0, %s394
      %s395 = sphi 0, %s392
      %s396 = sphi 0, %s395
      %s412 = sphi 0, %s396
      %s418 = sphi 0, %s420
      %s421 = sphi 0, %s418
      %s422 = sphi 0, %s421
      %s438 = sphi 0, %s422
      %s444 = sphi 0, %s446
      %s447 = sphi 0, %s444
      %s448 = sphi 0, %s447
      %s464 = sphi 0, %s448
      %s470 = sphi 0, %s472
      %s473 = sphi 0, %s470
      %s474 = sphi 0, %s473
      %s490 = sphi 0, %s474
      %s496 = sphi 0, %s498
      %s499 = sphi 0, %s496
      %s500 = sphi 0, %s499
      %s516 = sphi 0, %s500
      %s522 = sphi 0, %s524
      %s525 = sphi 0, %s522
      %s526 = sphi 0, %s525
      %s542 = sphi 0, %s526
      %s548 = sphi 0, %s550
      %s551 = sphi 0, %s548
      %s552 = sphi 0, %s551
      %s568 = sphi 0, %s552
      %s574 = sphi 0, %s576
      %s577 = sphi 0, %s574
      %s578 = sphi 0, %s577
      %s594 = sphi 0, %s578
      %s600 = sphi 0, %s602
      %s603 = sphi 0, %s600
      %s604 = sphi 0, %s603
      %s620 = sphi 0, %s604
      %s626 = sphi 0, %s628
      %s629 = sphi 0, %s626
      %s630 = sphi 0, %s629
      %s646 = sphi 0, %s630
      %s652 = sphi 0, %s654
      %s655 = sphi 0, %s652
      %s656 = sphi 0, %s655
      %s672 = sphi 0, %s656
      %s678 = sphi 0, %s680
      %s681 = sphi 0, %s678
      %s682 = sphi 0, %s681
      %s698 = sphi 0, %s682
      %s704 = sphi 0, %s706
      %s707 = sphi 0, %s704
      %s708 = sphi 0, %s707
      %s724 = sphi 0, %s708
      %s730 = sphi 0, %s732
      %s733 = sphi 0, %s730
      %s734 = sphi 0, %s733
      %s750 = sphi 0, %s734
      %s756 = sphi 0, %s758
      %s759 = sphi 0, %s756
      %s760 = sphi 0, %s759
      %s776 = sphi 0, %s760
      %s782 = sphi 0, %s784
      %s785 = sphi 0, %s782
      %s786 = sphi 0, %s785
      %s802 = sphi 0, %s786
      %s808 = sphi 0, %s810
      %s811 = sphi 0, %s808
      %s812 = sphi 0, %s811
      %s828 = sphi 0, %s812
      %s834 = sphi 0, %s836
      %s837 = sphi 0, %s834
      %s838 = sphi 0, %s837
      %s854 = sphi 0, %s838
      %s860 = sphi 0, %s862
      %s863 = sphi 0, %s860
      %s864 = sphi 0, %s863
      %s880 = sphi 0, %s864
      %s886 = sphi 0, %s888
      %s889 = sphi 0, %s886
      %s890 = sphi 0, %s889
      %s906 = sphi 0, %s890
      %s912 = sphi 0, %s914
      %s915 = sphi 0, %s912
      %s916 = sphi 0, %s915
      %s932 = sphi 0, %s916
      %s938 = sphi 0, %s940
      %s941 = sphi 0, %s938
      %s942 = sphi 0, %s941
      %s958 = sphi 0, %s942
      %s964 = sphi 0, %s966
      %s967 = sphi 0, %s964
      %s968 = sphi 0, %s967
      %s984 = sphi 0, %s968
      %s990 = sphi 0, %s992
      %s993 = sphi 0, %s990
      %s994 = sphi 0, %s993
      %s1010 = sphi 0, %s994
      %s1016 = sphi 0, %s1018
      %s1019 = sphi 0, %s1016
      %s1020 = sphi 0, %s1019
      %s1036 = sphi 0, %s1020
    $region4: #{tpu_custom_call.1} parent=1 // loop_header_branch
      %130 = sbr.rel (%p128) target = $region8
    $region5: #{tpu_custom_call.1} parent=1 // loop_body
      %s132 = ssub.s32 %s127, 1
      %s133 = ssub.s32 %s127, 2
      %s134 = sadd.s32 %s127, 1
      %s136 = sadd.s32 %s135, 1
      %p139 = scmp.eq.s32.totalorder %s127, 1
      %p140 = scmp.ne.s32.totalorder %s135, %s137
      %p141 = scmp.eq.s32.totalorder %s127, 0
      %p142 = por %p140, %p141
      %p143 = scmp.ne.s32.totalorder %s135, %s137
      %p144 = scmp.eq.s32.totalorder %s132, 1
      %p145 = por %p143, %p144
      %p146 = scmp.ne.s32.totalorder %s137, %s138
      %p147 = scmp.eq.s32.totalorder %s132, 0
      %p148 = por %p146, %p147
      %p149 = scmp.ne.s32.totalorder %s137, %s138
      %p150 = scmp.eq.s32.totalorder %s133, 1
      %p151 = por %p149, %p150
      %p153 = scmp.ne.s32.totalorder %s138, %s152
      %p154 = scmp.eq.s32.totalorder %s133, 0
      %p155 = por %p153, %p154
      %s156 = ssub.s32 %s127, %s134
      %p157 = scmp.eq.s32.totalorder %s156, 0
      %s159 = sadd.s32 %s158, 1
      %s160 = scalar_select %p157, %s158, %s159
      %p163 = pneg %p157
      %p164 = scmp.eq.s32.totalorder %s127, 1
      %p165 = por %p163, %p164
      %p166 = scmp.ne.s32.totalorder %s158, %s161
      %p167 = scmp.eq.s32.totalorder %s127, 0
      %p168 = por %p166, %p167
      %p169 = scmp.ne.s32.totalorder %s158, %s161
      %p170 = scmp.eq.s32.totalorder %s132, 1
      %p171 = por %p169, %p170
      %p172 = scmp.ne.s32.totalorder %s161, %s162
      %p173 = scmp.eq.s32.totalorder %s132, 0
      %p174 = por %p172, %p173
      %p175 = scmp.ne.s32.totalorder %s161, %s162
      %p176 = scmp.eq.s32.totalorder %s133, 1
      %p177 = por %p175, %p176
      %p179 = scmp.ne.s32.totalorder %s162, %s178
      %p180 = scmp.eq.s32.totalorder %s133, 0
      %p181 = por %p179, %p180
      %s182 = ssub.s32 %s127, %s134
      %p183 = scmp.eq.s32.totalorder %s182, 0
      %s185 = sadd.s32 %s184, 1
      %s186 = scalar_select %p183, %s184, %s185
      %p189 = pneg %p183
      %p190 = scmp.eq.s32.totalorder %s127, 1
      %p191 = por %p189, %p190
      %p192 = scmp.ne.s32.totalorder %s184, %s187
      %p193 = scmp.eq.s32.totalorder %s127, 0
      %p194 = por %p192, %p193
      %p195 = scmp.ne.s32.totalorder %s184, %s187
      %p196 = scmp.eq.s32.totalorder %s132, 1
      %p197 = por %p195, %p196
      %p198 = scmp.ne.s32.totalorder %s187, %s188
      %p199 = scmp.eq.s32.totalorder %s132, 0
      %p200 = por %p198, %p199
      %p201 = scmp.ne.s32.totalorder %s187, %s188
      %p202 = scmp.eq.s32.totalorder %s133, 1
      %p203 = por %p201, %p202
      %p205 = scmp.ne.s32.totalorder %s188, %s204
      %p206 = scmp.eq.s32.totalorder %s133, 0
      %p207 = por %p205, %p206
      %s208 = ssub.s32 %s127, %s134
      %p209 = scmp.eq.s32.totalorder %s208, 0
      %s211 = sadd.s32 %s210, 1
      %s212 = scalar_select %p209, %s210, %s211
      %p215 = pneg %p209
      %p216 = scmp.eq.s32.totalorder %s127, 1
      %p217 = por %p215, %p216
      %p218 = scmp.ne.s32.totalorder %s210, %s213
      %p219 = scmp.eq.s32.totalorder %s127, 0
      %p220 = por %p218, %p219
      %p221 = scmp.ne.s32.totalorder %s210, %s213
      %p222 = scmp.eq.s32.totalorder %s132, 1
      %p223 = por %p221, %p222
      %p224 = scmp.ne.s32.totalorder %s213, %s214
      %p225 = scmp.eq.s32.totalorder %s132, 0
      %p226 = por %p224, %p225
      %p227 = scmp.ne.s32.totalorder %s213, %s214
      %p228 = scmp.eq.s32.totalorder %s133, 1
      %p229 = por %p227, %p228
      %p231 = scmp.ne.s32.totalorder %s214, %s230
      %p232 = scmp.eq.s32.totalorder %s133, 0
      %p233 = por %p231, %p232
      %s234 = ssub.s32 %s127, %s134
      %p235 = scmp.eq.s32.totalorder %s234, 0
      %s237 = sadd.s32 %s236, 1
      %s238 = scalar_select %p235, %s236, %s237
      %p241 = pneg %p235
      %p242 = scmp.eq.s32.totalorder %s127, 1
      %p243 = por %p241, %p242
      %p244 = scmp.ne.s32.totalorder %s236, %s239
      %p245 = scmp.eq.s32.totalorder %s127, 0
      %p246 = por %p244, %p245
      %p247 = scmp.ne.s32.totalorder %s236, %s239
      %p248 = scmp.eq.s32.totalorder %s132, 1
      %p249 = por %p247, %p248
      %p250 = scmp.ne.s32.totalorder %s239, %s240
      %p251 = scmp.eq.s32.totalorder %s132, 0
      %p252 = por %p250, %p251
      %p253 = scmp.ne.s32.totalorder %s239, %s240
      %p254 = scmp.eq.s32.totalorder %s133, 1
      %p255 = por %p253, %p254
      %p257 = scmp.ne.s32.totalorder %s240, %s256
      %p258 = scmp.eq.s32.totalorder %s133, 0
      %p259 = por %p257, %p258
      %s260 = ssub.s32 %s127, %s134
      %p261 = scmp.eq.s32.totalorder %s260, 0
      %s263 = sadd.s32 %s262, 1
      %s264 = scalar_select %p261, %s262, %s263
      %p267 = pneg %p261
      %p268 = scmp.eq.s32.totalorder %s127, 1
      %p269 = por %p267, %p268
      %p270 = scmp.ne.s32.totalorder %s262, %s265
      %p271 = scmp.eq.s32.totalorder %s127, 0
      %p272 = por %p270, %p271
      %p273 = scmp.ne.s32.totalorder %s262, %s265
      %p274 = scmp.eq.s32.totalorder %s132, 1
      %p275 = por %p273, %p274
      %p276 = scmp.ne.s32.totalorder %s265, %s266
      %p277 = scmp.eq.s32.totalorder %s132, 0
      %p278 = por %p276, %p277
      %p279 = scmp.ne.s32.totalorder %s265, %s266
      %p280 = scmp.eq.s32.totalorder %s133, 1
      %p281 = por %p279, %p280
      %p283 = scmp.ne.s32.totalorder %s266, %s282
      %p284 = scmp.eq.s32.totalorder %s133, 0
      %p285 = por %p283, %p284
      %s286 = ssub.s32 %s127, %s134
      %p287 = scmp.eq.s32.totalorder %s286, 0
      %s289 = sadd.s32 %s288, 1
      %s290 = scalar_select %p287, %s288, %s289
      %p293 = pneg %p287
      %p294 = scmp.eq.s32.totalorder %s127, 1
      %p295 = por %p293, %p294
      %p296 = scmp.ne.s32.totalorder %s288, %s291
      %p297 = scmp.eq.s32.totalorder %s127, 0
      %p298 = por %p296, %p297
      %p299 = scmp.ne.s32.totalorder %s288, %s291
      %p300 = scmp.eq.s32.totalorder %s132, 1
      %p301 = por %p299, %p300
      %p302 = scmp.ne.s32.totalorder %s291, %s292
      %p303 = scmp.eq.s32.totalorder %s132, 0
      %p304 = por %p302, %p303
      %p305 = scmp.ne.s32.totalorder %s291, %s292
      %p306 = scmp.eq.s32.totalorder %s133, 1
      %p307 = por %p305, %p306
      %p309 = scmp.ne.s32.totalorder %s292, %s308
      %p310 = scmp.eq.s32.totalorder %s133, 0
      %p311 = por %p309, %p310
      %s312 = ssub.s32 %s127, %s134
      %p313 = scmp.eq.s32.totalorder %s312, 0
      %s315 = sadd.s32 %s314, 1
      %s316 = scalar_select %p313, %s314, %s315
      %p319 = pneg %p313
      %p320 = scmp.eq.s32.totalorder %s127, 1
      %p321 = por %p319, %p320
      %p322 = scmp.ne.s32.totalorder %s314, %s317
      %p323 = scmp.eq.s32.totalorder %s127, 0
      %p324 = por %p322, %p323
      %p325 = scmp.ne.s32.totalorder %s314, %s317
      %p326 = scmp.eq.s32.totalorder %s132, 1
      %p327 = por %p325, %p326
      %p328 = scmp.ne.s32.totalorder %s317, %s318
      %p329 = scmp.eq.s32.totalorder %s132, 0
      %p330 = por %p328, %p329
      %p331 = scmp.ne.s32.totalorder %s317, %s318
      %p332 = scmp.eq.s32.totalorder %s133, 1
      %p333 = por %p331, %p332
      %p335 = scmp.ne.s32.totalorder %s318, %s334
      %p336 = scmp.eq.s32.totalorder %s133, 0
      %p337 = por %p335, %p336
      %s338 = ssub.s32 %s127, %s134
      %p339 = scmp.eq.s32.totalorder %s338, 0
      %s341 = sadd.s32 %s340, 1
      %s342 = scalar_select %p339, %s340, %s341
      %p345 = pneg %p339
      %p346 = scmp.eq.s32.totalorder %s127, 1
      %p347 = por %p345, %p346
      %p348 = scmp.ne.s32.totalorder %s340, %s343
      %p349 = scmp.eq.s32.totalorder %s127, 0
      %p350 = por %p348, %p349
      %p351 = scmp.ne.s32.totalorder %s340, %s343
      %p352 = scmp.eq.s32.totalorder %s132, 1
      %p353 = por %p351, %p352
      %p354 = scmp.ne.s32.totalorder %s343, %s344
      %p355 = scmp.eq.s32.totalorder %s132, 0
      %p356 = por %p354, %p355
      %p357 = scmp.ne.s32.totalorder %s343, %s344
      %p358 = scmp.eq.s32.totalorder %s133, 1
      %p359 = por %p357, %p358
      %p361 = scmp.ne.s32.totalorder %s344, %s360
      %p362 = scmp.eq.s32.totalorder %s133, 0
      %p363 = por %p361, %p362
      %s364 = ssub.s32 %s127, %s134
      %p365 = scmp.eq.s32.totalorder %s364, 0
      %s367 = sadd.s32 %s366, 1
      %s368 = scalar_select %p365, %s366, %s367
      %p371 = pneg %p365
      %p372 = scmp.eq.s32.totalorder %s127, 1
      %p373 = por %p371, %p372
      %p374 = scmp.ne.s32.totalorder %s366, %s369
      %p375 = scmp.eq.s32.totalorder %s127, 0
      %p376 = por %p374, %p375
      %p377 = scmp.ne.s32.totalorder %s366, %s369
      %p378 = scmp.eq.s32.totalorder %s132, 1
      %p379 = por %p377, %p378
      %p380 = scmp.ne.s32.totalorder %s369, %s370
      %p381 = scmp.eq.s32.totalorder %s132, 0
      %p382 = por %p380, %p381
      %p383 = scmp.ne.s32.totalorder %s369, %s370
      %p384 = scmp.eq.s32.totalorder %s133, 1
      %p385 = por %p383, %p384
      %p387 = scmp.ne.s32.totalorder %s370, %s386
      %p388 = scmp.eq.s32.totalorder %s133, 0
      %p389 = por %p387, %p388
      %s390 = ssub.s32 %s127, %s134
      %p391 = scmp.eq.s32.totalorder %s390, 0
      %s393 = sadd.s32 %s392, 1
      %s394 = scalar_select %p391, %s392, %s393
      %p397 = pneg %p391
      %p398 = scmp.eq.s32.totalorder %s127, 1
      %p399 = por %p397, %p398
      %p400 = scmp.ne.s32.totalorder %s392, %s395
      %p401 = scmp.eq.s32.totalorder %s127, 0
      %p402 = por %p400, %p401
      %p403 = scmp.ne.s32.totalorder %s392, %s395
      %p404 = scmp.eq.s32.totalorder %s132, 1
      %p405 = por %p403, %p404
      %p406 = scmp.ne.s32.totalorder %s395, %s396
      %p407 = scmp.eq.s32.totalorder %s132, 0
      %p408 = por %p406, %p407
      %p409 = scmp.ne.s32.totalorder %s395, %s396
      %p410 = scmp.eq.s32.totalorder %s133, 1
      %p411 = por %p409, %p410
      %p413 = scmp.ne.s32.totalorder %s396, %s412
      %p414 = scmp.eq.s32.totalorder %s133, 0
      %p415 = por %p413, %p414
      %s416 = ssub.s32 %s127, %s134
      %p417 = scmp.eq.s32.totalorder %s416, 0
      %s419 = sadd.s32 %s418, 1
      %s420 = scalar_select %p417, %s418, %s419
      %p423 = pneg %p417
      %p424 = scmp.eq.s32.totalorder %s127, 1
      %p425 = por %p423, %p424
      %p426 = scmp.ne.s32.totalorder %s418, %s421
      %p427 = scmp.eq.s32.totalorder %s127, 0
      %p428 = por %p426, %p427
      %p429 = scmp.ne.s32.totalorder %s418, %s421
      %p430 = scmp.eq.s32.totalorder %s132, 1
      %p431 = por %p429, %p430
      %p432 = scmp.ne.s32.totalorder %s421, %s422
      %p433 = scmp.eq.s32.totalorder %s132, 0
      %p434 = por %p432, %p433
      %p435 = scmp.ne.s32.totalorder %s421, %s422
      %p436 = scmp.eq.s32.totalorder %s133, 1
      %p437 = por %p435, %p436
      %p439 = scmp.ne.s32.totalorder %s422, %s438
      %p440 = scmp.eq.s32.totalorder %s133, 0
      %p441 = por %p439, %p440
      %s442 = ssub.s32 %s127, %s134
      %p443 = scmp.eq.s32.totalorder %s442, 0
      %s445 = sadd.s32 %s444, 1
      %s446 = scalar_select %p443, %s444, %s445
      %p449 = pneg %p443
      %p450 = scmp.eq.s32.totalorder %s127, 1
      %p451 = por %p449, %p450
      %p452 = scmp.ne.s32.totalorder %s444, %s447
      %p453 = scmp.eq.s32.totalorder %s127, 0
      %p454 = por %p452, %p453
      %p455 = scmp.ne.s32.totalorder %s444, %s447
      %p456 = scmp.eq.s32.totalorder %s132, 1
      %p457 = por %p455, %p456
      %p458 = scmp.ne.s32.totalorder %s447, %s448
      %p459 = scmp.eq.s32.totalorder %s132, 0
      %p460 = por %p458, %p459
      %p461 = scmp.ne.s32.totalorder %s447, %s448
      %p462 = scmp.eq.s32.totalorder %s133, 1
      %p463 = por %p461, %p462
      %p465 = scmp.ne.s32.totalorder %s448, %s464
      %p466 = scmp.eq.s32.totalorder %s133, 0
      %p467 = por %p465, %p466
      %s468 = ssub.s32 %s127, %s134
      %p469 = scmp.eq.s32.totalorder %s468, 0
      %s471 = sadd.s32 %s470, 1
      %s472 = scalar_select %p469, %s470, %s471
      %p475 = pneg %p469
      %p476 = scmp.eq.s32.totalorder %s127, 1
      %p477 = por %p475, %p476
      %p478 = scmp.ne.s32.totalorder %s470, %s473
      %p479 = scmp.eq.s32.totalorder %s127, 0
      %p480 = por %p478, %p479
      %p481 = scmp.ne.s32.totalorder %s470, %s473
      %p482 = scmp.eq.s32.totalorder %s132, 1
      %p483 = por %p481, %p482
      %p484 = scmp.ne.s32.totalorder %s473, %s474
      %p485 = scmp.eq.s32.totalorder %s132, 0
      %p486 = por %p484, %p485
      %p487 = scmp.ne.s32.totalorder %s473, %s474
      %p488 = scmp.eq.s32.totalorder %s133, 1
      %p489 = por %p487, %p488
      %p491 = scmp.ne.s32.totalorder %s474, %s490
      %p492 = scmp.eq.s32.totalorder %s133, 0
      %p493 = por %p491, %p492
      %s494 = ssub.s32 %s127, %s134
      %p495 = scmp.eq.s32.totalorder %s494, 0
      %s497 = sadd.s32 %s496, 1
      %s498 = scalar_select %p495, %s496, %s497
      %p501 = pneg %p495
      %p502 = scmp.eq.s32.totalorder %s127, 1
      %p503 = por %p501, %p502
      %p504 = scmp.ne.s32.totalorder %s496, %s499
      %p505 = scmp.eq.s32.totalorder %s127, 0
      %p506 = por %p504, %p505
      %p507 = scmp.ne.s32.totalorder %s496, %s499
      %p508 = scmp.eq.s32.totalorder %s132, 1
      %p509 = por %p507, %p508
      %p510 = scmp.ne.s32.totalorder %s499, %s500
      %p511 = scmp.eq.s32.totalorder %s132, 0
      %p512 = por %p510, %p511
      %p513 = scmp.ne.s32.totalorder %s499, %s500
      %p514 = scmp.eq.s32.totalorder %s133, 1
      %p515 = por %p513, %p514
      %p517 = scmp.ne.s32.totalorder %s500, %s516
      %p518 = scmp.eq.s32.totalorder %s133, 0
      %p519 = por %p517, %p518
      %s520 = ssub.s32 %s127, %s134
      %p521 = scmp.eq.s32.totalorder %s520, 0
      %s523 = sadd.s32 %s522, 1
      %s524 = scalar_select %p521, %s522, %s523
      %p527 = pneg %p521
      %p528 = scmp.eq.s32.totalorder %s127, 1
      %p529 = por %p527, %p528
      %p530 = scmp.ne.s32.totalorder %s522, %s525
      %p531 = scmp.eq.s32.totalorder %s127, 0
      %p532 = por %p530, %p531
      %p533 = scmp.ne.s32.totalorder %s522, %s525
      %p534 = scmp.eq.s32.totalorder %s132, 1
      %p535 = por %p533, %p534
      %p536 = scmp.ne.s32.totalorder %s525, %s526
      %p537 = scmp.eq.s32.totalorder %s132, 0
      %p538 = por %p536, %p537
      %p539 = scmp.ne.s32.totalorder %s525, %s526
      %p540 = scmp.eq.s32.totalorder %s133, 1
      %p541 = por %p539, %p540
      %p543 = scmp.ne.s32.totalorder %s526, %s542
      %p544 = scmp.eq.s32.totalorder %s133, 0
      %p545 = por %p543, %p544
      %s546 = ssub.s32 %s127, %s134
      %p547 = scmp.eq.s32.totalorder %s546, 0
      %s549 = sadd.s32 %s548, 1
      %s550 = scalar_select %p547, %s548, %s549
      %p553 = pneg %p547
      %p554 = scmp.eq.s32.totalorder %s127, 1
      %p555 = por %p553, %p554
      %p556 = scmp.ne.s32.totalorder %s548, %s551
      %p557 = scmp.eq.s32.totalorder %s127, 0
      %p558 = por %p556, %p557
      %p559 = scmp.ne.s32.totalorder %s548, %s551
      %p560 = scmp.eq.s32.totalorder %s132, 1
      %p561 = por %p559, %p560
      %p562 = scmp.ne.s32.totalorder %s551, %s552
      %p563 = scmp.eq.s32.totalorder %s132, 0
      %p564 = por %p562, %p563
      %p565 = scmp.ne.s32.totalorder %s551, %s552
      %p566 = scmp.eq.s32.totalorder %s133, 1
      %p567 = por %p565, %p566
      %p569 = scmp.ne.s32.totalorder %s552, %s568
      %p570 = scmp.eq.s32.totalorder %s133, 0
      %p571 = por %p569, %p570
      %s572 = ssub.s32 %s127, %s134
      %p573 = scmp.eq.s32.totalorder %s572, 0
      %s575 = sadd.s32 %s574, 1
      %s576 = scalar_select %p573, %s574, %s575
      %p579 = pneg %p573
      %p580 = scmp.eq.s32.totalorder %s127, 1
      %p581 = por %p579, %p580
      %p582 = scmp.ne.s32.totalorder %s574, %s577
      %p583 = scmp.eq.s32.totalorder %s127, 0
      %p584 = por %p582, %p583
      %p585 = scmp.ne.s32.totalorder %s574, %s577
      %p586 = scmp.eq.s32.totalorder %s132, 1
      %p587 = por %p585, %p586
      %p588 = scmp.ne.s32.totalorder %s577, %s578
      %p589 = scmp.eq.s32.totalorder %s132, 0
      %p590 = por %p588, %p589
      %p591 = scmp.ne.s32.totalorder %s577, %s578
      %p592 = scmp.eq.s32.totalorder %s133, 1
      %p593 = por %p591, %p592
      %p595 = scmp.ne.s32.totalorder %s578, %s594
      %p596 = scmp.eq.s32.totalorder %s133, 0
      %p597 = por %p595, %p596
      %s598 = ssub.s32 %s127, %s134
      %p599 = scmp.eq.s32.totalorder %s598, 0
      %s601 = sadd.s32 %s600, 1
      %s602 = scalar_select %p599, %s600, %s601
      %p605 = pneg %p599
      %p606 = scmp.eq.s32.totalorder %s127, 1
      %p607 = por %p605, %p606
      %p608 = scmp.ne.s32.totalorder %s600, %s603
      %p609 = scmp.eq.s32.totalorder %s127, 0
      %p610 = por %p608, %p609
      %p611 = scmp.ne.s32.totalorder %s600, %s603
      %p612 = scmp.eq.s32.totalorder %s132, 1
      %p613 = por %p611, %p612
      %p614 = scmp.ne.s32.totalorder %s603, %s604
      %p615 = scmp.eq.s32.totalorder %s132, 0
      %p616 = por %p614, %p615
      %p617 = scmp.ne.s32.totalorder %s603, %s604
      %p618 = scmp.eq.s32.totalorder %s133, 1
      %p619 = por %p617, %p618
      %p621 = scmp.ne.s32.totalorder %s604, %s620
      %p622 = scmp.eq.s32.totalorder %s133, 0
      %p623 = por %p621, %p622
      %s624 = ssub.s32 %s127, %s134
      %p625 = scmp.eq.s32.totalorder %s624, 0
      %s627 = sadd.s32 %s626, 1
      %s628 = scalar_select %p625, %s626, %s627
      %p631 = pneg %p625
      %p632 = scmp.eq.s32.totalorder %s127, 1
      %p633 = por %p631, %p632
      %p634 = scmp.ne.s32.totalorder %s626, %s629
      %p635 = scmp.eq.s32.totalorder %s127, 0
      %p636 = por %p634, %p635
      %p637 = scmp.ne.s32.totalorder %s626, %s629
      %p638 = scmp.eq.s32.totalorder %s132, 1
      %p639 = por %p637, %p638
      %p640 = scmp.ne.s32.totalorder %s629, %s630
      %p641 = scmp.eq.s32.totalorder %s132, 0
      %p642 = por %p640, %p641
      %p643 = scmp.ne.s32.totalorder %s629, %s630
      %p644 = scmp.eq.s32.totalorder %s133, 1
      %p645 = por %p643, %p644
      %p647 = scmp.ne.s32.totalorder %s630, %s646
      %p648 = scmp.eq.s32.totalorder %s133, 0
      %p649 = por %p647, %p648
      %s650 = ssub.s32 %s127, %s134
      %p651 = scmp.eq.s32.totalorder %s650, 0
      %s653 = sadd.s32 %s652, 1
      %s654 = scalar_select %p651, %s652, %s653
      %p657 = pneg %p651
      %p658 = scmp.eq.s32.totalorder %s127, 1
      %p659 = por %p657, %p658
      %p660 = scmp.ne.s32.totalorder %s652, %s655
      %p661 = scmp.eq.s32.totalorder %s127, 0
      %p662 = por %p660, %p661
      %p663 = scmp.ne.s32.totalorder %s652, %s655
      %p664 = scmp.eq.s32.totalorder %s132, 1
      %p665 = por %p663, %p664
      %p666 = scmp.ne.s32.totalorder %s655, %s656
      %p667 = scmp.eq.s32.totalorder %s132, 0
      %p668 = por %p666, %p667
      %p669 = scmp.ne.s32.totalorder %s655, %s656
      %p670 = scmp.eq.s32.totalorder %s133, 1
      %p671 = por %p669, %p670
      %p673 = scmp.ne.s32.totalorder %s656, %s672
      %p674 = scmp.eq.s32.totalorder %s133, 0
      %p675 = por %p673, %p674
      %s676 = ssub.s32 %s127, %s134
      %p677 = scmp.eq.s32.totalorder %s676, 0
      %s679 = sadd.s32 %s678, 1
      %s680 = scalar_select %p677, %s678, %s679
      %p683 = pneg %p677
      %p684 = scmp.eq.s32.totalorder %s127, 1
      %p685 = por %p683, %p684
      %p686 = scmp.ne.s32.totalorder %s678, %s681
      %p687 = scmp.eq.s32.totalorder %s127, 0
      %p688 = por %p686, %p687
      %p689 = scmp.ne.s32.totalorder %s678, %s681
      %p690 = scmp.eq.s32.totalorder %s132, 1
      %p691 = por %p689, %p690
      %p692 = scmp.ne.s32.totalorder %s681, %s682
      %p693 = scmp.eq.s32.totalorder %s132, 0
      %p694 = por %p692, %p693
      %p695 = scmp.ne.s32.totalorder %s681, %s682
      %p696 = scmp.eq.s32.totalorder %s133, 1
      %p697 = por %p695, %p696
      %p699 = scmp.ne.s32.totalorder %s682, %s698
      %p700 = scmp.eq.s32.totalorder %s133, 0
      %p701 = por %p699, %p700
      %s702 = ssub.s32 %s127, %s134
      %p703 = scmp.eq.s32.totalorder %s702, 0
      %s705 = sadd.s32 %s704, 1
      %s706 = scalar_select %p703, %s704, %s705
      %p709 = pneg %p703
      %p710 = scmp.eq.s32.totalorder %s127, 1
      %p711 = por %p709, %p710
      %p712 = scmp.ne.s32.totalorder %s704, %s707
      %p713 = scmp.eq.s32.totalorder %s127, 0
      %p714 = por %p712, %p713
      %p715 = scmp.ne.s32.totalorder %s704, %s707
      %p716 = scmp.eq.s32.totalorder %s132, 1
      %p717 = por %p715, %p716
      %p718 = scmp.ne.s32.totalorder %s707, %s708
      %p719 = scmp.eq.s32.totalorder %s132, 0
      %p720 = por %p718, %p719
      %p721 = scmp.ne.s32.totalorder %s707, %s708
      %p722 = scmp.eq.s32.totalorder %s133, 1
      %p723 = por %p721, %p722
      %p725 = scmp.ne.s32.totalorder %s708, %s724
      %p726 = scmp.eq.s32.totalorder %s133, 0
      %p727 = por %p725, %p726
      %s728 = ssub.s32 %s127, %s134
      %p729 = scmp.eq.s32.totalorder %s728, 0
      %s731 = sadd.s32 %s730, 1
      %s732 = scalar_select %p729, %s730, %s731
      %p735 = pneg %p729
      %p736 = scmp.eq.s32.totalorder %s127, 1
      %p737 = por %p735, %p736
      %p738 = scmp.ne.s32.totalorder %s730, %s733
      %p739 = scmp.eq.s32.totalorder %s127, 0
      %p740 = por %p738, %p739
      %p741 = scmp.ne.s32.totalorder %s730, %s733
      %p742 = scmp.eq.s32.totalorder %s132, 1
      %p743 = por %p741, %p742
      %p744 = scmp.ne.s32.totalorder %s733, %s734
      %p745 = scmp.eq.s32.totalorder %s132, 0
      %p746 = por %p744, %p745
      %p747 = scmp.ne.s32.totalorder %s733, %s734
      %p748 = scmp.eq.s32.totalorder %s133, 1
      %p749 = por %p747, %p748
      %p751 = scmp.ne.s32.totalorder %s734, %s750
      %p752 = scmp.eq.s32.totalorder %s133, 0
      %p753 = por %p751, %p752
      %s754 = ssub.s32 %s127, %s134
      %p755 = scmp.eq.s32.totalorder %s754, 0
      %s757 = sadd.s32 %s756, 1
      %s758 = scalar_select %p755, %s756, %s757
      %p761 = pneg %p755
      %p762 = scmp.eq.s32.totalorder %s127, 1
      %p763 = por %p761, %p762
      %p764 = scmp.ne.s32.totalorder %s756, %s759
      %p765 = scmp.eq.s32.totalorder %s127, 0
      %p766 = por %p764, %p765
      %p767 = scmp.ne.s32.totalorder %s756, %s759
      %p768 = scmp.eq.s32.totalorder %s132, 1
      %p769 = por %p767, %p768
      %p770 = scmp.ne.s32.totalorder %s759, %s760
      %p771 = scmp.eq.s32.totalorder %s132, 0
      %p772 = por %p770, %p771
      %p773 = scmp.ne.s32.totalorder %s759, %s760
      %p774 = scmp.eq.s32.totalorder %s133, 1
      %p775 = por %p773, %p774
      %p777 = scmp.ne.s32.totalorder %s760, %s776
      %p778 = scmp.eq.s32.totalorder %s133, 0
      %p779 = por %p777, %p778
      %s780 = ssub.s32 %s127, %s134
      %p781 = scmp.eq.s32.totalorder %s780, 0
      %s783 = sadd.s32 %s782, 1
      %s784 = scalar_select %p781, %s782, %s783
      %p787 = pneg %p781
      %p788 = scmp.eq.s32.totalorder %s127, 1
      %p789 = por %p787, %p788
      %p790 = scmp.ne.s32.totalorder %s782, %s785
      %p791 = scmp.eq.s32.totalorder %s127, 0
      %p792 = por %p790, %p791
      %p793 = scmp.ne.s32.totalorder %s782, %s785
      %p794 = scmp.eq.s32.totalorder %s132, 1
      %p795 = por %p793, %p794
      %p796 = scmp.ne.s32.totalorder %s785, %s786
      %p797 = scmp.eq.s32.totalorder %s132, 0
      %p798 = por %p796, %p797
      %p799 = scmp.ne.s32.totalorder %s785, %s786
      %p800 = scmp.eq.s32.totalorder %s133, 1
      %p801 = por %p799, %p800
      %p803 = scmp.ne.s32.totalorder %s786, %s802
      %p804 = scmp.eq.s32.totalorder %s133, 0
      %p805 = por %p803, %p804
      %s806 = ssub.s32 %s127, %s134
      %p807 = scmp.eq.s32.totalorder %s806, 0
      %s809 = sadd.s32 %s808, 1
      %s810 = scalar_select %p807, %s808, %s809
      %p813 = pneg %p807
      %p814 = scmp.eq.s32.totalorder %s127, 1
      %p815 = por %p813, %p814
      %p816 = scmp.ne.s32.totalorder %s808, %s811
      %p817 = scmp.eq.s32.totalorder %s127, 0
      %p818 = por %p816, %p817
      %p819 = scmp.ne.s32.totalorder %s808, %s811
      %p820 = scmp.eq.s32.totalorder %s132, 1
      %p821 = por %p819, %p820
      %p822 = scmp.ne.s32.totalorder %s811, %s812
      %p823 = scmp.eq.s32.totalorder %s132, 0
      %p824 = por %p822, %p823
      %p825 = scmp.ne.s32.totalorder %s811, %s812
      %p826 = scmp.eq.s32.totalorder %s133, 1
      %p827 = por %p825, %p826
      %p829 = scmp.ne.s32.totalorder %s812, %s828
      %p830 = scmp.eq.s32.totalorder %s133, 0
      %p831 = por %p829, %p830
      %s832 = ssub.s32 %s127, %s134
      %p833 = scmp.eq.s32.totalorder %s832, 0
      %s835 = sadd.s32 %s834, 1
      %s836 = scalar_select %p833, %s834, %s835
      %p839 = pneg %p833
      %p840 = scmp.eq.s32.totalorder %s127, 1
      %p841 = por %p839, %p840
      %p842 = scmp.ne.s32.totalorder %s834, %s837
      %p843 = scmp.eq.s32.totalorder %s127, 0
      %p844 = por %p842, %p843
      %p845 = scmp.ne.s32.totalorder %s834, %s837
      %p846 = scmp.eq.s32.totalorder %s132, 1
      %p847 = por %p845, %p846
      %p848 = scmp.ne.s32.totalorder %s837, %s838
      %p849 = scmp.eq.s32.totalorder %s132, 0
      %p850 = por %p848, %p849
      %p851 = scmp.ne.s32.totalorder %s837, %s838
      %p852 = scmp.eq.s32.totalorder %s133, 1
      %p853 = por %p851, %p852
      %p855 = scmp.ne.s32.totalorder %s838, %s854
      %p856 = scmp.eq.s32.totalorder %s133, 0
      %p857 = por %p855, %p856
      %s858 = ssub.s32 %s127, %s134
      %p859 = scmp.eq.s32.totalorder %s858, 0
      %s861 = sadd.s32 %s860, 1
      %s862 = scalar_select %p859, %s860, %s861
      %p865 = pneg %p859
      %p866 = scmp.eq.s32.totalorder %s127, 1
      %p867 = por %p865, %p866
      %p868 = scmp.ne.s32.totalorder %s860, %s863
      %p869 = scmp.eq.s32.totalorder %s127, 0
      %p870 = por %p868, %p869
      %p871 = scmp.ne.s32.totalorder %s860, %s863
      %p872 = scmp.eq.s32.totalorder %s132, 1
      %p873 = por %p871, %p872
      %p874 = scmp.ne.s32.totalorder %s863, %s864
      %p875 = scmp.eq.s32.totalorder %s132, 0
      %p876 = por %p874, %p875
      %p877 = scmp.ne.s32.totalorder %s863, %s864
      %p878 = scmp.eq.s32.totalorder %s133, 1
      %p879 = por %p877, %p878
      %p881 = scmp.ne.s32.totalorder %s864, %s880
      %p882 = scmp.eq.s32.totalorder %s133, 0
      %p883 = por %p881, %p882
      %s884 = ssub.s32 %s127, %s134
      %p885 = scmp.eq.s32.totalorder %s884, 0
      %s887 = sadd.s32 %s886, 1
      %s888 = scalar_select %p885, %s886, %s887
      %p891 = pneg %p885
      %p892 = scmp.eq.s32.totalorder %s127, 1
      %p893 = por %p891, %p892
      %p894 = scmp.ne.s32.totalorder %s886, %s889
      %p895 = scmp.eq.s32.totalorder %s127, 0
      %p896 = por %p894, %p895
      %p897 = scmp.ne.s32.totalorder %s886, %s889
      %p898 = scmp.eq.s32.totalorder %s132, 1
      %p899 = por %p897, %p898
      %p900 = scmp.ne.s32.totalorder %s889, %s890
      %p901 = scmp.eq.s32.totalorder %s132, 0
      %p902 = por %p900, %p901
      %p903 = scmp.ne.s32.totalorder %s889, %s890
      %p904 = scmp.eq.s32.totalorder %s133, 1
      %p905 = por %p903, %p904
      %p907 = scmp.ne.s32.totalorder %s890, %s906
      %p908 = scmp.eq.s32.totalorder %s133, 0
      %p909 = por %p907, %p908
      %s910 = ssub.s32 %s127, %s134
      %p911 = scmp.eq.s32.totalorder %s910, 0
      %s913 = sadd.s32 %s912, 1
      %s914 = scalar_select %p911, %s912, %s913
      %p917 = pneg %p911
      %p918 = scmp.eq.s32.totalorder %s127, 1
      %p919 = por %p917, %p918
      %p920 = scmp.ne.s32.totalorder %s912, %s915
      %p921 = scmp.eq.s32.totalorder %s127, 0
      %p922 = por %p920, %p921
      %p923 = scmp.ne.s32.totalorder %s912, %s915
      %p924 = scmp.eq.s32.totalorder %s132, 1
      %p925 = por %p923, %p924
      %p926 = scmp.ne.s32.totalorder %s915, %s916
      %p927 = scmp.eq.s32.totalorder %s132, 0
      %p928 = por %p926, %p927
      %p929 = scmp.ne.s32.totalorder %s915, %s916
      %p930 = scmp.eq.s32.totalorder %s133, 1
      %p931 = por %p929, %p930
      %p933 = scmp.ne.s32.totalorder %s916, %s932
      %p934 = scmp.eq.s32.totalorder %s133, 0
      %p935 = por %p933, %p934
      %s936 = ssub.s32 %s127, %s134
      %p937 = scmp.eq.s32.totalorder %s936, 0
      %s939 = sadd.s32 %s938, 1
      %s940 = scalar_select %p937, %s938, %s939
      %p943 = pneg %p937
      %p944 = scmp.eq.s32.totalorder %s127, 1
      %p945 = por %p943, %p944
      %p946 = scmp.ne.s32.totalorder %s938, %s941
      %p947 = scmp.eq.s32.totalorder %s127, 0
      %p948 = por %p946, %p947
      %p949 = scmp.ne.s32.totalorder %s938, %s941
      %p950 = scmp.eq.s32.totalorder %s132, 1
      %p951 = por %p949, %p950
      %p952 = scmp.ne.s32.totalorder %s941, %s942
      %p953 = scmp.eq.s32.totalorder %s132, 0
      %p954 = por %p952, %p953
      %p955 = scmp.ne.s32.totalorder %s941, %s942
      %p956 = scmp.eq.s32.totalorder %s133, 1
      %p957 = por %p955, %p956
      %p959 = scmp.ne.s32.totalorder %s942, %s958
      %p960 = scmp.eq.s32.totalorder %s133, 0
      %p961 = por %p959, %p960
      %s962 = ssub.s32 %s127, %s134
      %p963 = scmp.eq.s32.totalorder %s962, 0
      %s965 = sadd.s32 %s964, 1
      %s966 = scalar_select %p963, %s964, %s965
      %p969 = pneg %p963
      %p970 = scmp.eq.s32.totalorder %s127, 1
      %p971 = por %p969, %p970
      %p972 = scmp.ne.s32.totalorder %s964, %s967
      %p973 = scmp.eq.s32.totalorder %s127, 0
      %p974 = por %p972, %p973
      %p975 = scmp.ne.s32.totalorder %s964, %s967
      %p976 = scmp.eq.s32.totalorder %s132, 1
      %p977 = por %p975, %p976
      %p978 = scmp.ne.s32.totalorder %s967, %s968
      %p979 = scmp.eq.s32.totalorder %s132, 0
      %p980 = por %p978, %p979
      %p981 = scmp.ne.s32.totalorder %s967, %s968
      %p982 = scmp.eq.s32.totalorder %s133, 1
      %p983 = por %p981, %p982
      %p985 = scmp.ne.s32.totalorder %s968, %s984
      %p986 = scmp.eq.s32.totalorder %s133, 0
      %p987 = por %p985, %p986
      %s988 = ssub.s32 %s127, %s134
      %p989 = scmp.eq.s32.totalorder %s988, 0
      %s991 = sadd.s32 %s990, 1
      %s992 = scalar_select %p989, %s990, %s991
      %p995 = pneg %p989
      %p996 = scmp.eq.s32.totalorder %s127, 1
      %p997 = por %p995, %p996
      %p998 = scmp.ne.s32.totalorder %s990, %s993
      %p999 = scmp.eq.s32.totalorder %s127, 0
      %p1000 = por %p998, %p999
      %p1001 = scmp.ne.s32.totalorder %s990, %s993
      %p1002 = scmp.eq.s32.totalorder %s132, 1
      %p1003 = por %p1001, %p1002
      %p1004 = scmp.ne.s32.totalorder %s993, %s994
      %p1005 = scmp.eq.s32.totalorder %s132, 0
      %p1006 = por %p1004, %p1005
      %p1007 = scmp.ne.s32.totalorder %s993, %s994
      %p1008 = scmp.eq.s32.totalorder %s133, 1
      %p1009 = por %p1007, %p1008
      %p1011 = scmp.ne.s32.totalorder %s994, %s1010
      %p1012 = scmp.eq.s32.totalorder %s133, 0
      %p1013 = por %p1011, %p1012
      %s1014 = ssub.s32 %s127, %s134
      %p1015 = scmp.eq.s32.totalorder %s1014, 0
      %s1017 = sadd.s32 %s1016, 1
      %s1018 = scalar_select %p1015, %s1016, %s1017
      %p1021 = pneg %p1015
      %p1022 = scmp.eq.s32.totalorder %s127, 1
      %p1023 = por %p1021, %p1022
      %p1024 = scmp.ne.s32.totalorder %s1016, %s1019
      %p1025 = scmp.eq.s32.totalorder %s127, 0
      %p1026 = por %p1024, %p1025
      %p1027 = scmp.ne.s32.totalorder %s1016, %s1019
      %p1028 = scmp.eq.s32.totalorder %s132, 1
      %p1029 = por %p1027, %p1028
      %p1030 = scmp.ne.s32.totalorder %s1019, %s1020
      %p1031 = scmp.eq.s32.totalorder %s132, 0
      %p1032 = por %p1030, %p1031
      %p1033 = scmp.ne.s32.totalorder %s1019, %s1020
      %p1034 = scmp.eq.s32.totalorder %s133, 1
      %p1035 = por %p1033, %p1034
      %p1037 = scmp.ne.s32.totalorder %s1020, %s1036
      %p1038 = scmp.eq.s32.totalorder %s133, 0
      %p1039 = por %p1037, %p1038
      %p1040 = scmp.le.s32.totalorder 1, %s127
      %p1041 = scmp.lt.s32.totalorder %s127, 3
      %p1042 = pnand %p1040, %p1041
      %p1043 = pneg %p1042
      // Predicated region
      $region9: #{tpu_custom_call.1} parent=5 // pred_check
        _
      $region10: #{tpu_custom_call.1} parent=5 // pred_check_branch
        %1045 = sbr.rel (%p1042) target = $region12
      $region11: #{tpu_custom_call.1} parent=5 // pred_region
        %s1046 = ssub.s32 %s127, 1
        // Predicated region
        $region13: #{tpu_custom_call.1} parent=11 // pred_check
          %p1047 = pneg %p148
        $region14: #{tpu_custom_call.1} parent=11 // pred_check_branch
          %1049 = sbr.rel (%p1047) target = $region16
        $region15: #{tpu_custom_call.1} parent=11 // pred_region
          %s1051 = ssub.s32 16, 16
          %1052 = vsyncadd [#allocation5], %s1051
          %1055 = dma.hbm_to_smem %s1, 16, [#allocation2], [#allocation5]
        $region16: #{tpu_custom_call.1} parent=11 // pred_fallthru
          _
      $region12: #{tpu_custom_call.1} parent=5 // pred_fallthru
        _
      %p1056 = scmp.lt.s32.totalorder %s127, 2
      // Predicated region
      $region17: #{tpu_custom_call.1} parent=5 // pred_check
        %p1057 = pneg %p1056
      $region18: #{tpu_custom_call.1} parent=5 // pred_check_branch
        %1059 = sbr.rel (%p1057) target = $region20
      $region19: #{tpu_custom_call.1} parent=5 // pred_region
        // Predicated region
        $region21: #{tpu_custom_call.1} parent=19 // pred_check
          %p1060 = pneg %p168
        $region22: #{tpu_custom_call.1} parent=19 // pred_check_branch
          %1062 = sbr.rel (%p1060) target = $region24
        $region23: #{tpu_custom_call.1} parent=19 // pred_region
          %s1063 = sand.u32 %s158, 1
          %s1064 = scalar_lea.sflag [#allocation3], %s1063
          %s1065 = sand.u32 %s158, 1
          %s1066 = smul.addr %s1065, 16
          %s1067 = scalar_lea.vmem [#allocation6], %s1066
          %s1068 = smul.u32 2, %s127
          %s1070 = ssub.s32 256, 256
          %1071 = vsyncadd %s1064, %s1070
          %s1072 = smul.addr %s1068, 128
          %s1073 = scalar_lea.hbm %s3, %s1072
          %s1074 = sshll.u32 %s1067, 4
          %s1075 = int_to_ptr.vmem [resolvable:$true] %s1074
          %1080 = dma.hbm_to_vmem [thread:$0]  %s1073, 256, %s1075, %s1064, 128, 128, 8
        $region24: #{tpu_custom_call.1} parent=19 // pred_fallthru
          _
        // Predicated region
        $region25: #{tpu_custom_call.1} parent=19 // pred_check
          %p1081 = pneg %p194
        $region26: #{tpu_custom_call.1} parent=19 // pred_check_branch
          %1083 = sbr.rel (%p1081) target = $region28
        $region27: #{tpu_custom_call.1} parent=19 // pred_region
          %s1084 = sand.u32 %s127, 1
          %s1085 = scalar_lea.sflag [#allocation8], %s1084
          %s1086 = sand.u32 %s184, 1
          %s1087 = smul.addr %s1086, 16
          %s1088 = scalar_lea.vmem [#allocation7], %s1087
          %s1089 = smul.u32 2, %s127
          %s1091 = ssub.s32 256, 256
          %1092 = vsyncadd %s1085, %s1091
          %s1093 = smul.addr %s1089, 128
          %s1094 = scalar_lea.hbm %s5, %s1093
          %s1095 = sshll.u32 %s1088, 4
          %s1096 = int_to_ptr.vmem [resolvable:$true] %s1095
          %1101 = dma.hbm_to_vmem [thread:$0]  %s1094, 256, %s1096, %s1085, 128, 128, 8
        $region28: #{tpu_custom_call.1} parent=19 // pred_fallthru
          _
        // Predicated region
        $region29: #{tpu_custom_call.1} parent=19 // pred_check
          %p1102 = pneg %p220
        $region30: #{tpu_custom_call.1} parent=19 // pred_check_branch
          %1104 = sbr.rel (%p1102) target = $region32
        $region31: #{tpu_custom_call.1} parent=19 // pred_region
          %s1105 = sand.u32 %s127, 1
          %s1106 = scalar_lea.sflag [#allocation8], %s1105
          %s1107 = sand.u32 %s210, 1
          %s1108 = smul.addr %s1107, 16
          %s1109 = scalar_lea.vmem [#allocation9], %s1108
          %s1110 = smul.u32 2, %s127
          %s1112 = ssub.s32 256, 256
          %1113 = vsyncadd %s1106, %s1112
          %s1114 = smul.addr %s1110, 128
          %s1115 = scalar_lea.hbm %s7, %s1114
          %s1116 = sshll.u32 %s1109, 4
          %s1117 = int_to_ptr.vmem [resolvable:$true] %s1116
          %1122 = dma.hbm_to_vmem [thread:$0]  %s1115, 256, %s1117, %s1106, 128, 128, 8
        $region32: #{tpu_custom_call.1} parent=19 // pred_fallthru
          _
        // Predicated region
        $region33: #{tpu_custom_call.1} parent=19 // pred_check
          %p1123 = pneg %p246
        $region34: #{tpu_custom_call.1} parent=19 // pred_check_branch
          %1125 = sbr.rel (%p1123) target = $region36
        $region35: #{tpu_custom_call.1} parent=19 // pred_region
          %s1126 = sand.u32 %s127, 1
          %s1127 = scalar_lea.sflag [#allocation11], %s1126
          %s1128 = sand.u32 %s236, 1
          %s1129 = smul.addr %s1128, 16
          %s1130 = scalar_lea.vmem [#allocation10], %s1129
          %s1131 = smul.u32 2, %s127
          %s1133 = ssub.s32 256, 256
          %1134 = vsyncadd %s1127, %s1133
          %s1135 = smul.addr %s1131, 128
          %s1136 = scalar_lea.hbm %s9, %s1135
          %s1137 = sshll.u32 %s1130, 4
          %s1138 = int_to_ptr.vmem [resolvable:$true] %s1137
          %1143 = dma.hbm_to_vmem [thread:$0]  %s1136, 256, %s1138, %s1127, 128, 128, 8
        $region36: #{tpu_custom_call.1} parent=19 // pred_fallthru
          _
        // Predicated region
        $region37: #{tpu_custom_call.1} parent=19 // pred_check
          %p1144 = pneg %p272
        $region38: #{tpu_custom_call.1} parent=19 // pred_check_branch
          %1146 = sbr.rel (%p1144) target = $region40
        $region39: #{tpu_custom_call.1} parent=19 // pred_region
          %s1147 = sand.u32 %s127, 1
          %s1148 = scalar_lea.sflag [#allocation11], %s1147
          %s1149 = sand.u32 %s262, 1
          %s1150 = smul.addr %s1149, 16
          %s1151 = scalar_lea.vmem [#allocation12], %s1150
          %s1152 = smul.u32 2, %s127
          %s1154 = ssub.s32 256, 256
          %1155 = vsyncadd %s1148, %s1154
          %s1156 = smul.addr %s1152, 128
          %s1157 = scalar_lea.hbm %s11, %s1156
          %s1158 = sshll.u32 %s1151, 4
          %s1159 = int_to_ptr.vmem [resolvable:$true] %s1158
          %1164 = dma.hbm_to_vmem [thread:$0]  %s1157, 256, %s1159, %s1148, 128, 128, 8
        $region40: #{tpu_custom_call.1} parent=19 // pred_fallthru
          _
        // Predicated region
        $region41: #{tpu_custom_call.1} parent=19 // pred_check
          %p1165 = pneg %p298
        $region42: #{tpu_custom_call.1} parent=19 // pred_check_branch
          %1167 = sbr.rel (%p1165) target = $region44
        $region43: #{tpu_custom_call.1} parent=19 // pred_region
          %s1168 = sand.u32 %s127, 1
          %s1169 = scalar_lea.sflag [#allocation14], %s1168
          %s1170 = sand.u32 %s288, 1
          %s1171 = smul.addr %s1170, 16
          %s1172 = scalar_lea.vmem [#allocation13], %s1171
          %s1173 = smul.u32 2, %s127
          %s1175 = ssub.s32 256, 256
          %1176 = vsyncadd %s1169, %s1175
          %s1177 = smul.addr %s1173, 128
          %s1178 = scalar_lea.hbm %s13, %s1177
          %s1179 = sshll.u32 %s1172, 4
          %s1180 = int_to_ptr.vmem [resolvable:$true] %s1179
          %1185 = dma.hbm_to_vmem [thread:$0]  %s1178, 256, %s1180, %s1169, 128, 128, 8
        $region44: #{tpu_custom_call.1} parent=19 // pred_fallthru
          _
        // Predicated region
        $region45: #{tpu_custom_call.1} parent=19 // pred_check
          %p1186 = pneg %p324
        $region46: #{tpu_custom_call.1} parent=19 // pred_check_branch
          %1188 = sbr.rel (%p1186) target = $region48
        $region47: #{tpu_custom_call.1} parent=19 // pred_region
          %s1189 = sand.u32 %s127, 1
          %s1190 = scalar_lea.sflag [#allocation14], %s1189
          %s1191 = sand.u32 %s314, 1
          %s1192 = smul.addr %s1191, 16
          %s1193 = scalar_lea.vmem [#allocation15], %s1192
          %s1194 = smul.u32 2, %s127
          %s1196 = ssub.s32 256, 256
          %1197 = vsyncadd %s1190, %s1196
          %s1198 = smul.addr %s1194, 128
          %s1199 = scalar_lea.hbm %s15, %s1198
          %s1200 = sshll.u32 %s1193, 4
          %s1201 = int_to_ptr.vmem [resolvable:$true] %s1200
          %1206 = dma.hbm_to_vmem [thread:$0]  %s1199, 256, %s1201, %s1190, 128, 128, 8
        $region48: #{tpu_custom_call.1} parent=19 // pred_fallthru
          _
        // Predicated region
        $region49: #{tpu_custom_call.1} parent=19 // pred_check
          %p1207 = pneg %p350
        $region50: #{tpu_custom_call.1} parent=19 // pred_check_branch
          %1209 = sbr.rel (%p1207) target = $region52
        $region51: #{tpu_custom_call.1} parent=19 // pred_region
          %s1210 = sand.u32 %s127, 1
          %s1211 = scalar_lea.sflag [#allocation17], %s1210
          %s1212 = sand.u32 %s340, 1
          %s1213 = smul.addr %s1212, 16
          %s1214 = scalar_lea.vmem [#allocation16], %s1213
          %s1215 = smul.u32 2, %s127
          %s1217 = ssub.s32 256, 256
          %1218 = vsyncadd %s1211, %s1217
          %s1219 = smul.addr %s1215, 128
          %s1220 = scalar_lea.hbm %s17, %s1219
          %s1221 = sshll.u32 %s1214, 4
          %s1222 = int_to_ptr.vmem [resolvable:$true] %s1221
          %1227 = dma.hbm_to_vmem [thread:$0]  %s1220, 256, %s1222, %s1211, 128, 128, 8
        $region52: #{tpu_custom_call.1} parent=19 // pred_fallthru
          _
        // Predicated region
        $region53: #{tpu_custom_call.1} parent=19 // pred_check
          %p1228 = pneg %p376
        $region54: #{tpu_custom_call.1} parent=19 // pred_check_branch
          %1230 = sbr.rel (%p1228) target = $region56
        $region55: #{tpu_custom_call.1} parent=19 // pred_region
          %s1231 = smul.u32 2, %s127
          %p1232 = scmp.lt.s32.totalorder %s1231, 3
          %s1233 = scalar_select %p1232, %s1231, 3
          %s1234 = smul.addr %s1233, 8
          %s1235 = scalar_lea.vmem %s19, %s1234
          %s1236 = smul.u32 2, %s127
        $region56: #{tpu_custom_call.1} parent=19 // pred_fallthru
          _
        // Predicated region
        $region57: #{tpu_custom_call.1} parent=19 // pred_check
          %p1237 = pneg %p402
        $region58: #{tpu_custom_call.1} parent=19 // pred_check_branch
          %1239 = sbr.rel (%p1237) target = $region60
        $region59: #{tpu_custom_call.1} parent=19 // pred_region
          %s1240 = sand.u32 %s127, 1
          %s1241 = scalar_lea.sflag [#allocation17], %s1240
          %s1242 = sand.u32 %s392, 1
          %s1243 = smul.addr %s1242, 16
          %s1244 = scalar_lea.vmem [#allocation18], %s1243
          %s1245 = smul.u32 2, %s127
          %s1247 = ssub.s32 256, 256
          %1248 = vsyncadd %s1241, %s1247
          %s1249 = smul.addr %s1245, 128
          %s1250 = scalar_lea.hbm %s21, %s1249
          %s1251 = sshll.u32 %s1244, 4
          %s1252 = int_to_ptr.vmem [resolvable:$true] %s1251
          %1257 = dma.hbm_to_vmem [thread:$0]  %s1250, 256, %s1252, %s1241, 128, 128, 8
        $region60: #{tpu_custom_call.1} parent=19 // pred_fallthru
          _
        // Predicated region
        $region61: #{tpu_custom_call.1} parent=19 // pred_check
          %p1258 = pneg %p428
        $region62: #{tpu_custom_call.1} parent=19 // pred_check_branch
          %1260 = sbr.rel (%p1258) target = $region64
        $region63: #{tpu_custom_call.1} parent=19 // pred_region
          %s1261 = sand.u32 %s127, 1
          %s1262 = scalar_lea.sflag [#allocation20], %s1261
          %s1263 = sand.u32 %s418, 1
          %s1264 = smul.addr %s1263, 16
          %s1265 = scalar_lea.vmem [#allocation19], %s1264
          %s1266 = smul.u32 2, %s127
          %s1268 = ssub.s32 256, 256
          %1269 = vsyncadd %s1262, %s1268
          %s1270 = smul.addr %s1266, 128
          %s1271 = scalar_lea.hbm %s23, %s1270
          %s1272 = sshll.u32 %s1265, 4
          %s1273 = int_to_ptr.vmem [resolvable:$true] %s1272
          %1278 = dma.hbm_to_vmem [thread:$0]  %s1271, 256, %s1273, %s1262, 128, 128, 8
        $region64: #{tpu_custom_call.1} parent=19 // pred_fallthru
          _
        // Predicated region
        $region65: #{tpu_custom_call.1} parent=19 // pred_check
          %p1279 = pneg %p454
        $region66: #{tpu_custom_call.1} parent=19 // pred_check_branch
          %1281 = sbr.rel (%p1279) target = $region68
        $region67: #{tpu_custom_call.1} parent=19 // pred_region
          %s1282 = sand.u32 %s127, 1
          %s1283 = scalar_lea.sflag [#allocation20], %s1282
          %s1284 = sand.u32 %s444, 1
          %s1285 = smul.addr %s1284, 16
          %s1286 = scalar_lea.vmem [#allocation21], %s1285
          %s1287 = smul.u32 2, %s127
          %s1289 = ssub.s32 256, 256
          %1290 = vsyncadd %s1283, %s1289
          %s1291 = smul.addr %s1287, 128
          %s1292 = scalar_lea.hbm %s25, %s1291
          %s1293 = sshll.u32 %s1286, 4
          %s1294 = int_to_ptr.vmem [resolvable:$true] %s1293
          %1299 = dma.hbm_to_vmem [thread:$0]  %s1292, 256, %s1294, %s1283, 128, 128, 8
        $region68: #{tpu_custom_call.1} parent=19 // pred_fallthru
          _
        // Predicated region
        $region69: #{tpu_custom_call.1} parent=19 // pred_check
          %p1300 = pneg %p480
        $region70: #{tpu_custom_call.1} parent=19 // pred_check_branch
          %1302 = sbr.rel (%p1300) target = $region72
        $region71: #{tpu_custom_call.1} parent=19 // pred_region
          %s1303 = sand.u32 %s127, 1
          %s1304 = scalar_lea.sflag [#allocation23], %s1303
          %s1305 = sand.u32 %s470, 1
          %s1306 = smul.addr %s1305, 16
          %s1307 = scalar_lea.vmem [#allocation22], %s1306
          %s1308 = smul.u32 2, %s127
          %s1310 = ssub.s32 256, 256
          %1311 = vsyncadd %s1304, %s1310
          %s1312 = smul.addr %s1308, 128
          %s1313 = scalar_lea.hbm %s27, %s1312
          %s1314 = sshll.u32 %s1307, 4
          %s1315 = int_to_ptr.vmem [resolvable:$true] %s1314
          %1320 = dma.hbm_to_vmem [thread:$0]  %s1313, 256, %s1315, %s1304, 128, 128, 8
        $region72: #{tpu_custom_call.1} parent=19 // pred_fallthru
          _
        // Predicated region
        $region73: #{tpu_custom_call.1} parent=19 // pred_check
          %p1321 = pneg %p506
        $region74: #{tpu_custom_call.1} parent=19 // pred_check_branch
          %1323 = sbr.rel (%p1321) target = $region76
        $region75: #{tpu_custom_call.1} parent=19 // pred_region
          %s1324 = sand.u32 %s127, 1
          %s1325 = scalar_lea.sflag [#allocation23], %s1324
          %s1326 = sand.u32 %s496, 1
          %s1327 = smul.addr %s1326, 16
          %s1328 = scalar_lea.vmem [#allocation24], %s1327
          %s1329 = smul.u32 2, %s127
          %s1331 = ssub.s32 256, 256
          %1332 = vsyncadd %s1325, %s1331
          %s1333 = smul.addr %s1329, 128
          %s1334 = scalar_lea.hbm %s29, %s1333
          %s1335 = sshll.u32 %s1328, 4
          %s1336 = int_to_ptr.vmem [resolvable:$true] %s1335
          %1341 = dma.hbm_to_vmem [thread:$0]  %s1334, 256, %s1336, %s1325, 128, 128, 8
        $region76: #{tpu_custom_call.1} parent=19 // pred_fallthru
          _
        // Predicated region
        $region77: #{tpu_custom_call.1} parent=19 // pred_check
          %p1342 = pneg %p532
        $region78: #{tpu_custom_call.1} parent=19 // pred_check_branch
          %1344 = sbr.rel (%p1342) target = $region80
        $region79: #{tpu_custom_call.1} parent=19 // pred_region
          %s1345 = sand.u32 %s127, 1
          %s1346 = scalar_lea.sflag [#allocation26], %s1345
          %s1347 = sand.u32 %s522, 1
          %s1348 = smul.addr %s1347, 16
          %s1349 = scalar_lea.vmem [#allocation25], %s1348
          %s1350 = smul.u32 2, %s127
          %s1352 = ssub.s32 256, 256
          %1353 = vsyncadd %s1346, %s1352
          %s1354 = smul.addr %s1350, 128
          %s1355 = scalar_lea.hbm %s31, %s1354
          %s1356 = sshll.u32 %s1349, 4
          %s1357 = int_to_ptr.vmem [resolvable:$true] %s1356
          %1362 = dma.hbm_to_vmem [thread:$0]  %s1355, 256, %s1357, %s1346, 128, 128, 8
        $region80: #{tpu_custom_call.1} parent=19 // pred_fallthru
          _
        // Predicated region
        $region81: #{tpu_custom_call.1} parent=19 // pred_check
          %p1363 = pneg %p558
        $region82: #{tpu_custom_call.1} parent=19 // pred_check_branch
          %1365 = sbr.rel (%p1363) target = $region84
        $region83: #{tpu_custom_call.1} parent=19 // pred_region
          %s1366 = sand.u32 %s127, 1
          %s1367 = scalar_lea.sflag [#allocation26], %s1366
          %s1368 = sand.u32 %s548, 1
          %s1369 = smul.addr %s1368, 16
          %s1370 = scalar_lea.vmem [#allocation27], %s1369
          %s1371 = smul.u32 2, %s127
          %s1373 = ssub.s32 256, 256
          %1374 = vsyncadd %s1367, %s1373
          %s1375 = smul.addr %s1371, 128
          %s1376 = scalar_lea.hbm %s33, %s1375
          %s1377 = sshll.u32 %s1370, 4
          %s1378 = int_to_ptr.vmem [resolvable:$true] %s1377
          %1383 = dma.hbm_to_vmem [thread:$0]  %s1376, 256, %s1378, %s1367, 128, 128, 8
        $region84: #{tpu_custom_call.1} parent=19 // pred_fallthru
          _
        // Predicated region
        $region85: #{tpu_custom_call.1} parent=19 // pred_check
          %p1384 = pneg %p584
        $region86: #{tpu_custom_call.1} parent=19 // pred_check_branch
          %1386 = sbr.rel (%p1384) target = $region88
        $region87: #{tpu_custom_call.1} parent=19 // pred_region
          %s1387 = smul.u32 2, %s127
          %p1388 = scmp.lt.s32.totalorder %s1387, 3
          %s1389 = scalar_select %p1388, %s1387, 3
          %s1390 = smul.addr %s1389, 8
          %s1391 = scalar_lea.vmem %s35, %s1390
          %s1392 = smul.u32 2, %s127
        $region88: #{tpu_custom_call.1} parent=19 // pred_fallthru
          _
        // Predicated region
        $region89: #{tpu_custom_call.1} parent=19 // pred_check
          %p1393 = pneg %p610
        $region90: #{tpu_custom_call.1} parent=19 // pred_check_branch
          %1395 = sbr.rel (%p1393) target = $region92
        $region91: #{tpu_custom_call.1} parent=19 // pred_region
          %s1396 = sand.u32 %s127, 1
          %s1397 = scalar_lea.sflag [#allocation29], %s1396
          %s1398 = sand.u32 %s600, 1
          %s1399 = smul.addr %s1398, 16
          %s1400 = scalar_lea.vmem [#allocation28], %s1399
          %s1401 = smul.u32 2, %s127
          %s1403 = ssub.s32 256, 256
          %1404 = vsyncadd %s1397, %s1403
          %s1405 = smul.addr %s1401, 128
          %s1406 = scalar_lea.hbm %s37, %s1405
          %s1407 = sshll.u32 %s1400, 4
          %s1408 = int_to_ptr.vmem [resolvable:$true] %s1407
          %1413 = dma.hbm_to_vmem [thread:$0]  %s1406, 256, %s1408, %s1397, 128, 128, 8
        $region92: #{tpu_custom_call.1} parent=19 // pred_fallthru
          _
        // Predicated region
        $region93: #{tpu_custom_call.1} parent=19 // pred_check
          %p1414 = pneg %p636
        $region94: #{tpu_custom_call.1} parent=19 // pred_check_branch
          %1416 = sbr.rel (%p1414) target = $region96
        $region95: #{tpu_custom_call.1} parent=19 // pred_region
          %s1417 = sand.u32 %s127, 1
          %s1418 = scalar_lea.sflag [#allocation29], %s1417
          %s1419 = sand.u32 %s626, 1
          %s1420 = smul.addr %s1419, 16
          %s1421 = scalar_lea.vmem [#allocation30], %s1420
          %s1422 = smul.u32 2, %s127
          %s1424 = ssub.s32 256, 256
          %1425 = vsyncadd %s1418, %s1424
          %s1426 = smul.addr %s1422, 128
          %s1427 = scalar_lea.hbm %s39, %s1426
          %s1428 = sshll.u32 %s1421, 4
          %s1429 = int_to_ptr.vmem [resolvable:$true] %s1428
          %1434 = dma.hbm_to_vmem [thread:$0]  %s1427, 256, %s1429, %s1418, 128, 128, 8
        $region96: #{tpu_custom_call.1} parent=19 // pred_fallthru
          _
        // Predicated region
        $region97: #{tpu_custom_call.1} parent=19 // pred_check
          %p1435 = pneg %p662
        $region98: #{tpu_custom_call.1} parent=19 // pred_check_branch
          %1437 = sbr.rel (%p1435) target = $region100
        $region99: #{tpu_custom_call.1} parent=19 // pred_region
          %s1438 = sand.u32 %s127, 1
          %s1439 = scalar_lea.sflag [#allocation32], %s1438
          %s1440 = sand.u32 %s652, 1
          %s1441 = smul.addr %s1440, 16
          %s1442 = scalar_lea.vmem [#allocation31], %s1441
          %s1443 = smul.u32 2, %s127
          %s1445 = ssub.s32 256, 256
          %1446 = vsyncadd %s1439, %s1445
          %s1447 = smul.addr %s1443, 128
          %s1448 = scalar_lea.hbm %s41, %s1447
          %s1449 = sshll.u32 %s1442, 4
          %s1450 = int_to_ptr.vmem [resolvable:$true] %s1449
          %1455 = dma.hbm_to_vmem [thread:$0]  %s1448, 256, %s1450, %s1439, 128, 128, 8
        $region100: #{tpu_custom_call.1} parent=19 // pred_fallthru
          _
        // Predicated region
        $region101: #{tpu_custom_call.1} parent=19 // pred_check
          %p1456 = pneg %p688
        $region102: #{tpu_custom_call.1} parent=19 // pred_check_branch
          %1458 = sbr.rel (%p1456) target = $region104
        $region103: #{tpu_custom_call.1} parent=19 // pred_region
          %s1459 = sand.u32 %s127, 1
          %s1460 = scalar_lea.sflag [#allocation32], %s1459
          %s1461 = sand.u32 %s678, 1
          %s1462 = smul.addr %s1461, 16
          %s1463 = scalar_lea.vmem [#allocation33], %s1462
          %s1464 = smul.u32 2, %s127
          %s1466 = ssub.s32 256, 256
          %1467 = vsyncadd %s1460, %s1466
          %s1468 = smul.addr %s1464, 128
          %s1469 = scalar_lea.hbm %s43, %s1468
          %s1470 = sshll.u32 %s1463, 4
          %s1471 = int_to_ptr.vmem [resolvable:$true] %s1470
          %1476 = dma.hbm_to_vmem [thread:$0]  %s1469, 256, %s1471, %s1460, 128, 128, 8
        $region104: #{tpu_custom_call.1} parent=19 // pred_fallthru
          _
        // Predicated region
        $region105: #{tpu_custom_call.1} parent=19 // pred_check
          %p1477 = pneg %p714
        $region106: #{tpu_custom_call.1} parent=19 // pred_check_branch
          %1479 = sbr.rel (%p1477) target = $region108
        $region107: #{tpu_custom_call.1} parent=19 // pred_region
          %s1480 = sand.u32 %s127, 1
          %s1481 = scalar_lea.sflag [#allocation35], %s1480
          %s1482 = sand.u32 %s704, 1
          %s1483 = smul.addr %s1482, 16
          %s1484 = scalar_lea.vmem [#allocation34], %s1483
          %s1485 = smul.u32 2, %s127
          %s1487 = ssub.s32 256, 256
          %1488 = vsyncadd %s1481, %s1487
          %s1489 = smul.addr %s1485, 128
          %s1490 = scalar_lea.hbm %s45, %s1489
          %s1491 = sshll.u32 %s1484, 4
          %s1492 = int_to_ptr.vmem [resolvable:$true] %s1491
          %1497 = dma.hbm_to_vmem [thread:$0]  %s1490, 256, %s1492, %s1481, 128, 128, 8
        $region108: #{tpu_custom_call.1} parent=19 // pred_fallthru
          _
        // Predicated region
        $region109: #{tpu_custom_call.1} parent=19 // pred_check
          %p1498 = pneg %p740
        $region110: #{tpu_custom_call.1} parent=19 // pred_check_branch
          %1500 = sbr.rel (%p1498) target = $region112
        $region111: #{tpu_custom_call.1} parent=19 // pred_region
          %s1501 = sand.u32 %s127, 1
          %s1502 = scalar_lea.sflag [#allocation35], %s1501
          %s1503 = sand.u32 %s730, 1
          %s1504 = smul.addr %s1503, 16
          %s1505 = scalar_lea.vmem [#allocation36], %s1504
          %s1506 = smul.u32 2, %s127
          %s1508 = ssub.s32 256, 256
          %1509 = vsyncadd %s1502, %s1508
          %s1510 = smul.addr %s1506, 128
          %s1511 = scalar_lea.hbm %s47, %s1510
          %s1512 = sshll.u32 %s1505, 4
          %s1513 = int_to_ptr.vmem [resolvable:$true] %s1512
          %1518 = dma.hbm_to_vmem [thread:$0]  %s1511, 256, %s1513, %s1502, 128, 128, 8
        $region112: #{tpu_custom_call.1} parent=19 // pred_fallthru
          _
        // Predicated region
        $region113: #{tpu_custom_call.1} parent=19 // pred_check
          %p1519 = pneg %p766
        $region114: #{tpu_custom_call.1} parent=19 // pred_check_branch
          %1521 = sbr.rel (%p1519) target = $region116
        $region115: #{tpu_custom_call.1} parent=19 // pred_region
          %s1522 = sand.u32 %s127, 1
          %s1523 = scalar_lea.sflag [#allocation38], %s1522
          %s1524 = sand.u32 %s756, 1
          %s1525 = smul.addr %s1524, 16
          %s1526 = scalar_lea.vmem [#allocation37], %s1525
          %s1527 = smul.u32 2, %s127
          %s1529 = ssub.s32 256, 256
          %1530 = vsyncadd %s1523, %s1529
          %s1531 = smul.addr %s1527, 128
          %s1532 = scalar_lea.hbm %s49, %s1531
          %s1533 = sshll.u32 %s1526, 4
          %s1534 = int_to_ptr.vmem [resolvable:$true] %s1533
          %1539 = dma.hbm_to_vmem [thread:$0]  %s1532, 256, %s1534, %s1523, 128, 128, 8
        $region116: #{tpu_custom_call.1} parent=19 // pred_fallthru
          _
        // Predicated region
        $region117: #{tpu_custom_call.1} parent=19 // pred_check
          %p1540 = pneg %p792
        $region118: #{tpu_custom_call.1} parent=19 // pred_check_branch
          %1542 = sbr.rel (%p1540) target = $region120
        $region119: #{tpu_custom_call.1} parent=19 // pred_region
          %s1543 = sand.u32 %s127, 1
          %s1544 = scalar_lea.sflag [#allocation38], %s1543
          %s1545 = sand.u32 %s782, 1
          %s1546 = smul.addr %s1545, 16
          %s1547 = scalar_lea.vmem [#allocation39], %s1546
          %s1548 = smul.u32 2, %s127
          %s1550 = ssub.s32 256, 256
          %1551 = vsyncadd %s1544, %s1550
          %s1552 = smul.addr %s1548, 128
          %s1553 = scalar_lea.hbm %s51, %s1552
          %s1554 = sshll.u32 %s1547, 4
          %s1555 = int_to_ptr.vmem [resolvable:$true] %s1554
          %1560 = dma.hbm_to_vmem [thread:$0]  %s1553, 256, %s1555, %s1544, 128, 128, 8
        $region120: #{tpu_custom_call.1} parent=19 // pred_fallthru
          _
        // Predicated region
        $region121: #{tpu_custom_call.1} parent=19 // pred_check
          %p1561 = pneg %p818
        $region122: #{tpu_custom_call.1} parent=19 // pred_check_branch
          %1563 = sbr.rel (%p1561) target = $region124
        $region123: #{tpu_custom_call.1} parent=19 // pred_region
          %s1564 = smul.u32 2, %s127
          %p1565 = scmp.lt.s32.totalorder %s1564, 3
          %s1566 = scalar_select %p1565, %s1564, 3
          %s1567 = smul.addr %s1566, 8
          %s1568 = scalar_lea.vmem %s53, %s1567
          %s1569 = smul.u32 2, %s127
        $region124: #{tpu_custom_call.1} parent=19 // pred_fallthru
          _
        // Predicated region
        $region125: #{tpu_custom_call.1} parent=19 // pred_check
          %p1570 = pneg %p844
        $region126: #{tpu_custom_call.1} parent=19 // pred_check_branch
          %1572 = sbr.rel (%p1570) target = $region128
        $region127: #{tpu_custom_call.1} parent=19 // pred_region
          %s1573 = sand.u32 %s127, 1
          %s1574 = scalar_lea.sflag [#allocation41], %s1573
          %s1575 = sand.u32 %s834, 1
          %s1576 = smul.addr %s1575, 16
          %s1577 = scalar_lea.vmem [#allocation40], %s1576
          %s1578 = smul.u32 2, %s127
          %s1580 = ssub.s32 256, 256
          %1581 = vsyncadd %s1574, %s1580
          %s1582 = smul.addr %s1578, 128
          %s1583 = scalar_lea.hbm %s55, %s1582
          %s1584 = sshll.u32 %s1577, 4
          %s1585 = int_to_ptr.vmem [resolvable:$true] %s1584
          %1590 = dma.hbm_to_vmem [thread:$0]  %s1583, 256, %s1585, %s1574, 128, 128, 8
        $region128: #{tpu_custom_call.1} parent=19 // pred_fallthru
          _
        // Predicated region
        $region129: #{tpu_custom_call.1} parent=19 // pred_check
          %p1591 = pneg %p870
        $region130: #{tpu_custom_call.1} parent=19 // pred_check_branch
          %1593 = sbr.rel (%p1591) target = $region132
        $region131: #{tpu_custom_call.1} parent=19 // pred_region
          %s1594 = sand.u32 %s127, 1
          %s1595 = scalar_lea.sflag [#allocation41], %s1594
          %s1596 = sand.u32 %s860, 1
          %s1597 = smul.addr %s1596, 16
          %s1598 = scalar_lea.vmem [#allocation42], %s1597
          %s1599 = smul.u32 2, %s127
          %s1601 = ssub.s32 256, 256
          %1602 = vsyncadd %s1595, %s1601
          %s1603 = smul.addr %s1599, 128
          %s1604 = scalar_lea.hbm %s57, %s1603
          %s1605 = sshll.u32 %s1598, 4
          %s1606 = int_to_ptr.vmem [resolvable:$true] %s1605
          %1611 = dma.hbm_to_vmem [thread:$0]  %s1604, 256, %s1606, %s1595, 128, 128, 8
        $region132: #{tpu_custom_call.1} parent=19 // pred_fallthru
          _
        // Predicated region
        $region133: #{tpu_custom_call.1} parent=19 // pred_check
          %p1612 = pneg %p896
        $region134: #{tpu_custom_call.1} parent=19 // pred_check_branch
          %1614 = sbr.rel (%p1612) target = $region136
        $region135: #{tpu_custom_call.1} parent=19 // pred_region
          %s1615 = sand.u32 %s127, 1
          %s1616 = scalar_lea.sflag [#allocation44], %s1615
          %s1617 = sand.u32 %s886, 1
          %s1618 = smul.addr %s1617, 16
          %s1619 = scalar_lea.vmem [#allocation43], %s1618
          %s1620 = smul.u32 2, %s127
          %s1622 = ssub.s32 256, 256
          %1623 = vsyncadd %s1616, %s1622
          %s1624 = smul.addr %s1620, 128
          %s1625 = scalar_lea.hbm %s59, %s1624
          %s1626 = sshll.u32 %s1619, 4
          %s1627 = int_to_ptr.vmem [resolvable:$true] %s1626
          %1632 = dma.hbm_to_vmem [thread:$0]  %s1625, 256, %s1627, %s1616, 128, 128, 8
        $region136: #{tpu_custom_call.1} parent=19 // pred_fallthru
          _
        // Predicated region
        $region137: #{tpu_custom_call.1} parent=19 // pred_check
          %p1633 = pneg %p922
        $region138: #{tpu_custom_call.1} parent=19 // pred_check_branch
          %1635 = sbr.rel (%p1633) target = $region140
        $region139: #{tpu_custom_call.1} parent=19 // pred_region
          %s1636 = sand.u32 %s127, 1
          %s1637 = scalar_lea.sflag [#allocation44], %s1636
          %s1638 = sand.u32 %s912, 1
          %s1639 = smul.addr %s1638, 16
          %s1640 = scalar_lea.vmem [#allocation45], %s1639
          %s1641 = smul.u32 2, %s127
          %s1643 = ssub.s32 256, 256
          %1644 = vsyncadd %s1637, %s1643
          %s1645 = smul.addr %s1641, 128
          %s1646 = scalar_lea.hbm %s61, %s1645
          %s1647 = sshll.u32 %s1640, 4
          %s1648 = int_to_ptr.vmem [resolvable:$true] %s1647
          %1653 = dma.hbm_to_vmem [thread:$0]  %s1646, 256, %s1648, %s1637, 128, 128, 8
        $region140: #{tpu_custom_call.1} parent=19 // pred_fallthru
          _
        // Predicated region
        $region141: #{tpu_custom_call.1} parent=19 // pred_check
          %p1654 = pneg %p948
        $region142: #{tpu_custom_call.1} parent=19 // pred_check_branch
          %1656 = sbr.rel (%p1654) target = $region144
        $region143: #{tpu_custom_call.1} parent=19 // pred_region
          %s1657 = sand.u32 %s127, 1
          %s1658 = scalar_lea.sflag [#allocation47], %s1657
          %s1659 = sand.u32 %s938, 1
          %s1660 = smul.addr %s1659, 16
          %s1661 = scalar_lea.vmem [#allocation46], %s1660
          %s1662 = smul.u32 2, %s127
          %s1664 = ssub.s32 256, 256
          %1665 = vsyncadd %s1658, %s1664
          %s1666 = smul.addr %s1662, 128
          %s1667 = scalar_lea.hbm %s63, %s1666
          %s1668 = sshll.u32 %s1661, 4
          %s1669 = int_to_ptr.vmem [resolvable:$true] %s1668
          %1674 = dma.hbm_to_vmem [thread:$0]  %s1667, 256, %s1669, %s1658, 128, 128, 8
        $region144: #{tpu_custom_call.1} parent=19 // pred_fallthru
          _
        // Predicated region
        $region145: #{tpu_custom_call.1} parent=19 // pred_check
          %p1675 = pneg %p974
        $region146: #{tpu_custom_call.1} parent=19 // pred_check_branch
          %1677 = sbr.rel (%p1675) target = $region148
        $region147: #{tpu_custom_call.1} parent=19 // pred_region
          %s1678 = sand.u32 %s127, 1
          %s1679 = scalar_lea.sflag [#allocation47], %s1678
          %s1680 = sand.u32 %s964, 1
          %s1681 = smul.addr %s1680, 16
          %s1682 = scalar_lea.vmem [#allocation48], %s1681
          %s1683 = smul.u32 2, %s127
          %s1685 = ssub.s32 256, 256
          %1686 = vsyncadd %s1679, %s1685
          %s1687 = smul.addr %s1683, 128
          %s1688 = scalar_lea.hbm %s65, %s1687
          %s1689 = sshll.u32 %s1682, 4
          %s1690 = int_to_ptr.vmem [resolvable:$true] %s1689
          %1695 = dma.hbm_to_vmem [thread:$0]  %s1688, 256, %s1690, %s1679, 128, 128, 8
        $region148: #{tpu_custom_call.1} parent=19 // pred_fallthru
          _
        // Predicated region
        $region149: #{tpu_custom_call.1} parent=19 // pred_check
          %p1696 = pneg %p1000
        $region150: #{tpu_custom_call.1} parent=19 // pred_check_branch
          %1698 = sbr.rel (%p1696) target = $region152
        $region151: #{tpu_custom_call.1} parent=19 // pred_region
          %s1699 = sand.u32 %s990, 1
          %s1700 = scalar_lea.sflag [#allocation50], %s1699
          %s1701 = sand.u32 %s990, 1
          %s1702 = smul.addr %s1701, 16
          %s1703 = scalar_lea.vmem [#allocation49], %s1702
          %s1704 = smul.u32 2, %s127
          %s1706 = ssub.s32 256, 256
          %1707 = vsyncadd %s1700, %s1706
          %s1708 = smul.addr %s1704, 128
          %s1709 = scalar_lea.hbm %s67, %s1708
          %s1710 = sshll.u32 %s1703, 4
          %s1711 = int_to_ptr.vmem [resolvable:$true] %s1710
          %1716 = dma.hbm_to_vmem [thread:$0]  %s1709, 256, %s1711, %s1700, 128, 128, 8
        $region152: #{tpu_custom_call.1} parent=19 // pred_fallthru
          _
      $region20: #{tpu_custom_call.1} parent=5 // pred_fallthru
        _
      %p1717 = scmp.le.s32.totalorder 1, %s127
      %p1718 = scmp.lt.s32.totalorder %s127, 3
      %p1719 = pnand %p1717, %p1718
      %p1720 = pneg %p1719
      // Predicated region
      $region153: #{tpu_custom_call.1} parent=5 // pred_check
        _
      $region154: #{tpu_custom_call.1} parent=5 // pred_check_branch
        %1722 = sbr.rel (%p1719) target = $region156
      $region155: #{tpu_custom_call.1} parent=5 // pred_region
        %s1723 = ssub.s32 %s127, 1
        // Predicated region
        $region157: #{tpu_custom_call.1} parent=155 // pred_check
          %p1724 = pneg %p148
        $region158: #{tpu_custom_call.1} parent=155 // pred_check_branch
          %1726 = sbr.rel (%p1724) target = $region160
        $region159: #{tpu_custom_call.1} parent=155 // pred_region
          %1727 = dma.done [#allocation5], 16
        $region160: #{tpu_custom_call.1} parent=155 // pred_fallthru
          _
        %s1728 = sand.u32 %s161, 1
        %s1729 = scalar_lea.sflag [#allocation3], %s1728
        %s1730 = sand.u32 %s161, 1
        %s1731 = smul.addr %s1730, 16
        %s1732 = scalar_lea.vmem [#allocation6], %s1731
        // Predicated region
        $region161: #{tpu_custom_call.1} parent=155 // pred_check
          %p1733 = pneg %p174
        $region162: #{tpu_custom_call.1} parent=155 // pred_check_branch
          %1735 = sbr.rel (%p1733) target = $region164
        $region163: #{tpu_custom_call.1} parent=155 // pred_region
          %1736 = dma.done %s1729, 256
        $region164: #{tpu_custom_call.1} parent=155 // pred_fallthru
          _
        %s1737 = sand.u32 %s132, 1
        %s1738 = scalar_lea.sflag [#allocation8], %s1737
        %s1739 = sand.u32 %s187, 1
        %s1740 = smul.addr %s1739, 16
        %s1741 = scalar_lea.vmem [#allocation7], %s1740
        // Predicated region
        $region165: #{tpu_custom_call.1} parent=155 // pred_check
          %p1742 = pneg %p200
        $region166: #{tpu_custom_call.1} parent=155 // pred_check_branch
          %1744 = sbr.rel (%p1742) target = $region168
        $region167: #{tpu_custom_call.1} parent=155 // pred_region
          %1745 = dma.done %s1738, 256
        $region168: #{tpu_custom_call.1} parent=155 // pred_fallthru
          _
        %s1746 = sand.u32 %s132, 1
        %s1747 = scalar_lea.sflag [#allocation8], %s1746
        %s1748 = sand.u32 %s213, 1
        %s1749 = smul.addr %s1748, 16
        %s1750 = scalar_lea.vmem [#allocation9], %s1749
        // Predicated region
        $region169: #{tpu_custom_call.1} parent=155 // pred_check
          %p1751 = pneg %p226
        $region170: #{tpu_custom_call.1} parent=155 // pred_check_branch
          %1753 = sbr.rel (%p1751) target = $region172
        $region171: #{tpu_custom_call.1} parent=155 // pred_region
          %1754 = dma.done %s1747, 256
        $region172: #{tpu_custom_call.1} parent=155 // pred_fallthru
          _
        %s1755 = sand.u32 %s132, 1
        %s1756 = scalar_lea.sflag [#allocation11], %s1755
        %s1757 = sand.u32 %s239, 1
        %s1758 = smul.addr %s1757, 16
        %s1759 = scalar_lea.vmem [#allocation10], %s1758
        // Predicated region
        $region173: #{tpu_custom_call.1} parent=155 // pred_check
          %p1760 = pneg %p252
        $region174: #{tpu_custom_call.1} parent=155 // pred_check_branch
          %1762 = sbr.rel (%p1760) target = $region176
        $region175: #{tpu_custom_call.1} parent=155 // pred_region
          %1763 = dma.done %s1756, 256
        $region176: #{tpu_custom_call.1} parent=155 // pred_fallthru
          _
        %s1764 = sand.u32 %s132, 1
        %s1765 = scalar_lea.sflag [#allocation11], %s1764
        %s1766 = sand.u32 %s265, 1
        %s1767 = smul.addr %s1766, 16
        %s1768 = scalar_lea.vmem [#allocation12], %s1767
        // Predicated region
        $region177: #{tpu_custom_call.1} parent=155 // pred_check
          %p1769 = pneg %p278
        $region178: #{tpu_custom_call.1} parent=155 // pred_check_branch
          %1771 = sbr.rel (%p1769) target = $region180
        $region179: #{tpu_custom_call.1} parent=155 // pred_region
          %1772 = dma.done %s1765, 256
        $region180: #{tpu_custom_call.1} parent=155 // pred_fallthru
          _
        %s1773 = sand.u32 %s132, 1
        %s1774 = scalar_lea.sflag [#allocation14], %s1773
        %s1775 = sand.u32 %s291, 1
        %s1776 = smul.addr %s1775, 16
        %s1777 = scalar_lea.vmem [#allocation13], %s1776
        // Predicated region
        $region181: #{tpu_custom_call.1} parent=155 // pred_check
          %p1778 = pneg %p304
        $region182: #{tpu_custom_call.1} parent=155 // pred_check_branch
          %1780 = sbr.rel (%p1778) target = $region184
        $region183: #{tpu_custom_call.1} parent=155 // pred_region
          %1781 = dma.done %s1774, 256
        $region184: #{tpu_custom_call.1} parent=155 // pred_fallthru
          _
        %s1782 = sand.u32 %s132, 1
        %s1783 = scalar_lea.sflag [#allocation14], %s1782
        %s1784 = sand.u32 %s317, 1
        %s1785 = smul.addr %s1784, 16
        %s1786 = scalar_lea.vmem [#allocation15], %s1785
        // Predicated region
        $region185: #{tpu_custom_call.1} parent=155 // pred_check
          %p1787 = pneg %p330
        $region186: #{tpu_custom_call.1} parent=155 // pred_check_branch
          %1789 = sbr.rel (%p1787) target = $region188
        $region187: #{tpu_custom_call.1} parent=155 // pred_region
          %1790 = dma.done %s1783, 256
        $region188: #{tpu_custom_call.1} parent=155 // pred_fallthru
          _
        %s1791 = sand.u32 %s132, 1
        %s1792 = scalar_lea.sflag [#allocation17], %s1791
        %s1793 = sand.u32 %s343, 1
        %s1794 = smul.addr %s1793, 16
        %s1795 = scalar_lea.vmem [#allocation16], %s1794
        // Predicated region
        $region189: #{tpu_custom_call.1} parent=155 // pred_check
          %p1796 = pneg %p356
        $region190: #{tpu_custom_call.1} parent=155 // pred_check_branch
          %1798 = sbr.rel (%p1796) target = $region192
        $region191: #{tpu_custom_call.1} parent=155 // pred_region
          %1799 = dma.done %s1792, 256
        $region192: #{tpu_custom_call.1} parent=155 // pred_fallthru
          _
        %s1800 = sand.u32 %s132, 1
        %s1801 = scalar_lea.sflag [#allocation17], %s1800
        %s1802 = sand.u32 %s395, 1
        %s1803 = smul.addr %s1802, 16
        %s1804 = scalar_lea.vmem [#allocation18], %s1803
        // Predicated region
        $region193: #{tpu_custom_call.1} parent=155 // pred_check
          %p1805 = pneg %p408
        $region194: #{tpu_custom_call.1} parent=155 // pred_check_branch
          %1807 = sbr.rel (%p1805) target = $region196
        $region195: #{tpu_custom_call.1} parent=155 // pred_region
          %1808 = dma.done %s1801, 256
        $region196: #{tpu_custom_call.1} parent=155 // pred_fallthru
          _
        %s1809 = sand.u32 %s132, 1
        %s1810 = scalar_lea.sflag [#allocation20], %s1809
        %s1811 = sand.u32 %s421, 1
        %s1812 = smul.addr %s1811, 16
        %s1813 = scalar_lea.vmem [#allocation19], %s1812
        // Predicated region
        $region197: #{tpu_custom_call.1} parent=155 // pred_check
          %p1814 = pneg %p434
        $region198: #{tpu_custom_call.1} parent=155 // pred_check_branch
          %1816 = sbr.rel (%p1814) target = $region200
        $region199: #{tpu_custom_call.1} parent=155 // pred_region
          %1817 = dma.done %s1810, 256
        $region200: #{tpu_custom_call.1} parent=155 // pred_fallthru
          _
        %s1818 = sand.u32 %s132, 1
        %s1819 = scalar_lea.sflag [#allocation20], %s1818
        %s1820 = sand.u32 %s447, 1
        %s1821 = smul.addr %s1820, 16
        %s1822 = scalar_lea.vmem [#allocation21], %s1821
        // Predicated region
        $region201: #{tpu_custom_call.1} parent=155 // pred_check
          %p1823 = pneg %p460
        $region202: #{tpu_custom_call.1} parent=155 // pred_check_branch
          %1825 = sbr.rel (%p1823) target = $region204
        $region203: #{tpu_custom_call.1} parent=155 // pred_region
          %1826 = dma.done %s1819, 256
        $region204: #{tpu_custom_call.1} parent=155 // pred_fallthru
          _
        %s1827 = sand.u32 %s132, 1
        %s1828 = scalar_lea.sflag [#allocation23], %s1827
        %s1829 = sand.u32 %s473, 1
        %s1830 = smul.addr %s1829, 16
        %s1831 = scalar_lea.vmem [#allocation22], %s1830
        // Predicated region
        $region205: #{tpu_custom_call.1} parent=155 // pred_check
          %p1832 = pneg %p486
        $region206: #{tpu_custom_call.1} parent=155 // pred_check_branch
          %1834 = sbr.rel (%p1832) target = $region208
        $region207: #{tpu_custom_call.1} parent=155 // pred_region
          %1835 = dma.done %s1828, 256
        $region208: #{tpu_custom_call.1} parent=155 // pred_fallthru
          _
        %s1836 = sand.u32 %s132, 1
        %s1837 = scalar_lea.sflag [#allocation23], %s1836
        %s1838 = sand.u32 %s499, 1
        %s1839 = smul.addr %s1838, 16
        %s1840 = scalar_lea.vmem [#allocation24], %s1839
        // Predicated region
        $region209: #{tpu_custom_call.1} parent=155 // pred_check
          %p1841 = pneg %p512
        $region210: #{tpu_custom_call.1} parent=155 // pred_check_branch
          %1843 = sbr.rel (%p1841) target = $region212
        $region211: #{tpu_custom_call.1} parent=155 // pred_region
          %1844 = dma.done %s1837, 256
        $region212: #{tpu_custom_call.1} parent=155 // pred_fallthru
          _
        %s1845 = sand.u32 %s132, 1
        %s1846 = scalar_lea.sflag [#allocation26], %s1845
        %s1847 = sand.u32 %s525, 1
        %s1848 = smul.addr %s1847, 16
        %s1849 = scalar_lea.vmem [#allocation25], %s1848
        // Predicated region
        $region213: #{tpu_custom_call.1} parent=155 // pred_check
          %p1850 = pneg %p538
        $region214: #{tpu_custom_call.1} parent=155 // pred_check_branch
          %1852 = sbr.rel (%p1850) target = $region216
        $region215: #{tpu_custom_call.1} parent=155 // pred_region
          %1853 = dma.done %s1846, 256
        $region216: #{tpu_custom_call.1} parent=155 // pred_fallthru
          _
        %s1854 = sand.u32 %s132, 1
        %s1855 = scalar_lea.sflag [#allocation26], %s1854
        %s1856 = sand.u32 %s551, 1
        %s1857 = smul.addr %s1856, 16
        %s1858 = scalar_lea.vmem [#allocation27], %s1857
        // Predicated region
        $region217: #{tpu_custom_call.1} parent=155 // pred_check
          %p1859 = pneg %p564
        $region218: #{tpu_custom_call.1} parent=155 // pred_check_branch
          %1861 = sbr.rel (%p1859) target = $region220
        $region219: #{tpu_custom_call.1} parent=155 // pred_region
          %1862 = dma.done %s1855, 256
        $region220: #{tpu_custom_call.1} parent=155 // pred_fallthru
          _
        %s1863 = sand.u32 %s132, 1
        %s1864 = scalar_lea.sflag [#allocation29], %s1863
        %s1865 = sand.u32 %s603, 1
        %s1866 = smul.addr %s1865, 16
        %s1867 = scalar_lea.vmem [#allocation28], %s1866
        // Predicated region
        $region221: #{tpu_custom_call.1} parent=155 // pred_check
          %p1868 = pneg %p616
        $region222: #{tpu_custom_call.1} parent=155 // pred_check_branch
          %1870 = sbr.rel (%p1868) target = $region224
        $region223: #{tpu_custom_call.1} parent=155 // pred_region
          %1871 = dma.done %s1864, 256
        $region224: #{tpu_custom_call.1} parent=155 // pred_fallthru
          _
        %s1872 = sand.u32 %s132, 1
        %s1873 = scalar_lea.sflag [#allocation29], %s1872
        %s1874 = sand.u32 %s629, 1
        %s1875 = smul.addr %s1874, 16
        %s1876 = scalar_lea.vmem [#allocation30], %s1875
        // Predicated region
        $region225: #{tpu_custom_call.1} parent=155 // pred_check
          %p1877 = pneg %p642
        $region226: #{tpu_custom_call.1} parent=155 // pred_check_branch
          %1879 = sbr.rel (%p1877) target = $region228
        $region227: #{tpu_custom_call.1} parent=155 // pred_region
          %1880 = dma.done %s1873, 256
        $region228: #{tpu_custom_call.1} parent=155 // pred_fallthru
          _
        %s1881 = sand.u32 %s132, 1
        %s1882 = scalar_lea.sflag [#allocation32], %s1881
        %s1883 = sand.u32 %s655, 1
        %s1884 = smul.addr %s1883, 16
        %s1885 = scalar_lea.vmem [#allocation31], %s1884
        // Predicated region
        $region229: #{tpu_custom_call.1} parent=155 // pred_check
          %p1886 = pneg %p668
        $region230: #{tpu_custom_call.1} parent=155 // pred_check_branch
          %1888 = sbr.rel (%p1886) target = $region232
        $region231: #{tpu_custom_call.1} parent=155 // pred_region
          %1889 = dma.done %s1882, 256
        $region232: #{tpu_custom_call.1} parent=155 // pred_fallthru
          _
        %s1890 = sand.u32 %s132, 1
        %s1891 = scalar_lea.sflag [#allocation32], %s1890
        %s1892 = sand.u32 %s681, 1
        %s1893 = smul.addr %s1892, 16
        %s1894 = scalar_lea.vmem [#allocation33], %s1893
        // Predicated region
        $region233: #{tpu_custom_call.1} parent=155 // pred_check
          %p1895 = pneg %p694
        $region234: #{tpu_custom_call.1} parent=155 // pred_check_branch
          %1897 = sbr.rel (%p1895) target = $region236
        $region235: #{tpu_custom_call.1} parent=155 // pred_region
          %1898 = dma.done %s1891, 256
        $region236: #{tpu_custom_call.1} parent=155 // pred_fallthru
          _
        %s1899 = sand.u32 %s132, 1
        %s1900 = scalar_lea.sflag [#allocation35], %s1899
        %s1901 = sand.u32 %s707, 1
        %s1902 = smul.addr %s1901, 16
        %s1903 = scalar_lea.vmem [#allocation34], %s1902
        // Predicated region
        $region237: #{tpu_custom_call.1} parent=155 // pred_check
          %p1904 = pneg %p720
        $region238: #{tpu_custom_call.1} parent=155 // pred_check_branch
          %1906 = sbr.rel (%p1904) target = $region240
        $region239: #{tpu_custom_call.1} parent=155 // pred_region
          %1907 = dma.done %s1900, 256
        $region240: #{tpu_custom_call.1} parent=155 // pred_fallthru
          _
        %s1908 = sand.u32 %s132, 1
        %s1909 = scalar_lea.sflag [#allocation35], %s1908
        %s1910 = sand.u32 %s733, 1
        %s1911 = smul.addr %s1910, 16
        %s1912 = scalar_lea.vmem [#allocation36], %s1911
        // Predicated region
        $region241: #{tpu_custom_call.1} parent=155 // pred_check
          %p1913 = pneg %p746
        $region242: #{tpu_custom_call.1} parent=155 // pred_check_branch
          %1915 = sbr.rel (%p1913) target = $region244
        $region243: #{tpu_custom_call.1} parent=155 // pred_region
          %1916 = dma.done %s1909, 256
        $region244: #{tpu_custom_call.1} parent=155 // pred_fallthru
          _
        %s1917 = sand.u32 %s132, 1
        %s1918 = scalar_lea.sflag [#allocation38], %s1917
        %s1919 = sand.u32 %s759, 1
        %s1920 = smul.addr %s1919, 16
        %s1921 = scalar_lea.vmem [#allocation37], %s1920
        // Predicated region
        $region245: #{tpu_custom_call.1} parent=155 // pred_check
          %p1922 = pneg %p772
        $region246: #{tpu_custom_call.1} parent=155 // pred_check_branch
          %1924 = sbr.rel (%p1922) target = $region248
        $region247: #{tpu_custom_call.1} parent=155 // pred_region
          %1925 = dma.done %s1918, 256
        $region248: #{tpu_custom_call.1} parent=155 // pred_fallthru
          _
        %s1926 = sand.u32 %s132, 1
        %s1927 = scalar_lea.sflag [#allocation38], %s1926
        %s1928 = sand.u32 %s785, 1
        %s1929 = smul.addr %s1928, 16
        %s1930 = scalar_lea.vmem [#allocation39], %s1929
        // Predicated region
        $region249: #{tpu_custom_call.1} parent=155 // pred_check
          %p1931 = pneg %p798
        $region250: #{tpu_custom_call.1} parent=155 // pred_check_branch
          %1933 = sbr.rel (%p1931) target = $region252
        $region251: #{tpu_custom_call.1} parent=155 // pred_region
          %1934 = dma.done %s1927, 256
        $region252: #{tpu_custom_call.1} parent=155 // pred_fallthru
          _
        %s1935 = sand.u32 %s132, 1
        %s1936 = scalar_lea.sflag [#allocation41], %s1935
        %s1937 = sand.u32 %s837, 1
        %s1938 = smul.addr %s1937, 16
        %s1939 = scalar_lea.vmem [#allocation40], %s1938
        // Predicated region
        $region253: #{tpu_custom_call.1} parent=155 // pred_check
          %p1940 = pneg %p850
        $region254: #{tpu_custom_call.1} parent=155 // pred_check_branch
          %1942 = sbr.rel (%p1940) target = $region256
        $region255: #{tpu_custom_call.1} parent=155 // pred_region
          %1943 = dma.done %s1936, 256
        $region256: #{tpu_custom_call.1} parent=155 // pred_fallthru
          _
        %s1944 = sand.u32 %s132, 1
        %s1945 = scalar_lea.sflag [#allocation41], %s1944
        %s1946 = sand.u32 %s863, 1
        %s1947 = smul.addr %s1946, 16
        %s1948 = scalar_lea.vmem [#allocation42], %s1947
        // Predicated region
        $region257: #{tpu_custom_call.1} parent=155 // pred_check
          %p1949 = pneg %p876
        $region258: #{tpu_custom_call.1} parent=155 // pred_check_branch
          %1951 = sbr.rel (%p1949) target = $region260
        $region259: #{tpu_custom_call.1} parent=155 // pred_region
          %1952 = dma.done %s1945, 256
        $region260: #{tpu_custom_call.1} parent=155 // pred_fallthru
          _
        %s1953 = sand.u32 %s132, 1
        %s1954 = scalar_lea.sflag [#allocation44], %s1953
        %s1955 = sand.u32 %s889, 1
        %s1956 = smul.addr %s1955, 16
        %s1957 = scalar_lea.vmem [#allocation43], %s1956
        // Predicated region
        $region261: #{tpu_custom_call.1} parent=155 // pred_check
          %p1958 = pneg %p902
        $region262: #{tpu_custom_call.1} parent=155 // pred_check_branch
          %1960 = sbr.rel (%p1958) target = $region264
        $region263: #{tpu_custom_call.1} parent=155 // pred_region
          %1961 = dma.done %s1954, 256
        $region264: #{tpu_custom_call.1} parent=155 // pred_fallthru
          _
        %s1962 = sand.u32 %s132, 1
        %s1963 = scalar_lea.sflag [#allocation44], %s1962
        %s1964 = sand.u32 %s915, 1
        %s1965 = smul.addr %s1964, 16
        %s1966 = scalar_lea.vmem [#allocation45], %s1965
        // Predicated region
        $region265: #{tpu_custom_call.1} parent=155 // pred_check
          %p1967 = pneg %p928
        $region266: #{tpu_custom_call.1} parent=155 // pred_check_branch
          %1969 = sbr.rel (%p1967) target = $region268
        $region267: #{tpu_custom_call.1} parent=155 // pred_region
          %1970 = dma.done %s1963, 256
        $region268: #{tpu_custom_call.1} parent=155 // pred_fallthru
          _
        %s1971 = sand.u32 %s132, 1
        %s1972 = scalar_lea.sflag [#allocation47], %s1971
        %s1973 = sand.u32 %s941, 1
        %s1974 = smul.addr %s1973, 16
        %s1975 = scalar_lea.vmem [#allocation46], %s1974
        // Predicated region
        $region269: #{tpu_custom_call.1} parent=155 // pred_check
          %p1976 = pneg %p954
        $region270: #{tpu_custom_call.1} parent=155 // pred_check_branch
          %1978 = sbr.rel (%p1976) target = $region272
        $region271: #{tpu_custom_call.1} parent=155 // pred_region
          %1979 = dma.done %s1972, 256
        $region272: #{tpu_custom_call.1} parent=155 // pred_fallthru
          _
        %s1980 = sand.u32 %s132, 1
        %s1981 = scalar_lea.sflag [#allocation47], %s1980
        %s1982 = sand.u32 %s967, 1
        %s1983 = smul.addr %s1982, 16
        %s1984 = scalar_lea.vmem [#allocation48], %s1983
        // Predicated region
        $region273: #{tpu_custom_call.1} parent=155 // pred_check
          %p1985 = pneg %p980
        $region274: #{tpu_custom_call.1} parent=155 // pred_check_branch
          %1987 = sbr.rel (%p1985) target = $region276
        $region275: #{tpu_custom_call.1} parent=155 // pred_region
          %1988 = dma.done %s1981, 256
        $region276: #{tpu_custom_call.1} parent=155 // pred_fallthru
          _
        %s1989 = sand.u32 %s993, 1
        %s1990 = scalar_lea.sflag [#allocation50], %s1989
        %s1991 = sand.u32 %s993, 1
        %s1992 = smul.addr %s1991, 16
        %s1993 = scalar_lea.vmem [#allocation49], %s1992
        // Predicated region
        $region277: #{tpu_custom_call.1} parent=155 // pred_check
          %p1994 = pneg %p1006
        $region278: #{tpu_custom_call.1} parent=155 // pred_check_branch
          %1996 = sbr.rel (%p1994) target = $region280
        $region279: #{tpu_custom_call.1} parent=155 // pred_region
          %1997 = dma.done %s1990, 256
        $region280: #{tpu_custom_call.1} parent=155 // pred_fallthru
          _
        %1998 = sfence
        %p1999 = pneg %p148
        %p2000 = pneg %p145
        %s2001 = sand.u32 %s161, 1
        %s2002 = scalar_lea.sflag [#allocation3], %s2001
        %s2003 = sand.u32 %s161, 1
        %s2004 = smul.addr %s2003, 16
        %s2005 = scalar_lea.vmem [#allocation6], %s2004
        %p2006 = pneg %p174
        %p2007 = pneg %p171
        %s2008 = sand.u32 %s132, 1
        %s2009 = scalar_lea.sflag [#allocation8], %s2008
        %s2010 = sand.u32 %s187, 1
        %s2011 = smul.addr %s2010, 16
        %s2012 = scalar_lea.vmem [#allocation7], %s2011
        %p2013 = pneg %p200
        %p2014 = pneg %p197
        %s2015 = sand.u32 %s132, 1
        %s2016 = scalar_lea.sflag [#allocation8], %s2015
        %s2017 = sand.u32 %s213, 1
        %s2018 = smul.addr %s2017, 16
        %s2019 = scalar_lea.vmem [#allocation9], %s2018
        %p2020 = pneg %p226
        %p2021 = pneg %p223
        %s2022 = sand.u32 %s132, 1
        %s2023 = scalar_lea.sflag [#allocation11], %s2022
        %s2024 = sand.u32 %s239, 1
        %s2025 = smul.addr %s2024, 16
        %s2026 = scalar_lea.vmem [#allocation10], %s2025
        %p2027 = pneg %p252
        %p2028 = pneg %p249
        %s2029 = sand.u32 %s132, 1
        %s2030 = scalar_lea.sflag [#allocation11], %s2029
        %s2031 = sand.u32 %s265, 1
        %s2032 = smul.addr %s2031, 16
        %s2033 = scalar_lea.vmem [#allocation12], %s2032
        %p2034 = pneg %p278
        %p2035 = pneg %p275
        %s2036 = sand.u32 %s132, 1
        %s2037 = scalar_lea.sflag [#allocation14], %s2036
        %s2038 = sand.u32 %s291, 1
        %s2039 = smul.addr %s2038, 16
        %s2040 = scalar_lea.vmem [#allocation13], %s2039
        %p2041 = pneg %p304
        %p2042 = pneg %p301
        %s2043 = sand.u32 %s132, 1
        %s2044 = scalar_lea.sflag [#allocation14], %s2043
        %s2045 = sand.u32 %s317, 1
        %s2046 = smul.addr %s2045, 16
        %s2047 = scalar_lea.vmem [#allocation15], %s2046
        %p2048 = pneg %p330
        %p2049 = pneg %p327
        %s2050 = sand.u32 %s132, 1
        %s2051 = scalar_lea.sflag [#allocation17], %s2050
        %s2052 = sand.u32 %s343, 1
        %s2053 = smul.addr %s2052, 16
        %s2054 = scalar_lea.vmem [#allocation16], %s2053
        %p2055 = pneg %p356
        %p2056 = pneg %p353
        %s2057 = smul.u32 2, %s132
        %p2058 = scmp.lt.s32.totalorder %s2057, 3
        %s2059 = scalar_select %p2058, %s2057, 3
        %s2060 = smul.addr %s2059, 8
        %s2061 = scalar_lea.vmem %s19, %s2060
        %p2062 = pneg %p382
        %p2063 = pneg %p379
        %s2064 = sand.u32 %s132, 1
        %s2065 = scalar_lea.sflag [#allocation17], %s2064
        %s2066 = sand.u32 %s395, 1
        %s2067 = smul.addr %s2066, 16
        %s2068 = scalar_lea.vmem [#allocation18], %s2067
        %p2069 = pneg %p408
        %p2070 = pneg %p405
        %s2071 = sand.u32 %s132, 1
        %s2072 = scalar_lea.sflag [#allocation20], %s2071
        %s2073 = sand.u32 %s421, 1
        %s2074 = smul.addr %s2073, 16
        %s2075 = scalar_lea.vmem [#allocation19], %s2074
        %p2076 = pneg %p434
        %p2077 = pneg %p431
        %s2078 = sand.u32 %s132, 1
        %s2079 = scalar_lea.sflag [#allocation20], %s2078
        %s2080 = sand.u32 %s447, 1
        %s2081 = smul.addr %s2080, 16
        %s2082 = scalar_lea.vmem [#allocation21], %s2081
        %p2083 = pneg %p460
        %p2084 = pneg %p457
        %s2085 = sand.u32 %s132, 1
        %s2086 = scalar_lea.sflag [#allocation23], %s2085
        %s2087 = sand.u32 %s473, 1
        %s2088 = smul.addr %s2087, 16
        %s2089 = scalar_lea.vmem [#allocation22], %s2088
        %p2090 = pneg %p486
        %p2091 = pneg %p483
        %s2092 = sand.u32 %s132, 1
        %s2093 = scalar_lea.sflag [#allocation23], %s2092
        %s2094 = sand.u32 %s499, 1
        %s2095 = smul.addr %s2094, 16
        %s2096 = scalar_lea.vmem [#allocation24], %s2095
        %p2097 = pneg %p512
        %p2098 = pneg %p509
        %s2099 = sand.u32 %s132, 1
        %s2100 = scalar_lea.sflag [#allocation26], %s2099
        %s2101 = sand.u32 %s525, 1
        %s2102 = smul.addr %s2101, 16
        %s2103 = scalar_lea.vmem [#allocation25], %s2102
        %p2104 = pneg %p538
        %p2105 = pneg %p535
        %s2106 = sand.u32 %s132, 1
        %s2107 = scalar_lea.sflag [#allocation26], %s2106
        %s2108 = sand.u32 %s551, 1
        %s2109 = smul.addr %s2108, 16
        %s2110 = scalar_lea.vmem [#allocation27], %s2109
        %p2111 = pneg %p564
        %p2112 = pneg %p561
        %s2113 = smul.u32 2, %s132
        %p2114 = scmp.lt.s32.totalorder %s2113, 3
        %s2115 = scalar_select %p2114, %s2113, 3
        %s2116 = smul.addr %s2115, 8
        %s2117 = scalar_lea.vmem %s35, %s2116
        %p2118 = pneg %p590
        %p2119 = pneg %p587
        %s2120 = sand.u32 %s132, 1
        %s2121 = scalar_lea.sflag [#allocation29], %s2120
        %s2122 = sand.u32 %s603, 1
        %s2123 = smul.addr %s2122, 16
        %s2124 = scalar_lea.vmem [#allocation28], %s2123
        %p2125 = pneg %p616
        %p2126 = pneg %p613
        %s2127 = sand.u32 %s132, 1
        %s2128 = scalar_lea.sflag [#allocation29], %s2127
        %s2129 = sand.u32 %s629, 1
        %s2130 = smul.addr %s2129, 16
        %s2131 = scalar_lea.vmem [#allocation30], %s2130
        %p2132 = pneg %p642
        %p2133 = pneg %p639
        %s2134 = sand.u32 %s132, 1
        %s2135 = scalar_lea.sflag [#allocation32], %s2134
        %s2136 = sand.u32 %s655, 1
        %s2137 = smul.addr %s2136, 16
        %s2138 = scalar_lea.vmem [#allocation31], %s2137
        %p2139 = pneg %p668
        %p2140 = pneg %p665
        %s2141 = sand.u32 %s132, 1
        %s2142 = scalar_lea.sflag [#allocation32], %s2141
        %s2143 = sand.u32 %s681, 1
        %s2144 = smul.addr %s2143, 16
        %s2145 = scalar_lea.vmem [#allocation33], %s2144
        %p2146 = pneg %p694
        %p2147 = pneg %p691
        %s2148 = sand.u32 %s132, 1
        %s2149 = scalar_lea.sflag [#allocation35], %s2148
        %s2150 = sand.u32 %s707, 1
        %s2151 = smul.addr %s2150, 16
        %s2152 = scalar_lea.vmem [#allocation34], %s2151
        %p2153 = pneg %p720
        %p2154 = pneg %p717
        %s2155 = sand.u32 %s132, 1
        %s2156 = scalar_lea.sflag [#allocation35], %s2155
        %s2157 = sand.u32 %s733, 1
        %s2158 = smul.addr %s2157, 16
        %s2159 = scalar_lea.vmem [#allocation36], %s2158
        %p2160 = pneg %p746
        %p2161 = pneg %p743
        %s2162 = sand.u32 %s132, 1
        %s2163 = scalar_lea.sflag [#allocation38], %s2162
        %s2164 = sand.u32 %s759, 1
        %s2165 = smul.addr %s2164, 16
        %s2166 = scalar_lea.vmem [#allocation37], %s2165
        %p2167 = pneg %p772
        %p2168 = pneg %p769
        %s2169 = sand.u32 %s132, 1
        %s2170 = scalar_lea.sflag [#allocation38], %s2169
        %s2171 = sand.u32 %s785, 1
        %s2172 = smul.addr %s2171, 16
        %s2173 = scalar_lea.vmem [#allocation39], %s2172
        %p2174 = pneg %p798
        %p2175 = pneg %p795
        %s2176 = smul.u32 2, %s132
        %p2177 = scmp.lt.s32.totalorder %s2176, 3
        %s2178 = scalar_select %p2177, %s2176, 3
        %s2179 = smul.addr %s2178, 8
        %s2180 = scalar_lea.vmem %s53, %s2179
        %p2181 = pneg %p824
        %p2182 = pneg %p821
        %s2183 = sand.u32 %s132, 1
        %s2184 = scalar_lea.sflag [#allocation41], %s2183
        %s2185 = sand.u32 %s837, 1
        %s2186 = smul.addr %s2185, 16
        %s2187 = scalar_lea.vmem [#allocation40], %s2186
        %p2188 = pneg %p850
        %p2189 = pneg %p847
        %s2190 = sand.u32 %s132, 1
        %s2191 = scalar_lea.sflag [#allocation41], %s2190
        %s2192 = sand.u32 %s863, 1
        %s2193 = smul.addr %s2192, 16
        %s2194 = scalar_lea.vmem [#allocation42], %s2193
        %p2195 = pneg %p876
        %p2196 = pneg %p873
        %s2197 = sand.u32 %s132, 1
        %s2198 = scalar_lea.sflag [#allocation44], %s2197
        %s2199 = sand.u32 %s889, 1
        %s2200 = smul.addr %s2199, 16
        %s2201 = scalar_lea.vmem [#allocation43], %s2200
        %p2202 = pneg %p902
        %p2203 = pneg %p899
        %s2204 = sand.u32 %s132, 1
        %s2205 = scalar_lea.sflag [#allocation44], %s2204
        %s2206 = sand.u32 %s915, 1
        %s2207 = smul.addr %s2206, 16
        %s2208 = scalar_lea.vmem [#allocation45], %s2207
        %p2209 = pneg %p928
        %p2210 = pneg %p925
        %s2211 = sand.u32 %s132, 1
        %s2212 = scalar_lea.sflag [#allocation47], %s2211
        %s2213 = sand.u32 %s941, 1
        %s2214 = smul.addr %s2213, 16
        %s2215 = scalar_lea.vmem [#allocation46], %s2214
        %p2216 = pneg %p954
        %p2217 = pneg %p951
        %s2218 = sand.u32 %s132, 1
        %s2219 = scalar_lea.sflag [#allocation47], %s2218
        %s2220 = sand.u32 %s967, 1
        %s2221 = smul.addr %s2220, 16
        %s2222 = scalar_lea.vmem [#allocation48], %s2221
        %p2223 = pneg %p980
        %p2224 = pneg %p977
        %s2225 = sand.u32 %s993, 1
        %s2226 = scalar_lea.sflag [#allocation50], %s2225
        %s2227 = sand.u32 %s993, 1
        %s2228 = smul.addr %s2227, 16
        %s2229 = scalar_lea.vmem [#allocation49], %s2228
        %p2230 = pneg %p1006
        %p2231 = pneg %p1003
        %p2232 = pneg %p1032
        %p2233 = pneg %p1029
        %s2234 = sand.u32 %s1019, 1
        %s2235 = scalar_lea.sflag [#allocation4], %s2234
        %s2236 = sand.u32 %s1019, 1
        %s2237 = smul.addr %s2236, 16
        %s2238 = scalar_lea.vmem [#allocation51], %s2237
        %s2239 = smul.u32 2, %s132
        %s2240 = smul.u32 2, %s132
        %s2241 = smul.u32 2, %s132
        %s2242 = smul.u32 2, %s132
        %s2243 = smul.u32 2, %s132
        %s2244 = smul.u32 2, %s132
        %s2245 = smul.u32 2, %s132
        %s2246 = smul.u32 2, %s132
        %s2247 = smul.u32 2, %s132
        %p2248 = scmp.lt.s32.totalorder %s2247, 3
        %s2249 = scalar_select %p2248, %s2247, 3
        %s2250 = smul.addr %s2249, 8
        %s2251 = scalar_lea.vmem %s19, %s2250
        %s2252 = smul.u32 2, %s132
        %s2253 = smul.u32 2, %s132
        %s2254 = smul.u32 2, %s132
        %s2255 = smul.u32 2, %s132
        %s2256 = smul.u32 2, %s132
        %s2257 = smul.u32 2, %s132
        %s2258 = smul.u32 2, %s132
        %s2259 = smul.u32 2, %s132
        %s2260 = smul.u32 2, %s132
        %p2261 = scmp.lt.s32.totalorder %s2260, 3
        %s2262 = scalar_select %p2261, %s2260, 3
        %s2263 = smul.addr %s2262, 8
        %s2264 = scalar_lea.vmem %s35, %s2263
        %s2265 = smul.u32 2, %s132
        %s2266 = smul.u32 2, %s132
        %s2267 = smul.u32 2, %s132
        %s2268 = smul.u32 2, %s132
        %s2269 = smul.u32 2, %s132
        %s2270 = smul.u32 2, %s132
        %s2271 = smul.u32 2, %s132
        %s2272 = smul.u32 2, %s132
        %s2273 = smul.u32 2, %s132
        %s2274 = smul.u32 2, %s132
        %p2275 = scmp.lt.s32.totalorder %s2274, 3
        %s2276 = scalar_select %p2275, %s2274, 3
        %s2277 = smul.addr %s2276, 8
        %s2278 = scalar_lea.vmem %s53, %s2277
        %s2279 = smul.u32 2, %s132
        %s2280 = smul.u32 2, %s132
        %s2281 = smul.u32 2, %s132
        %s2282 = smul.u32 2, %s132
        %s2283 = smul.u32 2, %s132
        %s2284 = smul.u32 2, %s132
        %s2285 = smul.u32 2, %s132
        %s2286 = smul.u32 2, %s132
        %s2287 = smul.u32 2, %s132
        %v2288 = vld [vmem:[%s1732] sm:$0xff]
        %v2289 = vld [vmem:[%s1732 + $0x8] sm:$0xff]
        %s2290 = sld [smem:[#allocation2]]
        %v2291 = vstv %s2290
        %v2292 = vmul.f32 %v2288, %v2291
        %v2293 = vmul.f32 %v2289, %v2291
        %v2294 = vld [vmem:[%s1741] sm:$0xff]
        %v2295 = vld [vmem:[%s1741 + $0x8] sm:$0xff]
        %s2296 = sld [smem:[#allocation2 + $0x1]]
        %v2297 = vstv %s2296
        %v2298 = vmul.f32 %v2294, %v2297
        %v2299 = vmul.f32 %v2295, %v2297
        %v2300 = vadd.f32 %v2292, %v2298
        %v2301 = vadd.f32 %v2293, %v2299
        %v2302 = vld [vmem:[%s1750] sm:$0xff]
        %v2303 = vld [vmem:[%s1750 + $0x8] sm:$0xff]
        %s2304 = sld [smem:[#allocation2 + $0x2]]
        %v2305 = vstv %s2304
        %v2306 = vmul.f32 %v2302, %v2305
        %v2307 = vmul.f32 %v2303, %v2305
        %v2308 = vadd.f32 %v2300, %v2306
        %v2309 = vadd.f32 %v2301, %v2307
        %v2310 = vld [vmem:[%s1759] sm:$0xff]
        %v2311 = vld [vmem:[%s1759 + $0x8] sm:$0xff]
        %s2312 = sld [smem:[#allocation2 + $0x3]]
        %v2313 = vstv %s2312
        %v2314 = vmul.f32 %v2310, %v2313
        %v2315 = vmul.f32 %v2311, %v2313
        %v2316 = vadd.f32 %v2308, %v2314
        %v2317 = vadd.f32 %v2309, %v2315
        %v2318 = vld [vmem:[%s1768] sm:$0xff]
        %v2319 = vld [vmem:[%s1768 + $0x8] sm:$0xff]
        %s2320 = sld [smem:[#allocation2 + $0x4]]
        %v2321 = vstv %s2320
        %v2322 = vmul.f32 %v2318, %v2321
        %v2323 = vmul.f32 %v2319, %v2321
        %v2324 = vadd.f32 %v2316, %v2322
        %v2325 = vadd.f32 %v2317, %v2323
        %v2326 = vld [vmem:[%s1777] sm:$0xff]
        %v2327 = vld [vmem:[%s1777 + $0x8] sm:$0xff]
        %s2328 = sld [smem:[#allocation2 + $0x5]]
        %v2329 = vstv %s2328
        %v2330 = vmul.f32 %v2326, %v2329
        %v2331 = vmul.f32 %v2327, %v2329
        %v2332 = vadd.f32 %v2324, %v2330
        %v2333 = vadd.f32 %v2325, %v2331
        %v2334 = vld [vmem:[%s1786] sm:$0xff]
        %v2335 = vld [vmem:[%s1786 + $0x8] sm:$0xff]
        %s2336 = sld [smem:[#allocation2 + $0x6]]
        %v2337 = vstv %s2336
        %v2338 = vmul.f32 %v2334, %v2337
        %v2339 = vmul.f32 %v2335, %v2337
        %v2340 = vadd.f32 %v2332, %v2338
        %v2341 = vadd.f32 %v2333, %v2339
        %v2342 = vld [vmem:[%s1795] sm:$0xff]
        %v2343 = vld [vmem:[%s1795 + $0x8] sm:$0xff]
        %s2344 = sld [smem:[#allocation2 + $0x7]]
        %v2345 = vstv %s2344
        %v2346 = vmul.f32 %v2342, %v2345
        %v2347 = vmul.f32 %v2343, %v2345
        %v2348 = vadd.f32 %v2340, %v2346
        %v2349 = vadd.f32 %v2341, %v2347
        %v2350 = vld [vmem:[%s2251] sm:$0xff]
        %v2351 = vld [vmem:[%s2251 + $0x8] sm:$0xff]
        %s2352 = sld [smem:[#allocation2 + $0x8]]
        %v2353 = vstv %s2352
        %v2354 = vmul.f32 %v2350, %v2353
        %v2355 = vmul.f32 %v2351, %v2353
        %v2356 = vadd.f32 %v2348, %v2354
        %v2357 = vadd.f32 %v2349, %v2355
        %v2358 = vld [vmem:[%s1804] sm:$0xff]
        %v2359 = vld [vmem:[%s1804 + $0x8] sm:$0xff]
        %s2360 = sld [smem:[#allocation2 + $0x9]]
        %v2361 = vstv %s2360
        %v2362 = vmul.f32 %v2358, %v2361
        %v2363 = vmul.f32 %v2359, %v2361
        %v2364 = vadd.f32 %v2356, %v2362
        %v2365 = vadd.f32 %v2357, %v2363
        %v2366 = vld [vmem:[%s1813] sm:$0xff]
        %v2367 = vld [vmem:[%s1813 + $0x8] sm:$0xff]
        %s2368 = sld [smem:[#allocation2 + $0xa]]
        %v2369 = vstv %s2368
        %v2370 = vmul.f32 %v2366, %v2369
        %v2371 = vmul.f32 %v2367, %v2369
        %v2372 = vadd.f32 %v2364, %v2370
        %v2373 = vadd.f32 %v2365, %v2371
        %v2374 = vld [vmem:[%s1822] sm:$0xff]
        %v2375 = vld [vmem:[%s1822 + $0x8] sm:$0xff]
        %s2376 = sld [smem:[#allocation2 + $0xb]]
        %v2377 = vstv %s2376
        %v2378 = vmul.f32 %v2374, %v2377
        %v2379 = vmul.f32 %v2375, %v2377
        %v2380 = vadd.f32 %v2372, %v2378
        %v2381 = vadd.f32 %v2373, %v2379
        %v2382 = vld [vmem:[%s1831] sm:$0xff]
        %v2383 = vld [vmem:[%s1831 + $0x8] sm:$0xff]
        %s2384 = sld [smem:[#allocation2 + $0xc]]
        %v2385 = vstv %s2384
        %v2386 = vmul.f32 %v2382, %v2385
        %v2387 = vmul.f32 %v2383, %v2385
        %v2388 = vadd.f32 %v2380, %v2386
        %v2389 = vadd.f32 %v2381, %v2387
        %v2390 = vld [vmem:[%s1840] sm:$0xff]
        %v2391 = vld [vmem:[%s1840 + $0x8] sm:$0xff]
        %s2392 = sld [smem:[#allocation2 + $0xd]]
        %v2393 = vstv %s2392
        %v2394 = vmul.f32 %v2390, %v2393
        %v2395 = vmul.f32 %v2391, %v2393
        %v2396 = vadd.f32 %v2388, %v2394
        %v2397 = vadd.f32 %v2389, %v2395
        %v2398 = vld [vmem:[%s1849] sm:$0xff]
        %v2399 = vld [vmem:[%s1849 + $0x8] sm:$0xff]
        %s2400 = sld [smem:[#allocation2 + $0xe]]
        %v2401 = vstv %s2400
        %v2402 = vmul.f32 %v2398, %v2401
        %v2403 = vmul.f32 %v2399, %v2401
        %v2404 = vadd.f32 %v2396, %v2402
        %v2405 = vadd.f32 %v2397, %v2403
        %v2406 = vld [vmem:[%s1858] sm:$0xff]
        %v2407 = vld [vmem:[%s1858 + $0x8] sm:$0xff]
        %s2408 = sld [smem:[#allocation2 + $0xf]]
        %v2409 = vstv %s2408
        %v2410 = vmul.f32 %v2406, %v2409
        %v2411 = vmul.f32 %v2407, %v2409
        %v2412 = vadd.f32 %v2404, %v2410
        %v2413 = vadd.f32 %v2405, %v2411
        %v2414 = vld [vmem:[%s2264] sm:$0xff]
        %v2415 = vld [vmem:[%s2264 + $0x8] sm:$0xff]
        %s2416 = sld [smem:[#allocation2 + $0x10]]
        %v2417 = vstv %s2416
        %v2418 = vmul.f32 %v2414, %v2417
        %v2419 = vmul.f32 %v2415, %v2417
        %v2420 = vadd.f32 %v2412, %v2418
        %v2421 = vadd.f32 %v2413, %v2419
        %v2422 = vld [vmem:[%s1867] sm:$0xff]
        %v2423 = vld [vmem:[%s1867 + $0x8] sm:$0xff]
        %s2424 = sld [smem:[#allocation2 + $0x11]]
        %v2425 = vstv %s2424
        %v2426 = vmul.f32 %v2422, %v2425
        %v2427 = vmul.f32 %v2423, %v2425
        %v2428 = vadd.f32 %v2420, %v2426
        %v2429 = vadd.f32 %v2421, %v2427
        %v2430 = vld [vmem:[%s1876] sm:$0xff]
        %v2431 = vld [vmem:[%s1876 + $0x8] sm:$0xff]
        %s2432 = sld [smem:[#allocation2 + $0x12]]
        %v2433 = vstv %s2432
        %v2434 = vmul.f32 %v2430, %v2433
        %v2435 = vmul.f32 %v2431, %v2433
        %v2436 = vadd.f32 %v2428, %v2434
        %v2437 = vadd.f32 %v2429, %v2435
        %v2438 = vld [vmem:[%s1885] sm:$0xff]
        %v2439 = vld [vmem:[%s1885 + $0x8] sm:$0xff]
        %s2440 = sld [smem:[#allocation2 + $0x13]]
        %v2441 = vstv %s2440
        %v2442 = vmul.f32 %v2438, %v2441
        %v2443 = vmul.f32 %v2439, %v2441
        %v2444 = vadd.f32 %v2436, %v2442
        %v2445 = vadd.f32 %v2437, %v2443
        %v2446 = vld [vmem:[%s1894] sm:$0xff]
        %v2447 = vld [vmem:[%s1894 + $0x8] sm:$0xff]
        %s2448 = sld [smem:[#allocation2 + $0x14]]
        %v2449 = vstv %s2448
        %v2450 = vmul.f32 %v2446, %v2449
        %v2451 = vmul.f32 %v2447, %v2449
        %v2452 = vadd.f32 %v2444, %v2450
        %v2453 = vadd.f32 %v2445, %v2451
        %v2454 = vld [vmem:[%s1903] sm:$0xff]
        %v2455 = vld [vmem:[%s1903 + $0x8] sm:$0xff]
        %s2456 = sld [smem:[#allocation2 + $0x15]]
        %v2457 = vstv %s2456
        %v2458 = vmul.f32 %v2454, %v2457
        %v2459 = vmul.f32 %v2455, %v2457
        %v2460 = vadd.f32 %v2452, %v2458
        %v2461 = vadd.f32 %v2453, %v2459
        %v2462 = vld [vmem:[%s1912] sm:$0xff]
        %v2463 = vld [vmem:[%s1912 + $0x8] sm:$0xff]
        %s2464 = sld [smem:[#allocation2 + $0x16]]
        %v2465 = vstv %s2464
        %v2466 = vmul.f32 %v2462, %v2465
        %v2467 = vmul.f32 %v2463, %v2465
        %v2468 = vadd.f32 %v2460, %v2466
        %v2469 = vadd.f32 %v2461, %v2467
        %v2470 = vld [vmem:[%s1921] sm:$0xff]
        %v2471 = vld [vmem:[%s1921 + $0x8] sm:$0xff]
        %s2472 = sld [smem:[#allocation2 + $0x17]]
        %v2473 = vstv %s2472
        %v2474 = vmul.f32 %v2470, %v2473
        %v2475 = vmul.f32 %v2471, %v2473
        %v2476 = vadd.f32 %v2468, %v2474
        %v2477 = vadd.f32 %v2469, %v2475
        %v2478 = vld [vmem:[%s1930] sm:$0xff]
        %v2479 = vld [vmem:[%s1930 + $0x8] sm:$0xff]
        %s2480 = sld [smem:[#allocation2 + $0x18]]
        %v2481 = vstv %s2480
        %v2482 = vmul.f32 %v2478, %v2481
        %v2483 = vmul.f32 %v2479, %v2481
        %v2484 = vadd.f32 %v2476, %v2482
        %v2485 = vadd.f32 %v2477, %v2483
        %v2486 = vld [vmem:[%s2278] sm:$0xff]
        %v2487 = vld [vmem:[%s2278 + $0x8] sm:$0xff]
        %s2488 = sld [smem:[#allocation2 + $0x19]]
        %v2489 = vstv %s2488
        %v2490 = vmul.f32 %v2486, %v2489
        %v2491 = vmul.f32 %v2487, %v2489
        %v2492 = vadd.f32 %v2484, %v2490
        %v2493 = vadd.f32 %v2485, %v2491
        %v2494 = vld [vmem:[%s1939] sm:$0xff]
        %v2495 = vld [vmem:[%s1939 + $0x8] sm:$0xff]
        %s2496 = sld [smem:[#allocation2 + $0x1a]]
        %v2497 = vstv %s2496
        %v2498 = vmul.f32 %v2494, %v2497
        %v2499 = vmul.f32 %v2495, %v2497
        %v2500 = vadd.f32 %v2492, %v2498
        %v2501 = vadd.f32 %v2493, %v2499
        %v2502 = vld [vmem:[%s1948] sm:$0xff]
        %v2503 = vld [vmem:[%s1948 + $0x8] sm:$0xff]
        %s2504 = sld [smem:[#allocation2 + $0x1b]]
        %v2505 = vstv %s2504
        %v2506 = vmul.f32 %v2502, %v2505
        %v2507 = vmul.f32 %v2503, %v2505
        %v2508 = vadd.f32 %v2500, %v2506
        %v2509 = vadd.f32 %v2501, %v2507
        %v2510 = vld [vmem:[%s1957] sm:$0xff]
        %v2511 = vld [vmem:[%s1957 + $0x8] sm:$0xff]
        %s2512 = sld [smem:[#allocation2 + $0x1c]]
        %v2513 = vstv %s2512
        %v2514 = vmul.f32 %v2510, %v2513
        %v2515 = vmul.f32 %v2511, %v2513
        %v2516 = vadd.f32 %v2508, %v2514
        %v2517 = vadd.f32 %v2509, %v2515
        %v2518 = vld [vmem:[%s1966] sm:$0xff]
        %v2519 = vld [vmem:[%s1966 + $0x8] sm:$0xff]
        %s2520 = sld [smem:[#allocation2 + $0x1d]]
        %v2521 = vstv %s2520
        %v2522 = vmul.f32 %v2518, %v2521
        %v2523 = vmul.f32 %v2519, %v2521
        %v2524 = vadd.f32 %v2516, %v2522
        %v2525 = vadd.f32 %v2517, %v2523
        %v2526 = vld [vmem:[%s1975] sm:$0xff]
        %v2527 = vld [vmem:[%s1975 + $0x8] sm:$0xff]
        %s2528 = sld [smem:[#allocation2 + $0x1e]]
        %v2529 = vstv %s2528
        %v2530 = vmul.f32 %v2526, %v2529
        %v2531 = vmul.f32 %v2527, %v2529
        %v2532 = vadd.f32 %v2524, %v2530
        %v2533 = vadd.f32 %v2525, %v2531
        %v2534 = vld [vmem:[%s1984] sm:$0xff]
        %v2535 = vld [vmem:[%s1984 + $0x8] sm:$0xff]
        %s2536 = sld [smem:[#allocation2 + $0x1f]]
        %v2537 = vstv %s2536
        %v2538 = vmul.f32 %v2534, %v2537
        %v2539 = vmul.f32 %v2535, %v2537
        %v2540 = vadd.f32 %v2532, %v2538
        %v2541 = vadd.f32 %v2533, %v2539
        %s2542 = sld [smem:[#allocation2 + $0x20]]
        %v2543 = vstv %s2542
        %v2544 = vadd.f32 %v2540, %v2543
        %v2545 = vadd.f32 %v2541, %v2543
        %v2546 = vld [vmem:[%s1993] sm:$0xff]
        %v2547 = vld [vmem:[%s1993 + $0x8] sm:$0xff]
        %v2548 = vmul.f32 %v2544, %v2546
        %v2549 = vmul.f32 %v2545, %v2547
        %2550 = vst [vmem:[%s2238] sm:$0xff] %v2548
        %2551 = vst [vmem:[%s2238 + $0x8] sm:$0xff] %v2549
        %s2552 = sand.u32 %s1019, 1
        %s2553 = scalar_lea.sflag [#allocation4], %s2552
        %s2554 = sand.u32 %s1019, 1
        %s2555 = smul.addr %s2554, 16
        %s2556 = scalar_lea.vmem [#allocation51], %s2555
        // Predicated region
        $region281: #{tpu_custom_call.1} parent=155 // pred_check
          %p2557 = pneg %p1029
        $region282: #{tpu_custom_call.1} parent=155 // pred_check_branch
          %2559 = sbr.rel (%p2557) target = $region284
        $region283: #{tpu_custom_call.1} parent=155 // pred_region
          %s2560 = smul.u32 2, %s132
          %s2562 = ssub.s32 256, 256
          %2563 = vsyncadd %s2553, %s2562
          %s2564 = smul.addr %s2560, 128
          %s2565 = scalar_lea.hbm %s69, %s2564
          %s2566 = sshll.u32 %s2556, 4
          %s2567 = int_to_ptr.vmem [resolvable:$true] %s2566
          %2572 = dma.vmem_to_hbm [thread:$0]  %s2567, 256, %s2565, %s2553, 128, 128, 8
        $region284: #{tpu_custom_call.1} parent=155 // pred_fallthru
          _
      $region156: #{tpu_custom_call.1} parent=5 // pred_fallthru
        _
      %p2573 = scmp.le.s32.totalorder 2, %s127
      // Predicated region
      $region285: #{tpu_custom_call.1} parent=5 // pred_check
        %p2574 = pneg %p2573
      $region286: #{tpu_custom_call.1} parent=5 // pred_check_branch
        %2576 = sbr.rel (%p2574) target = $region288
      $region287: #{tpu_custom_call.1} parent=5 // pred_region
        %s2577 = ssub.s32 %s127, 2
        // Predicated region
        $region289: #{tpu_custom_call.1} parent=287 // pred_check
          %p2578 = pneg %p1035
        $region290: #{tpu_custom_call.1} parent=287 // pred_check_branch
          %2580 = sbr.rel (%p2578) target = $region292
        $region291: #{tpu_custom_call.1} parent=287 // pred_region
          %s2581 = sand.u32 %s1020, 1
          %s2582 = scalar_lea.sflag [#allocation4], %s2581
          %s2583 = sand.u32 %s1020, 1
          %s2584 = smul.addr %s2583, 16
          %s2585 = scalar_lea.vmem [#allocation51], %s2584
          %2586 = dma.done %s2582, 256
        $region292: #{tpu_custom_call.1} parent=287 // pred_fallthru
          _
      $region288: #{tpu_custom_call.1} parent=5 // pred_fallthru
        _
    $region6: #{tpu_custom_call.1} parent=1 // loop_footer
      %s131 = sadd.s32 1, %s127
    $region7: #{tpu_custom_call.1} parent=1 // loop_footer_branch
      %126 = sbr.rel target = $region3
    $region8: #{tpu_custom_call.1} parent=1 // loop_exit
      _
    %2587 = vsyncpa [#allocation3], 1
    %s2588 = scalar_lea.sflag [#allocation3], 1
    %2589 = vsyncpa %s2588, 1
    %2590 = vsyncpa [#allocation8], 1
    %s2591 = scalar_lea.sflag [#allocation8], 1
    %2592 = vsyncpa %s2591, 1
    %2593 = vsyncpa [#allocation11], 1
    %s2594 = scalar_lea.sflag [#allocation11], 1
    %2595 = vsyncpa %s2594, 1
    %2596 = vsyncpa [#allocation14], 1
    %s2597 = scalar_lea.sflag [#allocation14], 1
    %2598 = vsyncpa %s2597, 1
    %2599 = vsyncpa [#allocation17], 1
    %s2600 = scalar_lea.sflag [#allocation17], 1
    %2601 = vsyncpa %s2600, 1
    %2602 = vsyncpa [#allocation20], 1
    %s2603 = scalar_lea.sflag [#allocation20], 1
    %2604 = vsyncpa %s2603, 1
    %2605 = vsyncpa [#allocation23], 1
    %s2606 = scalar_lea.sflag [#allocation23], 1
    %2607 = vsyncpa %s2606, 1
    %2608 = vsyncpa [#allocation26], 1
    %s2609 = scalar_lea.sflag [#allocation26], 1
    %2610 = vsyncpa %s2609, 1
    %2611 = vsyncpa [#allocation29], 1
    %s2612 = scalar_lea.sflag [#allocation29], 1
    %2613 = vsyncpa %s2612, 1
    %2614 = vsyncpa [#allocation32], 1
    %s2615 = scalar_lea.sflag [#allocation32], 1
    %2616 = vsyncpa %s2615, 1
    %2617 = vsyncpa [#allocation35], 1
    %s2618 = scalar_lea.sflag [#allocation35], 1
    %2619 = vsyncpa %s2618, 1
    %2620 = vsyncpa [#allocation38], 1
    %s2621 = scalar_lea.sflag [#allocation38], 1
    %2622 = vsyncpa %s2621, 1
    %2623 = vsyncpa [#allocation41], 1
    %s2624 = scalar_lea.sflag [#allocation41], 1
    %2625 = vsyncpa %s2624, 1
    %2626 = vsyncpa [#allocation44], 1
    %s2627 = scalar_lea.sflag [#allocation44], 1
    %2628 = vsyncpa %s2627, 1
    %2629 = vsyncpa [#allocation47], 1
    %s2630 = scalar_lea.sflag [#allocation47], 1
    %2631 = vsyncpa %s2630, 1
    %2632 = vsyncpa [#allocation50], 1
    %s2633 = scalar_lea.sflag [#allocation50], 1
    %2634 = vsyncpa %s2633, 1
    %2635 = vsyncpa [#allocation4], 1
    %s2636 = scalar_lea.sflag [#allocation4], 1
    %2637 = vsyncpa %s2636, 1
    %2638 = vsyncpa [#allocation5], 1
    %s2639 = scalar_lea.sflag [#allocation5], 1
    %2640 = vsyncpa %s2639, 1

</llo_original>
